<compile_context>
chip_gen: v7x
topology: tpu7x:2x2x1
jax: 0.10.0
libtpu: 0.0.40
codegen_flags: <defaults>
</compile_context>

<pallas_src>
import numpy as np
import jax
import jax.numpy as jnp
from jax import lax
from jax.experimental import pallas as pl
from jax.experimental.pallas import tpu as pltpu


# ----------------------------------------------------------------------------
# Fused forward kernel factory: one grid step == BB images.
# ----------------------------------------------------------------------------
def _make_kernel(bb):
    def kernel(xt_ref, t1_ref, t2_ref, w1p_ref, w2f_ref, o_ref, a1_ref):
        f32 = jnp.float32
        bf16 = jnp.bfloat16

        xt = xt_ref[0]                              # (2, 12*bb, 144) bf16

        # ---- conv1: taps folded into K (bias via ones column), two y-pool phases
        z0 = jnp.dot(xt[0], t1_ref[...], preferred_element_type=f32)  # (12bb, 512)
        z1 = jnp.dot(xt[1], t1_ref[...], preferred_element_type=f32)
        zy = jnp.maximum(z0, z1)                                      # y-pool
        a1 = jnp.maximum(zy[:, 0:256], zy[:, 256:512])                # x-pool (12bb,256)
        a1_ref[...] = jnp.maximum(a1, 0.0).astype(bf16)               # ReLU, stage in VMEM

        # ---- conv2 (dropout = identity, eval): 7 row taps, bias folded into tap 0
        z2 = jnp.zeros((6 * bb, 256), f32)
        for ky in range(7):
            lhs = a1_ref[pl.ds(ky * bb, 6 * bb), :]                   # aligned ref load
            z2 = z2 + jnp.dot(lhs, t2_ref[ky], preferred_element_type=f32)
        zc = jnp.maximum(z2[:, 0:128], z2[:, 128:256])                # x-pool (6bb,128)

        # ---- y-pool + ReLU; build fc1 activation (bb, 384); col 127 of each slab == 1
        slabs = []
        for py in range(3):
            p = jnp.maximum(zc[(2 * py) * bb:(2 * py + 1) * bb, :],
                            zc[(2 * py + 1) * bb:(2 * py + 2) * bb, :])
            slabs.append(jnp.maximum(p, 0.0))
        act = jnp.concatenate(slabs, axis=1).astype(bf16)             # (bb, 384)

        # ---- fc1 (+bias via carry-1) + ReLU, fc2 (+bias, -1e30 pad cols) + log_softmax
        h = jnp.maximum(jnp.dot(act, w1p_ref[...],
                                preferred_element_type=f32), 0.0)     # (bb, 128)
        logits = jnp.dot(h.astype(bf16), w2f_ref[...],
                         preferred_element_type=f32)                  # (bb, 128)
        m = jnp.max(logits, axis=1, keepdims=True)
        e = jnp.exp(logits - m)
        o_ref[0] = logits - m - jnp.log(jnp.sum(e, axis=1, keepdims=True))

    return kernel


# ----------------------------------------------------------------------------
# Weight massaging: block-Toeplitz embedding, flatten-permutation fold, lane
# padding, bias folding, bf16 cast.
# ----------------------------------------------------------------------------
def _prep_params(params):
    w1, b1, w2, b2, fw1, fb1, fw2, fb2 = params
    f32, bf16 = jnp.float32, jnp.bfloat16

    # conv1 Toeplitz: rows = ky*28 + x_in (+ ones/bias row 140), cols = dx*256 + px*20 + c
    m1 = np.zeros((28, 2, 12, 5), np.float32)
    for dx in range(2):
        for px in range(12):
            for kx in range(5):
                m1[2 * px + dx + kx, dx, px, kx] = 1.0
    t1 = jnp.einsum('jdpk,cyk->yjdpc', jnp.asarray(m1), w1[:, 0, :, :])   # (5,28,2,12,20)
    t1 = t1.reshape(5, 28, 2, 240)
    t1 = jnp.pad(t1, ((0, 0), (0, 0), (0, 0), (0, 16))).reshape(140, 512)
    b1_half = jnp.pad(jnp.tile(b1, 12), (0, 16)).at[255].set(1.0)         # carry-1 at col 255
    bias_row1 = jnp.concatenate([b1_half, b1_half])[None, :]              # (1, 512)
    t1 = jnp.concatenate([t1, bias_row1, jnp.zeros((3, 512), f32)],
                         axis=0).astype(bf16)                             # (144, 512)

    # conv2 Toeplitz per ky tap: rows = x1*20 + c1 (+ bias/carry row 255 on tap 0),
    # cols = dx*128 + px*40 + c2
    m2 = np.zeros((12, 2, 3, 7), np.float32)
    for dx in range(2):
        for px in range(3):
            for kx in range(7):
                m2[2 * px + dx + kx, dx, px, kx] = 1.0
    t2 = jnp.einsum('xdpk,oiyk->yxidpo', jnp.asarray(m2), w2)             # (7,12,20,2,3,40)
    t2 = t2.reshape(7, 240, 2, 120)
    t2 = jnp.pad(t2, ((0, 0), (0, 16), (0, 0), (0, 8))).reshape(7, 256, 256)
    b2_half = jnp.pad(jnp.tile(b2, 3), (0, 8)).at[127].set(1.0)           # carry-1 at col 127
    t2 = t2.at[0, 255, :].set(jnp.concatenate([b2_half, b2_half])).astype(bf16)

    # fc1: fold PyTorch NCHW flatten (c, y, x) permutation, pad 120->128 / 50->128,
    # fold fb1 + carry-1 into row 127 of slab 0.
    w1t = fw1.reshape(50, 40, 3, 3).transpose(2, 3, 1, 0).reshape(3, 120, 50)
    w1t = jnp.pad(w1t, ((0, 0), (0, 8), (0, 78)))                          # (3,128,128)
    w1t = w1t.at[0, 127, :].set(jnp.pad(fb1, (0, 78)).at[127].set(1.0))
    w1p = w1t.reshape(384, 128).astype(bf16)

    # fc2: transpose, pad 50->128 / 10->128; row 127 = [fb2, -1e30 pads] (softmax mask).
    w2t = jnp.pad(fw2.T, ((0, 78), (0, 118)))                              # (128,128)
    w2t = w2t.at[127, :].set(
        jnp.concatenate([fb2, jnp.full((118,), -1e30, f32)]))
    w2f = w2t.astype(bf16)
    return t1, t2, w1p, w2f


# ----------------------------------------------------------------------------
# Wrapper: stacked-tap LHS construction + the pallas_call.
# ----------------------------------------------------------------------------
def custom_network_forward(x, params, block_batch=32):
    """x: (N, 1, 28, 28) NCHW float32 (same as PyTorch). Returns (N, 10) log-probs."""
    n = x.shape[0]
    bb = block_batch
    t1, t2, w1p, w2f = _prep_params(params)

    nb = (n + bb - 1) // bb
    n_pad = nb * bb
    x2d = x[:, 0, :, :]
    if n_pad != n:
        x2d = jnp.pad(x2d, ((0, n_pad - n), (0, 0), (0, 0)))

    # Stacked-tap conv1 LHS: (nb, 2 y-phases, 12*bb rows [py*bb + b], 144 = 5*28 + ones + pad)
    rows = (2 * np.arange(12, dtype=np.int32)[None, :, None]
            + np.arange(2, dtype=np.int32)[:, None, None]
            + np.arange(5, dtype=np.int32)[None, None, :])                 # (2,12,5)
    taps = x2d[:, rows, :]                                                 # (n_pad,2,12,5,28)
    taps = taps.reshape(nb, bb, 2, 12, 5, 28).transpose(0, 2, 3, 1, 4, 5)
    taps = taps.reshape(nb, 2, 12 * bb, 140)
    xt = jnp.concatenate(
        [taps,
         jnp.ones((nb, 2, 12 * bb, 1), jnp.float32),
         jnp.zeros((nb, 2, 12 * bb, 3), jnp.float32)],
        axis=-1).astype(jnp.bfloat16)                                      # (nb,2,12bb,144)

    flops = nb * (2 * 2 * 12 * bb * 144 * 512 + 7 * 2 * 6 * bb * 256 * 256
                  + 2 * bb * 384 * 128 + 2 * bb * 128 * 128)
    bytes_accessed = (xt.size * 2 + t1.size * 2 + t2.size * 2 + w1p.size * 2
                      + w2f.size * 2 + nb * bb * 128 * 4)
    cost = pl.CostEstimate(flops=flops, transcendentals=129 * nb * bb,
                           bytes_accessed=bytes_accessed)

    out = pl.pallas_call(
        _make_kernel(bb),
        out_shape=jax.ShapeDtypeStruct((nb, bb, 128), jnp.float32),
        grid=(nb,),
        in_specs=[
            pl.BlockSpec((1, 2, 12 * bb, 144), lambda i: (i, 0, 0, 0)),   # per-block input taps
            pl.BlockSpec((144, 512), lambda i: (0, 0)),                   # conv1 Toeplitz+bias
            pl.BlockSpec((7, 256, 256), lambda i: (0, 0, 0)),             # conv2 Toeplitz+bias
            pl.BlockSpec((384, 128), lambda i: (0, 0)),                   # fc1 (perm+bias fold)
            pl.BlockSpec((128, 128), lambda i: (0, 0)),                   # fc2 (+bias/mask row)
        ],
        out_specs=pl.BlockSpec((1, bb, 128), lambda i: (i, 0, 0)),        # lane-dense logits
        scratch_shapes=[pltpu.VMEM((12 * bb, 256), jnp.bfloat16)],        # staged conv1 output
        compiler_params=pltpu.CompilerParams(
            dimension_semantics=("parallel",)),
        cost_estimate=cost,
    )(xt, t1, t2, w1p, w2f)
    return out.reshape(n_pad, 128)[:n, :10]


# ----------------------------------------------------------------------------
# Pure-JAX reference (independent of the Pallas path) for verification
# ----------------------------------------------------------------------------
def reference_forward(x, params):
    w1, b1, w2, b2, fw1, fb1, fw2, fb2 = params
    dn = ("NCHW", "OIHW", "NCHW")
    y = lax.conv_general_dilated(x, w1, (1, 1), "VALID", dimension_numbers=dn,
                                 precision=lax.Precision.HIGHEST)
    y = y + b1[None, :, None, None]
    y = lax.reduce_window(y, -jnp.inf, lax.max, (1, 1, 2, 2), (1, 1, 2, 2), "VALID")
    y = jnp.maximum(y, 0.0)
    y = lax.conv_general_dilated(y, w2, (1, 1), "VALID", dimension_numbers=dn,
                                 precision=lax.Precision.HIGHEST)
    y = y + b2[None, :, None, None]
    y = lax.reduce_window(y, -jnp.inf, lax.max, (1, 1, 2, 2), (1, 1, 2, 2), "VALID")
    y = jnp.maximum(y, 0.0)
    y = y.reshape(y.shape[0], 360)
    h = jnp.maximum(jnp.dot(y, fw1.T, precision=lax.Precision.HIGHEST) + fb1, 0.0)
    logits = jnp.dot(h, fw2.T, precision=lax.Precision.HIGHEST) + fb2
    return jax.nn.log_softmax(logits, axis=1)


# ----------------------------------------------------------------------------
# Main
# ----------------------------------------------------------------------------
if __name__ == "__main__":
    key = jax.random.PRNGKey(0)
    ks = jax.random.split(key, 9)

    def uinit(k, shape, fan_in):
        bound = 1.0 / float(np.sqrt(fan_in))
        return jax.random.uniform(k, shape, jnp.float32, -bound, bound)

    # PyTorch-shaped parameters (Conv2d: OIHW, Linear: (out, in)), deterministic.
    w1 = uinit(ks[0], (20, 1, 5, 5), 1 * 5 * 5)
    b1 = uinit(ks[1], (20,), 1 * 5 * 5)
    w2 = uinit(ks[2], (40, 20, 7, 7), 20 * 7 * 7)
    b2 = uinit(ks[3], (40,), 20 * 7 * 7)
    fw1 = uinit(ks[4], (50, 360), 360)
    fb1 = uinit(ks[5], (50,), 360)
    fw2 = uinit(ks[6], (10, 50), 50)
    fb2 = uinit(ks[7], (10,), 50)
    params = (w1, b1, w2, b2, fw1, fb1, fw2, fb2)

    # Input must be (N, 1, 28, 28): fc1 expects 360 = 40 * 3 * 3 features.
    x = jax.random.normal(ks[8], (2, 1, 28, 28), jnp.float32)

    out = jax.jit(custom_network_forward)(x, params)
    out = jax.block_until_ready(out)
    assert out.shape == (2, 10), out.shape

    ref = reference_forward(x, params)
    max_err = float(jnp.max(jnp.abs(out - ref)))
    # bf16 MXU operands (f32 accumulation) vs f32-HIGHEST reference -> loose tol.
    if not bool(jnp.allclose(out, ref, atol=5e-2, rtol=5e-2)):
        raise SystemExit("mismatch vs reference: max abs err = %e" % max_err)
    print("KERNEL_OK")
</pallas_src>

<mosaic_0001>
module attributes {stable_mosaic.version = 11 : i64} {
  func.func @kernel(%arg0: i32, %arg1: memref<1x2x384x144xbf16, #tpu.memory_space<vmem>>, %arg2: memref<144x512xbf16, #tpu.memory_space<vmem>>, %arg3: memref<7x256x256xbf16, #tpu.memory_space<vmem>>, %arg4: memref<384x128xbf16, #tpu.memory_space<vmem>>, %arg5: memref<128x128xbf16, #tpu.memory_space<vmem>>, %arg6: memref<1x32x128xf32, #tpu.memory_space<vmem>>, %arg7: memref<384x256xbf16, #tpu.memory_space<vmem>>) attributes {dimension_semantics = [#tpu.dimension_semantics<parallel>], iteration_bounds = array<i64: 1>, scalar_prefetch = 0 : i64, scratch_operands = 1 : i64, tpu.core_type = #tpu.core_type<tc>, window_params = [{transform_indices = @transform_0, window_bounds = array<i64: 1, 2, 384, 144>}, {pipeline_mode = #tpu.pipeline_mode<synchronous>, transform_indices = @transform_1, window_bounds = array<i64: 144, 512>}, {pipeline_mode = #tpu.pipeline_mode<synchronous>, transform_indices = @transform_2, window_bounds = array<i64: 7, 256, 256>}, {pipeline_mode = #tpu.pipeline_mode<synchronous>, transform_indices = @transform_3, window_bounds = array<i64: 384, 128>}, {pipeline_mode = #tpu.pipeline_mode<synchronous>, transform_indices = @transform_4, window_bounds = array<i64: 128, 128>}, {transform_indices = @transform_5, window_bounds = array<i64: 1, 32, 128>}]} {
    %c0 = arith.constant 0 : index
    %c0_0 = arith.constant 0 : index
    %c0_1 = arith.constant 0 : index
    %c0_2 = arith.constant 0 : index
    %0 = vector.load %arg1[%c0, %c0_0, %c0_1, %c0_2] : memref<1x2x384x144xbf16, #tpu.memory_space<vmem>>, vector<1x2x384x144xbf16>
    %1 = vector.shape_cast %0 : vector<1x2x384x144xbf16> to vector<2x384x144xbf16>
    %2 = vector.extract_strided_slice %1 {offsets = [0, 0, 0], sizes = [1, 384, 144], strides = [1, 1, 1]} : vector<2x384x144xbf16> to vector<1x384x144xbf16>
    %3 = vector.shape_cast %2 : vector<1x384x144xbf16> to vector<384x144xbf16>
    %c0_3 = arith.constant 0 : index
    %c0_4 = arith.constant 0 : index
    %4 = vector.load %arg2[%c0_3, %c0_4] : memref<144x512xbf16, #tpu.memory_space<vmem>>, vector<144x512xbf16>
    %cst = arith.constant dense<0.000000e+00> : vector<384x512xf32>
    %5 = tpu.matmul %3, %4, %cst {dimension_numbers = #tpu.dot_dimension_numbers<[1], [0], [0], [1], [0, 0, 1, 1], [], []>} : vector<384x144xbf16>, vector<144x512xbf16>, vector<384x512xf32> -> vector<384x512xf32>
    %6 = vector.extract_strided_slice %1 {offsets = [1, 0, 0], sizes = [1, 384, 144], strides = [1, 1, 1]} : vector<2x384x144xbf16> to vector<1x384x144xbf16>
    %7 = vector.shape_cast %6 : vector<1x384x144xbf16> to vector<384x144xbf16>
    %c0_5 = arith.constant 0 : index
    %c0_6 = arith.constant 0 : index
    %8 = vector.load %arg2[%c0_5, %c0_6] : memref<144x512xbf16, #tpu.memory_space<vmem>>, vector<144x512xbf16>
    %cst_7 = arith.constant dense<0.000000e+00> : vector<384x512xf32>
    %9 = tpu.matmul %7, %8, %cst_7 {dimension_numbers = #tpu.dot_dimension_numbers<[1], [0], [0], [1], [0, 0, 1, 1], [], []>} : vector<384x144xbf16>, vector<144x512xbf16>, vector<384x512xf32> -> vector<384x512xf32>
    %10 = arith.maximumf %5, %9 : vector<384x512xf32>
    %11 = vector.extract_strided_slice %10 {offsets = [0, 0], sizes = [384, 256], strides = [1, 1]} : vector<384x512xf32> to vector<384x256xf32>
    %12 = vector.extract_strided_slice %10 {offsets = [0, 256], sizes = [384, 256], strides = [1, 1]} : vector<384x512xf32> to vector<384x256xf32>
    %13 = arith.maximumf %11, %12 : vector<384x256xf32>
    %cst_8 = arith.constant 0.000000e+00 : f32
    %14 = vector.broadcast %cst_8 : f32 to vector<384x256xf32>
    %15 = arith.maximumf %13, %14 : vector<384x256xf32>
    %16 = arith.truncf %15 : vector<384x256xf32> to vector<384x256xbf16>
    %c0_9 = arith.constant 0 : index
    %c0_10 = arith.constant 0 : index
    %17 = vector.load %arg7[%c0_9, %c0_10] : memref<384x256xbf16, #tpu.memory_space<vmem>>, vector<384x256xbf16>
    tpu.vector_store %arg7[%c0_9, %c0_10], %16 {strides = array<i32>} : memref<384x256xbf16, #tpu.memory_space<vmem>>, vector<384x256xbf16>,
    %cst_11 = arith.constant 0.000000e+00 : f32
    %18 = vector.broadcast %cst_11 : f32 to vector<192x256xf32>
    %c0_12 = arith.constant 0 : index
    %c0_13 = arith.constant 0 : index
    %19 = vector.load %arg7[%c0_12, %c0_13] : memref<384x256xbf16, #tpu.memory_space<vmem>>, vector<192x256xbf16>
    %c0_14 = arith.constant 0 : index
    %c0_15 = arith.constant 0 : index
    %c0_16 = arith.constant 0 : index
    %20 = vector.load %arg3[%c0_14, %c0_15, %c0_16] : memref<7x256x256xbf16, #tpu.memory_space<vmem>>, vector<1x256x256xbf16>
    %21 = vector.shape_cast %20 : vector<1x256x256xbf16> to vector<256x256xbf16>
    %cst_17 = arith.constant dense<0.000000e+00> : vector<192x256xf32>
    %22 = tpu.matmul %19, %21, %cst_17 {dimension_numbers = #tpu.dot_dimension_numbers<[1], [0], [0], [1], [0, 0, 1, 1], [], []>} : vector<192x256xbf16>, vector<256x256xbf16>, vector<192x256xf32> -> vector<192x256xf32>
    %23 = arith.addf %18, %22 : vector<192x256xf32>
    %c32 = arith.constant 32 : index
    %c0_18 = arith.constant 0 : index
    %24 = vector.load %arg7[%c32, %c0_18] : memref<384x256xbf16, #tpu.memory_space<vmem>>, vector<192x256xbf16>
    %c1 = arith.constant 1 : index
    %c0_19 = arith.constant 0 : index
    %c0_20 = arith.constant 0 : index
    %25 = vector.load %arg3[%c1, %c0_19, %c0_20] : memref<7x256x256xbf16, #tpu.memory_space<vmem>>, vector<1x256x256xbf16>
    %26 = vector.shape_cast %25 : vector<1x256x256xbf16> to vector<256x256xbf16>
    %cst_21 = arith.constant dense<0.000000e+00> : vector<192x256xf32>
    %27 = tpu.matmul %24, %26, %cst_21 {dimension_numbers = #tpu.dot_dimension_numbers<[1], [0], [0], [1], [0, 0, 1, 1], [], []>} : vector<192x256xbf16>, vector<256x256xbf16>, vector<192x256xf32> -> vector<192x256xf32>
    %28 = arith.addf %23, %27 : vector<192x256xf32>
    %c64 = arith.constant 64 : index
    %c0_22 = arith.constant 0 : index
    %29 = vector.load %arg7[%c64, %c0_22] : memref<384x256xbf16, #tpu.memory_space<vmem>>, vector<192x256xbf16>
    %c2 = arith.constant 2 : index
    %c0_23 = arith.constant 0 : index
    %c0_24 = arith.constant 0 : index
    %30 = vector.load %arg3[%c2, %c0_23, %c0_24] : memref<7x256x256xbf16, #tpu.memory_space<vmem>>, vector<1x256x256xbf16>
    %31 = vector.shape_cast %30 : vector<1x256x256xbf16> to vector<256x256xbf16>
    %cst_25 = arith.constant dense<0.000000e+00> : vector<192x256xf32>
    %32 = tpu.matmul %29, %31, %cst_25 {dimension_numbers = #tpu.dot_dimension_numbers<[1], [0], [0], [1], [0, 0, 1, 1], [], []>} : vector<192x256xbf16>, vector<256x256xbf16>, vector<192x256xf32> -> vector<192x256xf32>
    %33 = arith.addf %28, %32 : vector<192x256xf32>
    %c96 = arith.constant 96 : index
    %c0_26 = arith.constant 0 : index
    %34 = vector.load %arg7[%c96, %c0_26] : memref<384x256xbf16, #tpu.memory_space<vmem>>, vector<192x256xbf16>
    %c3 = arith.constant 3 : index
    %c0_27 = arith.constant 0 : index
    %c0_28 = arith.constant 0 : index
    %35 = vector.load %arg3[%c3, %c0_27, %c0_28] : memref<7x256x256xbf16, #tpu.memory_space<vmem>>, vector<1x256x256xbf16>
    %36 = vector.shape_cast %35 : vector<1x256x256xbf16> to vector<256x256xbf16>
    %cst_29 = arith.constant dense<0.000000e+00> : vector<192x256xf32>
    %37 = tpu.matmul %34, %36, %cst_29 {dimension_numbers = #tpu.dot_dimension_numbers<[1], [0], [0], [1], [0, 0, 1, 1], [], []>} : vector<192x256xbf16>, vector<256x256xbf16>, vector<192x256xf32> -> vector<192x256xf32>
    %38 = arith.addf %33, %37 : vector<192x256xf32>
    %c128 = arith.constant 128 : index
    %c0_30 = arith.constant 0 : index
    %39 = vector.load %arg7[%c128, %c0_30] : memref<384x256xbf16, #tpu.memory_space<vmem>>, vector<192x256xbf16>
    %c4 = arith.constant 4 : index
    %c0_31 = arith.constant 0 : index
    %c0_32 = arith.constant 0 : index
    %40 = vector.load %arg3[%c4, %c0_31, %c0_32] : memref<7x256x256xbf16, #tpu.memory_space<vmem>>, vector<1x256x256xbf16>
    %41 = vector.shape_cast %40 : vector<1x256x256xbf16> to vector<256x256xbf16>
    %cst_33 = arith.constant dense<0.000000e+00> : vector<192x256xf32>
    %42 = tpu.matmul %39, %41, %cst_33 {dimension_numbers = #tpu.dot_dimension_numbers<[1], [0], [0], [1], [0, 0, 1, 1], [], []>} : vector<192x256xbf16>, vector<256x256xbf16>, vector<192x256xf32> -> vector<192x256xf32>
    %43 = arith.addf %38, %42 : vector<192x256xf32>
    %c160 = arith.constant 160 : index
    %c0_34 = arith.constant 0 : index
    %44 = vector.load %arg7[%c160, %c0_34] : memref<384x256xbf16, #tpu.memory_space<vmem>>, vector<192x256xbf16>
    %c5 = arith.constant 5 : index
    %c0_35 = arith.constant 0 : index
    %c0_36 = arith.constant 0 : index
    %45 = vector.load %arg3[%c5, %c0_35, %c0_36] : memref<7x256x256xbf16, #tpu.memory_space<vmem>>, vector<1x256x256xbf16>
    %46 = vector.shape_cast %45 : vector<1x256x256xbf16> to vector<256x256xbf16>
    %cst_37 = arith.constant dense<0.000000e+00> : vector<192x256xf32>
    %47 = tpu.matmul %44, %46, %cst_37 {dimension_numbers = #tpu.dot_dimension_numbers<[1], [0], [0], [1], [0, 0, 1, 1], [], []>} : vector<192x256xbf16>, vector<256x256xbf16>, vector<192x256xf32> -> vector<192x256xf32>
    %48 = arith.addf %43, %47 : vector<192x256xf32>
    %c192 = arith.constant 192 : index
    %c0_38 = arith.constant 0 : index
    %49 = vector.load %arg7[%c192, %c0_38] : memref<384x256xbf16, #tpu.memory_space<vmem>>, vector<192x256xbf16>
    %c6 = arith.constant 6 : index
    %c0_39 = arith.constant 0 : index
    %c0_40 = arith.constant 0 : index
    %50 = vector.load %arg3[%c6, %c0_39, %c0_40] : memref<7x256x256xbf16, #tpu.memory_space<vmem>>, vector<1x256x256xbf16>
    %51 = vector.shape_cast %50 : vector<1x256x256xbf16> to vector<256x256xbf16>
    %cst_41 = arith.constant dense<0.000000e+00> : vector<192x256xf32>
    %52 = tpu.matmul %49, %51, %cst_41 {dimension_numbers = #tpu.dot_dimension_numbers<[1], [0], [0], [1], [0, 0, 1, 1], [], []>} : vector<192x256xbf16>, vector<256x256xbf16>, vector<192x256xf32> -> vector<192x256xf32>
    %53 = arith.addf %48, %52 : vector<192x256xf32>
    %54 = vector.extract_strided_slice %53 {offsets = [0, 0], sizes = [192, 128], strides = [1, 1]} : vector<192x256xf32> to vector<192x128xf32>
    %55 = vector.extract_strided_slice %53 {offsets = [0, 128], sizes = [192, 128], strides = [1, 1]} : vector<192x256xf32> to vector<192x128xf32>
    %56 = arith.maximumf %54, %55 : vector<192x128xf32>
    %57 = vector.extract_strided_slice %56 {offsets = [0, 0], sizes = [32, 128], strides = [1, 1]} : vector<192x128xf32> to vector<32x128xf32>
    %58 = vector.extract_strided_slice %56 {offsets = [32, 0], sizes = [32, 128], strides = [1, 1]} : vector<192x128xf32> to vector<32x128xf32>
    %59 = arith.maximumf %57, %58 : vector<32x128xf32>
    %cst_42 = arith.constant 0.000000e+00 : f32
    %60 = vector.broadcast %cst_42 : f32 to vector<32x128xf32>
    %61 = arith.maximumf %59, %60 : vector<32x128xf32>
    %62 = vector.extract_strided_slice %56 {offsets = [64, 0], sizes = [32, 128], strides = [1, 1]} : vector<192x128xf32> to vector<32x128xf32>
    %63 = vector.extract_strided_slice %56 {offsets = [96, 0], sizes = [32, 128], strides = [1, 1]} : vector<192x128xf32> to vector<32x128xf32>
    %64 = arith.maximumf %62, %63 : vector<32x128xf32>
    %cst_43 = arith.constant 0.000000e+00 : f32
    %65 = vector.broadcast %cst_43 : f32 to vector<32x128xf32>
    %66 = arith.maximumf %64, %65 : vector<32x128xf32>
    %67 = vector.extract_strided_slice %56 {offsets = [128, 0], sizes = [32, 128], strides = [1, 1]} : vector<192x128xf32> to vector<32x128xf32>
    %68 = vector.extract_strided_slice %56 {offsets = [160, 0], sizes = [32, 128], strides = [1, 1]} : vector<192x128xf32> to vector<32x128xf32>
    %69 = arith.maximumf %67, %68 : vector<32x128xf32>
    %cst_44 = arith.constant 0.000000e+00 : f32
    %70 = vector.broadcast %cst_44 : f32 to vector<32x128xf32>
    %71 = arith.maximumf %69, %70 : vector<32x128xf32>
    %72 = tpu.concatenate %61, %66, %71 in 1 : vector<32x128xf32>, vector<32x128xf32>, vector<32x128xf32> -> vector<32x384xf32>
    %73 = arith.truncf %72 : vector<32x384xf32> to vector<32x384xbf16>
    %c0_45 = arith.constant 0 : index
    %c0_46 = arith.constant 0 : index
    %74 = vector.load %arg4[%c0_45, %c0_46] : memref<384x128xbf16, #tpu.memory_space<vmem>>, vector<384x128xbf16>
    %cst_47 = arith.constant dense<0.000000e+00> : vector<32x128xf32>
    %75 = tpu.matmul %73, %74, %cst_47 {dimension_numbers = #tpu.dot_dimension_numbers<[1], [0], [0], [1], [0, 0, 1, 1], [], []>} : vector<32x384xbf16>, vector<384x128xbf16>, vector<32x128xf32> -> vector<32x128xf32>
    %cst_48 = arith.constant 0.000000e+00 : f32
    %76 = vector.broadcast %cst_48 : f32 to vector<32x128xf32>
    %77 = arith.maximumf %75, %76 : vector<32x128xf32>
    %78 = arith.truncf %77 : vector<32x128xf32> to vector<32x128xbf16>
    %c0_49 = arith.constant 0 : index
    %c0_50 = arith.constant 0 : index
    %79 = vector.load %arg5[%c0_49, %c0_50] : memref<128x128xbf16, #tpu.memory_space<vmem>>, vector<128x128xbf16>
    %cst_51 = arith.constant dense<0.000000e+00> : vector<32x128xf32>
    %80 = tpu.matmul %78, %79, %cst_51 {dimension_numbers = #tpu.dot_dimension_numbers<[1], [0], [0], [1], [0, 0, 1, 1], [], []>} : vector<32x128xbf16>, vector<128x128xbf16>, vector<32x128xf32> -> vector<32x128xf32>
    %cst_52 = arith.constant dense<0xFF800000> : vector<32xf32>
    %81 = vector.multi_reduction <maximumf>, %80, %cst_52 [1] : vector<32x128xf32> to vector<32xf32>
    %82 = vector.shape_cast %81 : vector<32xf32> to vector<32x1xf32>
    %83 = vector.broadcast %82 : vector<32x1xf32> to vector<32x128xf32>
    %84 = arith.subf %80, %83 : vector<32x128xf32>
    %85 = math.exp %84 : vector<32x128xf32>
    %86 = vector.broadcast %82 : vector<32x1xf32> to vector<32x128xf32>
    %87 = arith.subf %80, %86 : vector<32x128xf32>
    %cst_53 = arith.constant dense<0.000000e+00> : vector<32xf32>
    %88 = vector.multi_reduction <add>, %85, %cst_53 [1] : vector<32x128xf32> to vector<32xf32>
    %89 = vector.shape_cast %88 : vector<32xf32> to vector<32x1xf32>
    %90 = math.log %89 : vector<32x1xf32>
    %91 = vector.broadcast %90 : vector<32x1xf32> to vector<32x128xf32>
    %92 = arith.subf %87, %91 : vector<32x128xf32>
    %c0_54 = arith.constant 0 : index
    %c0_55 = arith.constant 0 : index
    %c0_56 = arith.constant 0 : index
    %93 = vector.load %arg6[%c0_54, %c0_55, %c0_56] : memref<1x32x128xf32, #tpu.memory_space<vmem>>, vector<1x32x128xf32>
    %94 = vector.shape_cast %93 : vector<1x32x128xf32> to vector<32x128xf32>
    %95 = vector.shape_cast %92 : vector<32x128xf32> to vector<1x32x128xf32>
    tpu.vector_store %arg6[%c0_54, %c0_55, %c0_56], %95 {strides = array<i32>} : memref<1x32x128xf32, #tpu.memory_space<vmem>>, vector<1x32x128xf32>,
    return
  }
  func.func @transform_0(%arg0: i32) -> (i32, i32, i32, i32) {
    %c0_i32 = arith.constant 0 : i32
    %c0_i32_0 = arith.constant 0 : i32
    %c0_i32_1 = arith.constant 0 : i32
    %c0_i32_2 = arith.constant 0 : i32
    return %arg0, %c0_i32, %c0_i32_0, %c0_i32_1 : i32, i32, i32, i32
  }
  func.func @transform_1(%arg0: i32) -> (i32, i32) {
    %c0_i32 = arith.constant 0 : i32
    %c0_i32_0 = arith.constant 0 : i32
    %c0_i32_1 = arith.constant 0 : i32
    return %c0_i32, %c0_i32_0 : i32, i32
  }
  func.func @transform_2(%arg0: i32) -> (i32, i32, i32) {
    %c0_i32 = arith.constant 0 : i32
    %c0_i32_0 = arith.constant 0 : i32
    %c0_i32_1 = arith.constant 0 : i32
    %c0_i32_2 = arith.constant 0 : i32
    return %c0_i32, %c0_i32_0, %c0_i32_1 : i32, i32, i32
  }
  func.func @transform_3(%arg0: i32) -> (i32, i32) {
    %c0_i32 = arith.constant 0 : i32
    %c0_i32_0 = arith.constant 0 : i32
    %c0_i32_1 = arith.constant 0 : i32
    return %c0_i32, %c0_i32_0 : i32, i32
  }
  func.func @transform_4(%arg0: i32) -> (i32, i32) {
    %c0_i32 = arith.constant 0 : i32
    %c0_i32_0 = arith.constant 0 : i32
    %c0_i32_1 = arith.constant 0 : i32
    return %c0_i32, %c0_i32_0 : i32, i32
  }
  func.func @transform_5(%arg0: i32) -> (i32, i32, i32) {
    %c0_i32 = arith.constant 0 : i32
    %c0_i32_0 = arith.constant 0 : i32
    %c0_i32_1 = arith.constant 0 : i32
    return %arg0, %c0_i32, %c0_i32_0 : i32, i32, i32
  }
}

</mosaic_0001>

<llo_original>
// kernel: tile.13
$region0: #{tile.13}
  #allocation0 [shape = 's32[1]{0}', space=sflag, size = 0x4, scoped, tag = 'scoped memory for tile.13']
  %s0 = inlined_call_operand.vmem [shape: f32[20], index: 0, kind: input, shape index: {}]
  %s1 = inlined_call_operand.vmem [shape: f32[12,20], index: 1, kind: output, shape index: {}]
  // Predicated region
  $region2: #{tile.13} parent=0 // pred_check
    _
  $region3: #{tile.13} parent=0 // pred_check_branch
    %3 = sbr.rel (0) target = $region5
  $region4: #{tile.13} parent=0 // pred_region
    _
  $region5: #{tile.13} parent=0 // pred_fallthru
    _
  %v4 = vld [vmem:[%s0] ss:$0 sm:$0xff]
  %5 = vst [vmem:[%s1] sm:$0xff] %v4
  %s6 = scalar_lea.vmem %s1, 8
  %7 = vst [vmem:[%s6] sm:$0xff] %v4

// kernel: tile.14
$region0: #{tile.14}
  %s0 = inlined_call_operand.vmem [shape: f32[12,20], index: 0, kind: input, shape index: {}]
  %s1 = inlined_call_operand.vmem [shape: f32[240], index: 1, kind: output, shape index: {}]
  $region1: #{tile.14} parent=0
    #allocation0 [shape = 'u8[4096]{0}', space=vmem, size = 0x1000, scoped, tag = 'scoped mem for output reshape']
    %v2 = vld [vmem:[%s0] sm:$0x1]
    %vm3 = vcmask 162816
    %4 = vst.msk [vmem:[#allocation0] sm:$0x1] %vm3, %v2
    %s5 = scalar_lea.vmem %s0, 6
    %v6 = vld [vmem:[%s5] sm:$0x1]
    %s7 = scalar_lea.vmem %s0, 6
    %v8 = vld [vmem:[%s7] sm:$0x1]
    %vm9 = vcmask 64512
    %v10 = vsel %vm9, %v8, %v6
    %11 = vrot.lane.b32.xlu0 %v10, 120
    %v12 = vpop.permute.xlu0 %11
    %vm13 = vcmask 97280
    %s14 = scalar_lea.vmem [#allocation0], 1
    %15 = vst.msk [vmem:[%s14] sm:$0x1] %vm13, %v12
    %vm16 = vcmask 1048512
    %17 = vst.msk [vmem:[#allocation0] sm:$0x1] %vm16, %v12
    %s18 = scalar_lea.vmem %s0, 5
    %v19 = vld [vmem:[%s18] sm:$0x1]
    %20 = vrot.lane.b32.xlu0 %v19, 100
    %v21 = vpop.permute.xlu0 %20
    %vm22 = vcmask 982816
    %23 = vst.msk [vmem:[#allocation0] sm:$0x1] %vm22, %v21
    %s24 = scalar_lea.vmem %s0, 11
    %v25 = vld [vmem:[%s24] sm:$0x1]
    %26 = vrot.lane.b32.xlu0 %v25, 92
    %v27 = vpop.permute.xlu0 %26
    %vm28 = vcmask 917216
    %s29 = scalar_lea.vmem [#allocation0], 1
    %30 = vst.msk [vmem:[%s29] sm:$0x1] %vm28, %v27
    %s31 = scalar_lea.vmem %s0, 4
    %v32 = vld [vmem:[%s31] sm:$0x1]
    %33 = vrot.lane.b32.xlu0 %v32, 80
    %v34 = vpop.permute.xlu0 %33
    %vm35 = vcmask 818816
    %36 = vst.msk [vmem:[#allocation0] sm:$0x1] %vm35, %v34
    %s37 = scalar_lea.vmem %s0, 10
    %v38 = vld [vmem:[%s37] sm:$0x1]
    %39 = vrot.lane.b32.xlu0 %v38, 72
    %v40 = vpop.permute.xlu0 %39
    %vm41 = vcmask 753216
    %s42 = scalar_lea.vmem [#allocation0], 1
    %43 = vst.msk [vmem:[%s42] sm:$0x1] %vm41, %v40
    %s44 = scalar_lea.vmem %s0, 3
    %v45 = vld [vmem:[%s44] sm:$0x1]
    %46 = vrot.lane.b32.xlu0 %v45, 60
    %v47 = vpop.permute.xlu0 %46
    %vm48 = vcmask 654816
    %49 = vst.msk [vmem:[#allocation0] sm:$0x1] %vm48, %v47
    %s50 = scalar_lea.vmem %s0, 9
    %v51 = vld [vmem:[%s50] sm:$0x1]
    %52 = vrot.lane.b32.xlu0 %v51, 52
    %v53 = vpop.permute.xlu0 %52
    %vm54 = vcmask 589216
    %s55 = scalar_lea.vmem [#allocation0], 1
    %56 = vst.msk [vmem:[%s55] sm:$0x1] %vm54, %v53
    %s57 = scalar_lea.vmem %s0, 2
    %v58 = vld [vmem:[%s57] sm:$0x1]
    %59 = vrot.lane.b32.xlu0 %v58, 40
    %v60 = vpop.permute.xlu0 %59
    %vm61 = vcmask 490816
    %62 = vst.msk [vmem:[#allocation0] sm:$0x1] %vm61, %v60
    %s63 = scalar_lea.vmem %s0, 8
    %v64 = vld [vmem:[%s63] sm:$0x1]
    %65 = vrot.lane.b32.xlu0 %v64, 32
    %v66 = vpop.permute.xlu0 %65
    %vm67 = vcmask 425216
    %s68 = scalar_lea.vmem [#allocation0], 1
    %69 = vst.msk [vmem:[%s68] sm:$0x1] %vm67, %v66
    %s70 = scalar_lea.vmem %s0, 1
    %v71 = vld [vmem:[%s70] sm:$0x1]
    %72 = vrot.lane.b32.xlu0 %v71, 20
    %v73 = vpop.permute.xlu0 %72
    %vm74 = vcmask 326816
    %75 = vst.msk [vmem:[#allocation0] sm:$0x1] %vm74, %v73
    %s76 = scalar_lea.vmem %s0, 7
    %v77 = vld [vmem:[%s76] sm:$0x1]
    %78 = vrot.lane.b32.xlu0 %v77, 12
    %v79 = vpop.permute.xlu0 %78
    %vm80 = vcmask 261216
    %s81 = scalar_lea.vmem [#allocation0], 1
    %82 = vst.msk [vmem:[%s81] sm:$0x1] %vm80, %v79
    %s84 = sshllo.u32 0, 2
    %v86 = vld [vmem:[#allocation0] sm:%s84]
    %s87 = sshllo.u32 0, 2
    %88 = vst [vmem:[%s1] sm:%s87] %v86

// kernel: tile.18
$region0: #{tile.18}
  #allocation0 [shape = 's32[1]{0}', space=sflag, size = 0x4, scoped, tag = 'scoped memory for tile.18']
  %s0 = inlined_call_operand.vmem [shape: f32[40], index: 0, kind: input, shape index: {}]
  %s1 = inlined_call_operand.vmem [shape: f32[3,40], index: 1, kind: output, shape index: {}]
  // Predicated region
  $region2: #{tile.18} parent=0 // pred_check
    _
  $region3: #{tile.18} parent=0 // pred_check_branch
    %3 = sbr.rel (0) target = $region5
  $region4: #{tile.18} parent=0 // pred_region
    _
  $region5: #{tile.18} parent=0 // pred_fallthru
    _
  %v4 = vld [vmem:[%s0] ss:$0 sm:$0xff]
  %5 = vst [vmem:[%s1] sm:$0xf] %v4

// kernel: tile.19
$region0: #{tile.19}
  %s0 = inlined_call_operand.vmem [shape: f32[3,40], index: 0, kind: input, shape index: {}]
  %s1 = inlined_call_operand.vmem [shape: f32[120], index: 1, kind: output, shape index: {}]
  $region1: #{tile.19} parent=0
    #allocation0 [shape = 'u8[4096]{0}', space=vmem, size = 0x1000, scoped, tag = 'scoped mem for output reshape']
    #allocation1 [shape = 'u8[4096]{0}', space=vmem, size = 0x1000, scoped, tag = 'scoped mem for input reshape']
    %s3 = sshllo.u32 0, 4
    %v4 = vld [vmem:[%s0] sm:%s3]
    %5 = vst [vmem:[#allocation1] sm:%s3] %v4
    %v6 = vld [vmem:[#allocation1] sm:$0x1]
    %vm7 = vcmask 326656
    %8 = vst.msk [vmem:[#allocation0] sm:$0x1] %vm7, %v6
    %s9 = scalar_lea.vmem [#allocation1], 2
    %v10 = vld [vmem:[%s9] sm:$0x1]
    %11 = vrot.lane.b32.xlu0 %v10, 80
    %v12 = vpop.permute.xlu0 %11
    %vm13 = vcmask 982656
    %14 = vst.msk [vmem:[#allocation0] sm:$0x1] %vm13, %v12
    %s15 = scalar_lea.vmem [#allocation1], 1
    %v16 = vld [vmem:[%s15] sm:$0x1]
    %17 = vrot.lane.b32.xlu0 %v16, 40
    %v18 = vpop.permute.xlu0 %17
    %vm19 = vcmask 654656
    %20 = vst.msk [vmem:[#allocation0] sm:$0x1] %vm19, %v18
    %s22 = sshllo.u32 0, 1
    %v24 = vld [vmem:[#allocation0] sm:%s22]
    %s25 = sshllo.u32 0, 1
    %26 = vst [vmem:[%s1] sm:%s25] %v24

// kernel: custom_network_forward.1
$region0: #{custom_network_forward.1}
  #allocation0 [shape = 'u32[]', space=smem, size = 0x4, offset = 0x4, fixed_abs, tag = 'smem constant byte address 0x4 - core index']
  #allocation1 [shape = 'u32[144,128]{1,0:T(1,128)}', space=vmem, size = 0x12000, scoped, tag = 'internal scratch']
  #allocation2 [shape = 'bf16[384,256]{1,0:T(16,128)(2,1)}', space=vmem, size = 0x30000, scoped, tag = 'scratch operand']
  %s0 = inlined_call_operand.vmem [shape: bf16[1,2,384,144], index: 0, kind: input, shape index: {}]
  %s1 = inlined_call_operand.vmem [shape: bf16[144,512], index: 1, kind: input, shape index: {}]
  %s2 = inlined_call_operand.vmem [shape: bf16[7,256,256], index: 2, kind: input, shape index: {}]
  %s3 = inlined_call_operand.vmem [shape: bf16[384,128], index: 3, kind: input, shape index: {}]
  %s4 = inlined_call_operand.vmem [shape: bf16[128,128], index: 4, kind: input, shape index: {}]
  %s5 = inlined_call_operand.vmem [shape: f32[1,32,128], index: 5, kind: output, shape index: {}]
  %s6 = sld [smem:[#allocation0]]
  $region30: #{custom_network_forward.1} parent=0
    _
  %s8 = ssub.s32 1, %s6
  %s9 = scalar_select 0, %s8, %s6
  // Predicated region
  $region2: #{custom_network_forward.1} parent=0 // pred_check
    _
  $region3: #{custom_network_forward.1} parent=0 // pred_check_branch
    %11 = sbr.rel (0) target = $region5
  $region4: #{custom_network_forward.1} parent=0 // pred_region
    _
  $region5: #{custom_network_forward.1} parent=0 // pred_fallthru
    _
  // Predicated region
  $region6: #{custom_network_forward.1} parent=0 // pred_check
    _
  $region7: #{custom_network_forward.1} parent=0 // pred_check_branch
    %13 = sbr.rel (0) target = $region9
  $region8: #{custom_network_forward.1} parent=0 // pred_region
    _
  $region9: #{custom_network_forward.1} parent=0 // pred_fallthru
    _
  // Predicated region
  $region10: #{custom_network_forward.1} parent=0 // pred_check
    _
  $region11: #{custom_network_forward.1} parent=0 // pred_check_branch
    %15 = sbr.rel (0) target = $region13
  $region12: #{custom_network_forward.1} parent=0 // pred_region
    _
  $region13: #{custom_network_forward.1} parent=0 // pred_fallthru
    _
  // Predicated region
  $region14: #{custom_network_forward.1} parent=0 // pred_check
    _
  $region15: #{custom_network_forward.1} parent=0 // pred_check_branch
    %17 = sbr.rel (0) target = $region17
  $region16: #{custom_network_forward.1} parent=0 // pred_region
    _
  $region17: #{custom_network_forward.1} parent=0 // pred_fallthru
    _
  // Predicated region
  $region18: #{custom_network_forward.1} parent=0 // pred_check
    _
  $region19: #{custom_network_forward.1} parent=0 // pred_check_branch
    %19 = sbr.rel (0) target = $region21
  $region20: #{custom_network_forward.1} parent=0 // pred_region
    _
  $region21: #{custom_network_forward.1} parent=0 // pred_fallthru
    _
  %v21 = vld [vmem:[%s0] sm:$0xff]
  %v22 = vld [vmem:[%s0 + $0x8] sm:$0xff]
  %v23 = vld [vmem:[%s0 + $0x10] sm:$0xff]
  %v24 = vld [vmem:[%s0 + $0x18] sm:$0xff]
  %v25 = vld [vmem:[%s0 + $0x20] sm:$0xff]
  %v26 = vld [vmem:[%s0 + $0x28] sm:$0xff]
  %v27 = vld [vmem:[%s0 + $0x30] sm:$0xff]
  %v28 = vld [vmem:[%s0 + $0x38] sm:$0xff]
  %v29 = vld [vmem:[%s0 + $0x40] sm:$0xff]
  %v30 = vld [vmem:[%s0 + $0x48] sm:$0xff]
  %v31 = vld [vmem:[%s0 + $0x50] sm:$0xff]
  %v32 = vld [vmem:[%s0 + $0x58] sm:$0xff]
  %v33 = vld [vmem:[%s0 + $0x60] sm:$0xff]
  %v34 = vld [vmem:[%s0 + $0x68] sm:$0xff]
  %v35 = vld [vmem:[%s0 + $0x70] sm:$0xff]
  %v36 = vld [vmem:[%s0 + $0x78] sm:$0xff]
  %v37 = vld [vmem:[%s0 + $0x80] sm:$0xff]
  %v38 = vld [vmem:[%s0 + $0x88] sm:$0xff]
  %v39 = vld [vmem:[%s0 + $0x90] sm:$0xff]
  %v40 = vld [vmem:[%s0 + $0x98] sm:$0xff]
  %v41 = vld [vmem:[%s0 + $0xa0] sm:$0xff]
  %v42 = vld [vmem:[%s0 + $0xa8] sm:$0xff]
  %v43 = vld [vmem:[%s0 + $0xb0] sm:$0xff]
  %v44 = vld [vmem:[%s0 + $0xb8] sm:$0xff]
  %v45 = vld [vmem:[%s0 + $0xc0] sm:$0xff]
  %v46 = vld [vmem:[%s0 + $0xc8] sm:$0xff]
  %v47 = vld [vmem:[%s0 + $0xd0] sm:$0xff]
  %v48 = vld [vmem:[%s0 + $0xd8] sm:$0xff]
  %v49 = vld [vmem:[%s0 + $0xe0] sm:$0xff]
  %v50 = vld [vmem:[%s0 + $0xe8] sm:$0xff]
  %v51 = vld [vmem:[%s0 + $0xf0] sm:$0xff]
  %v52 = vld [vmem:[%s0 + $0xf8] sm:$0xff]
  %v53 = vld [vmem:[%s0 + $0x100] sm:$0xff]
  %v54 = vld [vmem:[%s0 + $0x108] sm:$0xff]
  %v55 = vld [vmem:[%s0 + $0x110] sm:$0xff]
  %v56 = vld [vmem:[%s0 + $0x118] sm:$0xff]
  %v57 = vld [vmem:[%s0 + $0x120] sm:$0xff]
  %v58 = vld [vmem:[%s0 + $0x128] sm:$0xff]
  %v59 = vld [vmem:[%s0 + $0x130] sm:$0xff]
  %v60 = vld [vmem:[%s0 + $0x138] sm:$0xff]
  %v61 = vld [vmem:[%s0 + $0x140] sm:$0xff]
  %v62 = vld [vmem:[%s0 + $0x148] sm:$0xff]
  %v63 = vld [vmem:[%s0 + $0x150] sm:$0xff]
  %v64 = vld [vmem:[%s0 + $0x158] sm:$0xff]
  %v65 = vld [vmem:[%s0 + $0x160] sm:$0xff]
  %v66 = vld [vmem:[%s0 + $0x168] sm:$0xff]
  %v67 = vld [vmem:[%s0 + $0x170] sm:$0xff]
  %v68 = vld [vmem:[%s0 + $0x178] sm:$0xff]
  %v69 = vld [vmem:[%s0 + $0x180] sm:$0xff]
  %v70 = vld [vmem:[%s0 + $0x188] sm:$0xff]
  %v71 = vld [vmem:[%s0 + $0x190] sm:$0xff]
  %v72 = vld [vmem:[%s0 + $0x198] sm:$0xff]
  %v73 = vld [vmem:[%s0 + $0x1a0] sm:$0xff]
  %v74 = vld [vmem:[%s0 + $0x1a8] sm:$0xff]
  %v75 = vld [vmem:[%s0 + $0x1b0] sm:$0xff]
  %v76 = vld [vmem:[%s0 + $0x1b8] sm:$0xff]
  %v77 = vld [vmem:[%s0 + $0x1c0] sm:$0xff]
  %v78 = vld [vmem:[%s0 + $0x1c8] sm:$0xff]
  %v79 = vld [vmem:[%s0 + $0x1d0] sm:$0xff]
  %v80 = vld [vmem:[%s0 + $0x1d8] sm:$0xff]
  %v81 = vld [vmem:[%s0 + $0x1e0] sm:$0xff]
  %v82 = vld [vmem:[%s0 + $0x1e8] sm:$0xff]
  %v83 = vld [vmem:[%s0 + $0x1f0] sm:$0xff]
  %v84 = vld [vmem:[%s0 + $0x1f8] sm:$0xff]
  %v85 = vld [vmem:[%s0 + $0x200] sm:$0xff]
  %v86 = vld [vmem:[%s0 + $0x208] sm:$0xff]
  %v87 = vld [vmem:[%s0 + $0x210] sm:$0xff]
  %v88 = vld [vmem:[%s0 + $0x218] sm:$0xff]
  %v89 = vld [vmem:[%s0 + $0x220] sm:$0xff]
  %v90 = vld [vmem:[%s0 + $0x228] sm:$0xff]
  %v91 = vld [vmem:[%s0 + $0x230] sm:$0xff]
  %v92 = vld [vmem:[%s0 + $0x238] sm:$0xff]
  %v93 = vld [vmem:[%s0 + $0x240] sm:$0xff]
  %v94 = vld [vmem:[%s0 + $0x248] sm:$0xff]
  %v95 = vld [vmem:[%s0 + $0x250] sm:$0xff]
  %v96 = vld [vmem:[%s0 + $0x258] sm:$0xff]
  %v97 = vld [vmem:[%s0 + $0x260] sm:$0xff]
  %v98 = vld [vmem:[%s0 + $0x268] sm:$0xff]
  %v99 = vld [vmem:[%s0 + $0x270] sm:$0xff]
  %v100 = vld [vmem:[%s0 + $0x278] sm:$0xff]
  %v101 = vld [vmem:[%s0 + $0x280] sm:$0xff]
  %v102 = vld [vmem:[%s0 + $0x288] sm:$0xff]
  %v103 = vld [vmem:[%s0 + $0x290] sm:$0xff]
  %v104 = vld [vmem:[%s0 + $0x298] sm:$0xff]
  %v105 = vld [vmem:[%s0 + $0x2a0] sm:$0xff]
  %v106 = vld [vmem:[%s0 + $0x2a8] sm:$0xff]
  %v107 = vld [vmem:[%s0 + $0x2b0] sm:$0xff]
  %v108 = vld [vmem:[%s0 + $0x2b8] sm:$0xff]
  %v109 = vld [vmem:[%s0 + $0x2c0] sm:$0xff]
  %v110 = vld [vmem:[%s0 + $0x2c8] sm:$0xff]
  %v111 = vld [vmem:[%s0 + $0x2d0] sm:$0xff]
  %v112 = vld [vmem:[%s0 + $0x2d8] sm:$0xff]
  %v113 = vld [vmem:[%s0 + $0x2e0] sm:$0xff]
  %v114 = vld [vmem:[%s0 + $0x2e8] sm:$0xff]
  %v115 = vld [vmem:[%s0 + $0x2f0] sm:$0xff]
  %v116 = vld [vmem:[%s0 + $0x2f8] sm:$0xff]
  %v117 = vld [vmem:[%s1] sm:$0xff]
  %v118 = vld [vmem:[%s1 + $0x8] sm:$0xff]
  %v119 = vld [vmem:[%s1 + $0x10] sm:$0xff]
  %v120 = vld [vmem:[%s1 + $0x18] sm:$0xff]
  %v121 = vld [vmem:[%s1 + $0x20] sm:$0xff]
  %v122 = vld [vmem:[%s1 + $0x28] sm:$0xff]
  %v123 = vld [vmem:[%s1 + $0x30] sm:$0xff]
  %v124 = vld [vmem:[%s1 + $0x38] sm:$0xff]
  %v125 = vld [vmem:[%s1 + $0x40] sm:$0xff]
  %v126 = vld [vmem:[%s1 + $0x48] sm:$0xff]
  %v127 = vld [vmem:[%s1 + $0x50] sm:$0xff]
  %v128 = vld [vmem:[%s1 + $0x58] sm:$0xff]
  %v129 = vld [vmem:[%s1 + $0x60] sm:$0xff]
  %v130 = vld [vmem:[%s1 + $0x68] sm:$0xff]
  %v131 = vld [vmem:[%s1 + $0x70] sm:$0xff]
  %v132 = vld [vmem:[%s1 + $0x78] sm:$0xff]
  %v133 = vld [vmem:[%s1 + $0x80] sm:$0xff]
  %v134 = vld [vmem:[%s1 + $0x88] sm:$0xff]
  %v135 = vld [vmem:[%s1 + $0x90] sm:$0xff]
  %v136 = vld [vmem:[%s1 + $0x98] sm:$0xff]
  %v137 = vld [vmem:[%s1 + $0xa0] sm:$0xff]
  %v138 = vld [vmem:[%s1 + $0xa8] sm:$0xff]
  %v139 = vld [vmem:[%s1 + $0xb0] sm:$0xff]
  %v140 = vld [vmem:[%s1 + $0xb8] sm:$0xff]
  %v141 = vld [vmem:[%s1 + $0xc0] sm:$0xff]
  %v142 = vld [vmem:[%s1 + $0xc8] sm:$0xff]
  %v143 = vld [vmem:[%s1 + $0xd0] sm:$0xff]
  %v144 = vld [vmem:[%s1 + $0xd8] sm:$0xff]
  %v145 = vld [vmem:[%s1 + $0xe0] sm:$0xff]
  %v146 = vld [vmem:[%s1 + $0xe8] sm:$0xff]
  %v147 = vld [vmem:[%s1 + $0xf0] sm:$0xff]
  %v148 = vld [vmem:[%s1 + $0xf8] sm:$0xff]
  %v149 = vld [vmem:[%s1 + $0x100] sm:$0xff]
  %v150 = vld [vmem:[%s1 + $0x108] sm:$0xff]
  %v151 = vld [vmem:[%s1 + $0x110] sm:$0xff]
  %v152 = vld [vmem:[%s1 + $0x118] sm:$0xff]
  %v201 = vunpack.c.l.b16 %v21
  %v202 = vunpack.c.h.b16 %v21
  %v203 = vunpack.c.l.b16 %v22
  %v204 = vunpack.c.h.b16 %v22
  %v205 = vunpack.c.l.b16 %v23
  %v206 = vunpack.c.h.b16 %v23
  %v207 = vunpack.c.l.b16 %v24
  %v208 = vunpack.c.h.b16 %v24
  %v209 = vunpack.c.l.b16 %v25
  %v210 = vunpack.c.h.b16 %v25
  %v211 = vunpack.c.l.b16 %v26
  %v212 = vunpack.c.h.b16 %v26
  %v213 = vunpack.c.l.b16 %v27
  %v214 = vunpack.c.h.b16 %v27
  %v215 = vunpack.c.l.b16 %v28
  %v216 = vunpack.c.h.b16 %v28
  %v217 = vunpack.c.l.b16 %v29
  %v218 = vunpack.c.h.b16 %v29
  %v219 = vunpack.c.l.b16 %v30
  %v220 = vunpack.c.h.b16 %v30
  %v221 = vunpack.c.l.b16 %v31
  %v222 = vunpack.c.h.b16 %v31
  %v223 = vunpack.c.l.b16 %v32
  %v224 = vunpack.c.h.b16 %v32
  %v225 = vunpack.c.l.b16 %v33
  %v226 = vunpack.c.h.b16 %v33
  %v227 = vunpack.c.l.b16 %v34
  %v228 = vunpack.c.h.b16 %v34
  %v229 = vunpack.c.l.b16 %v35
  %v230 = vunpack.c.h.b16 %v35
  %v231 = vunpack.c.l.b16 %v36
  %v232 = vunpack.c.h.b16 %v36
  %v233 = vunpack.c.l.b16 %v37
  %v234 = vunpack.c.h.b16 %v37
  %v235 = vunpack.c.l.b16 %v38
  %v236 = vunpack.c.h.b16 %v38
  %v237 = vunpack.c.l.b16 %v39
  %v238 = vunpack.c.h.b16 %v39
  %v239 = vunpack.c.l.b16 %v40
  %v240 = vunpack.c.h.b16 %v40
  %v241 = vunpack.c.l.b16 %v41
  %v242 = vunpack.c.h.b16 %v41
  %v243 = vunpack.c.l.b16 %v42
  %v244 = vunpack.c.h.b16 %v42
  %v245 = vunpack.c.l.b16 %v43
  %v246 = vunpack.c.h.b16 %v43
  %v247 = vunpack.c.l.b16 %v44
  %v248 = vunpack.c.h.b16 %v44
  %v249 = vunpack.c.l.b16 %v45
  %v250 = vunpack.c.h.b16 %v45
  %v251 = vunpack.c.l.b16 %v46
  %v252 = vunpack.c.h.b16 %v46
  %v253 = vunpack.c.l.b16 %v47
  %v254 = vunpack.c.h.b16 %v47
  %v255 = vunpack.c.l.b16 %v48
  %v256 = vunpack.c.h.b16 %v48
  %v257 = vunpack.c.l.b16 %v49
  %v258 = vunpack.c.h.b16 %v49
  %v259 = vunpack.c.l.b16 %v50
  %v260 = vunpack.c.h.b16 %v50
  %v261 = vunpack.c.l.b16 %v51
  %v262 = vunpack.c.h.b16 %v51
  %v263 = vunpack.c.l.b16 %v52
  %v264 = vunpack.c.h.b16 %v52
  %v265 = vunpack.c.l.b16 %v53
  %v266 = vunpack.c.h.b16 %v53
  %v267 = vunpack.c.l.b16 %v54
  %v268 = vunpack.c.h.b16 %v54
  %v269 = vunpack.c.l.b16 %v55
  %v270 = vunpack.c.h.b16 %v55
  %v271 = vunpack.c.l.b16 %v56
  %v272 = vunpack.c.h.b16 %v56
  %v273 = vunpack.c.l.b16 %v57
  %v274 = vunpack.c.h.b16 %v57
  %v275 = vunpack.c.l.b16 %v58
  %v276 = vunpack.c.h.b16 %v58
  %v277 = vunpack.c.l.b16 %v59
  %v278 = vunpack.c.h.b16 %v59
  %v279 = vunpack.c.l.b16 %v60
  %v280 = vunpack.c.h.b16 %v60
  %v281 = vunpack.c.l.b16 %v61
  %v282 = vunpack.c.h.b16 %v61
  %v283 = vunpack.c.l.b16 %v62
  %v284 = vunpack.c.h.b16 %v62
  %v285 = vunpack.c.l.b16 %v63
  %v286 = vunpack.c.h.b16 %v63
  %v287 = vunpack.c.l.b16 %v64
  %v288 = vunpack.c.h.b16 %v64
  %v289 = vunpack.c.l.b16 %v65
  %v290 = vunpack.c.h.b16 %v65
  %v291 = vunpack.c.l.b16 %v66
  %v292 = vunpack.c.h.b16 %v66
  %v293 = vunpack.c.l.b16 %v67
  %v294 = vunpack.c.h.b16 %v67
  %v295 = vunpack.c.l.b16 %v68
  %v296 = vunpack.c.h.b16 %v68
  %v297 = vpack.c.b16 %v203, %v201
  %v298 = vpack.c.b16 %v204, %v202
  %v299 = vpack.c.b16 %v207, %v205
  %v300 = vpack.c.b16 %v208, %v206
  %v301 = vpack.c.b16 %v211, %v209
  %v302 = vpack.c.b16 %v212, %v210
  %v303 = vpack.c.b16 %v215, %v213
  %v304 = vpack.c.b16 %v216, %v214
  %v305 = vpack.c.b16 %v219, %v217
  %v306 = vpack.c.b16 %v220, %v218
  %v307 = vpack.c.b16 %v223, %v221
  %v308 = vpack.c.b16 %v224, %v222
  %v309 = vpack.c.b16 %v227, %v225
  %v310 = vpack.c.b16 %v228, %v226
  %v311 = vpack.c.b16 %v231, %v229
  %v312 = vpack.c.b16 %v232, %v230
  %v313 = vpack.c.b16 %v235, %v233
  %v314 = vpack.c.b16 %v236, %v234
  %v315 = vpack.c.b16 %v239, %v237
  %v316 = vpack.c.b16 %v240, %v238
  %v317 = vpack.c.b16 %v243, %v241
  %v318 = vpack.c.b16 %v244, %v242
  %v319 = vpack.c.b16 %v247, %v245
  %v320 = vpack.c.b16 %v248, %v246
  %v321 = vpack.c.b16 %v251, %v249
  %v322 = vpack.c.b16 %v252, %v250
  %v323 = vpack.c.b16 %v255, %v253
  %v324 = vpack.c.b16 %v256, %v254
  %v325 = vpack.c.b16 %v259, %v257
  %v326 = vpack.c.b16 %v260, %v258
  %v327 = vpack.c.b16 %v263, %v261
  %v328 = vpack.c.b16 %v264, %v262
  %v329 = vpack.c.b16 %v267, %v265
  %v330 = vpack.c.b16 %v268, %v266
  %v331 = vpack.c.b16 %v271, %v269
  %v332 = vpack.c.b16 %v272, %v270
  %v333 = vpack.c.b16 %v275, %v273
  %v334 = vpack.c.b16 %v276, %v274
  %v335 = vpack.c.b16 %v279, %v277
  %v336 = vpack.c.b16 %v280, %v278
  %v337 = vpack.c.b16 %v283, %v281
  %v338 = vpack.c.b16 %v284, %v282
  %v339 = vpack.c.b16 %v287, %v285
  %v340 = vpack.c.b16 %v288, %v286
  %v341 = vpack.c.b16 %v291, %v289
  %v342 = vpack.c.b16 %v292, %v290
  %v343 = vpack.c.b16 %v295, %v293
  %v344 = vpack.c.b16 %v296, %v294
  %v405 = vunpack.c.l.b16 %v117
  %v406 = vunpack.c.h.b16 %v117
  %v407 = vunpack.c.l.b16 %v118
  %v408 = vunpack.c.h.b16 %v118
  %v409 = vunpack.c.l.b16 %v119
  %v410 = vunpack.c.h.b16 %v119
  %v411 = vunpack.c.l.b16 %v120
  %v412 = vunpack.c.h.b16 %v120
  %v413 = vunpack.c.l.b16 %v121
  %v414 = vunpack.c.h.b16 %v121
  %v415 = vunpack.c.l.b16 %v122
  %v416 = vunpack.c.h.b16 %v122
  %v417 = vunpack.c.l.b16 %v123
  %v418 = vunpack.c.h.b16 %v123
  %v419 = vunpack.c.l.b16 %v124
  %v420 = vunpack.c.h.b16 %v124
  %v421 = vunpack.c.l.b16 %v125
  %v422 = vunpack.c.h.b16 %v125
  %v423 = vunpack.c.l.b16 %v126
  %v424 = vunpack.c.h.b16 %v126
  %v425 = vunpack.c.l.b16 %v127
  %v426 = vunpack.c.h.b16 %v127
  %v427 = vunpack.c.l.b16 %v128
  %v428 = vunpack.c.h.b16 %v128
  %v429 = vunpack.c.l.b16 %v129
  %v430 = vunpack.c.h.b16 %v129
  %v431 = vunpack.c.l.b16 %v130
  %v432 = vunpack.c.h.b16 %v130
  %v433 = vunpack.c.l.b16 %v131
  %v434 = vunpack.c.h.b16 %v131
  %v435 = vunpack.c.l.b16 %v132
  %v436 = vunpack.c.h.b16 %v132
  %v437 = vunpack.c.l.b16 %v133
  %v438 = vunpack.c.h.b16 %v133
  %v439 = vunpack.c.l.b16 %v134
  %v440 = vunpack.c.h.b16 %v134
  %v441 = vunpack.c.l.b16 %v135
  %v442 = vunpack.c.h.b16 %v135
  %v443 = vunpack.c.l.b16 %v136
  %v444 = vunpack.c.h.b16 %v136
  %v445 = vunpack.c.l.b16 %v137
  %v446 = vunpack.c.h.b16 %v137
  %v447 = vunpack.c.l.b16 %v138
  %v448 = vunpack.c.h.b16 %v138
  %v449 = vunpack.c.l.b16 %v139
  %v450 = vunpack.c.h.b16 %v139
  %v451 = vunpack.c.l.b16 %v140
  %v452 = vunpack.c.h.b16 %v140
  %v453 = vunpack.c.l.b16 %v141
  %v454 = vunpack.c.h.b16 %v141
  %v455 = vunpack.c.l.b16 %v142
  %v456 = vunpack.c.h.b16 %v142
  %v457 = vunpack.c.l.b16 %v143
  %v458 = vunpack.c.h.b16 %v143
  %v459 = vunpack.c.l.b16 %v144
  %v460 = vunpack.c.h.b16 %v144
  %v461 = vunpack.c.l.b16 %v145
  %v462 = vunpack.c.h.b16 %v145
  %v463 = vunpack.c.l.b16 %v146
  %v464 = vunpack.c.h.b16 %v146
  %v465 = vunpack.c.l.b16 %v147
  %v466 = vunpack.c.h.b16 %v147
  %v467 = vunpack.c.l.b16 %v148
  %v468 = vunpack.c.h.b16 %v148
  %v469 = vunpack.c.l.b16 %v149
  %v470 = vunpack.c.h.b16 %v149
  %v471 = vunpack.c.l.b16 %v150
  %v472 = vunpack.c.h.b16 %v150
  %v473 = vunpack.c.l.b16 %v151
  %v474 = vunpack.c.h.b16 %v151
  %v475 = vunpack.c.l.b16 %v152
  %v476 = vunpack.c.h.b16 %v152
  %v477 = vpack.c.b16 %v409, %v405
  %v478 = vpack.c.b16 %v410, %v406
  %v479 = vpack.c.b16 %v411, %v407
  %v480 = vpack.c.b16 %v412, %v408
  %v481 = vpack.c.b16 %v417, %v413
  %v482 = vpack.c.b16 %v418, %v414
  %v483 = vpack.c.b16 %v419, %v415
  %v484 = vpack.c.b16 %v420, %v416
  %v485 = vpack.c.b16 %v425, %v421
  %v486 = vpack.c.b16 %v426, %v422
  %v487 = vpack.c.b16 %v427, %v423
  %v488 = vpack.c.b16 %v428, %v424
  %v489 = vpack.c.b16 %v433, %v429
  %v490 = vpack.c.b16 %v434, %v430
  %v491 = vpack.c.b16 %v435, %v431
  %v492 = vpack.c.b16 %v436, %v432
  %v493 = vpack.c.b16 %v441, %v437
  %v494 = vpack.c.b16 %v442, %v438
  %v495 = vpack.c.b16 %v443, %v439
  %v496 = vpack.c.b16 %v444, %v440
  %v497 = vpack.c.b16 %v449, %v445
  %v498 = vpack.c.b16 %v450, %v446
  %v499 = vpack.c.b16 %v451, %v447
  %v500 = vpack.c.b16 %v452, %v448
  %v501 = vpack.c.b16 %v457, %v453
  %v502 = vpack.c.b16 %v458, %v454
  %v503 = vpack.c.b16 %v459, %v455
  %v504 = vpack.c.b16 %v460, %v456
  %v505 = vpack.c.b16 %v465, %v461
  %v506 = vpack.c.b16 %v466, %v462
  %v507 = vpack.c.b16 %v467, %v463
  %v508 = vpack.c.b16 %v468, %v464
  %v509 = vpack.c.b16 %v473, %v469
  %v510 = vpack.c.b16 %v474, %v470
  %v511 = vpack.c.b16 %v475, %v471
  %v512 = vpack.c.b16 %v476, %v472
  %vm549 = vcmask 130048
  %v551 = vsel %vm549, %v298, 0
  %v554 = vsel %vm549, %v300, 0
  %v557 = vsel %vm549, %v302, 0
  %v560 = vsel %vm549, %v304, 0
  %v563 = vsel %vm549, %v306, 0
  %v566 = vsel %vm549, %v308, 0
  %v569 = vsel %vm549, %v310, 0
  %v572 = vsel %vm549, %v312, 0
  %v575 = vsel %vm549, %v314, 0
  %v578 = vsel %vm549, %v316, 0
  %v581 = vsel %vm549, %v318, 0
  %v584 = vsel %vm549, %v320, 0
  %v587 = vsel %vm549, %v322, 0
  %v590 = vsel %vm549, %v324, 0
  %v593 = vsel %vm549, %v326, 0
  %v596 = vsel %vm549, %v328, 0
  %v599 = vsel %vm549, %v330, 0
  %v602 = vsel %vm549, %v332, 0
  %v605 = vsel %vm549, %v334, 0
  %v608 = vsel %vm549, %v336, 0
  %v611 = vsel %vm549, %v338, 0
  %v614 = vsel %vm549, %v340, 0
  %v617 = vsel %vm549, %v342, 0
  %v620 = vsel %vm549, %v344, 0
  %622 = vmatprep.subr.bf16.mxu0 %v478
  %623 = vmatpush1.bf16.msra.mxu0 %v477
  %624 = vmatprep.subr.bf16.mxu0 %v482
  %625 = vmatpush1.bf16.msra.mxu0 %v481
  %626 = vmatprep.subr.bf16.mxu0 %v486
  %627 = vmatpush1.bf16.msra.mxu0 %v485
  %628 = vmatprep.subr.bf16.mxu0 %v490
  %629 = vmatpush1.bf16.msra.mxu0 %v489
  %630 = vmatprep.subr.bf16.mxu0 %v494
  %631 = vmatpush1.bf16.msra.mxu0 %v493
  %632 = vmatprep.subr.bf16.mxu0 %v498
  %633 = vmatpush1.bf16.msra.mxu0 %v497
  %634 = vmatprep.subr.bf16.mxu0 %v502
  %635 = vmatpush1.bf16.msra.mxu0 %v501
  %636 = vmatprep.subr.bf16.mxu0 %v506
  %637 = vmatpush1.bf16.msra.mxu0 %v505
  %638 = vmatprep.subr.bf16.mxu0 %v510
  %639 = vmatpush1.bf16.msra.mxu0 %v509
  %640 = vmatprep.subr.bf16.mxu0 0
  %641 = vmatpush1.bf16.msra.mxu0 0
  %642 = vmatprep.subr.bf16.mxu0 0
  %643 = vmatpush1.bf16.msra.mxu0 0
  %644 = vmatprep.subr.bf16.mxu0 0
  %645 = vmatpush1.bf16.msra.mxu0 0
  %646 = vmatprep.subr.bf16.mxu0 0
  %647 = vmatpush1.bf16.msra.mxu0 0
  %648 = vmatprep.subr.bf16.mxu0 0
  %649 = vmatpush1.bf16.msra.mxu0 0
  %650 = vmatprep.subr.bf16.mxu0 0
  %651 = vmatpush1.bf16.msra.mxu0 0
  %652 = vmatprep.subr.bf16.mxu0 0
  %653 = vmatpush1.bf16.msra.mxu0 0
  %654 = vmatprep.mubr.bf16.mxu0 %v551
  %655 = vmatmul.mubr.bf16.gmra.mrb[0].mxu0 %v297
  %v656 = vpop.f32.mrb[0].mxu0
  %v657 = vadd.f32 0.0, %v656
  %v658 = vpop.f32.mrb[0].mxu0
  %v659 = vadd.f32 0.0, %v658
  %v660 = vpop.f32.mrb[0].mxu0
  %v661 = vadd.f32 0.0, %v660
  %v662 = vpop.f32.mrb[0].mxu0
  %v663 = vadd.f32 0.0, %v662
  %664 = vmatprep.mubr.bf16.mxu0 %v554
  %665 = vmatmul.mubr.bf16.gmra.mrb[0].mxu0 %v299
  %v666 = vpop.f32.mrb[0].mxu0
  %v667 = vadd.f32 0.0, %v666
  %v668 = vpop.f32.mrb[0].mxu0
  %v669 = vadd.f32 0.0, %v668
  %v670 = vpop.f32.mrb[0].mxu0
  %v671 = vadd.f32 0.0, %v670
  %v672 = vpop.f32.mrb[0].mxu0
  %v673 = vadd.f32 0.0, %v672
  %674 = vmatprep.mubr.bf16.mxu0 %v557
  %675 = vmatmul.mubr.bf16.gmra.mrb[0].mxu0 %v301
  %v676 = vpop.f32.mrb[0].mxu0
  %v677 = vadd.f32 0.0, %v676
  %v678 = vpop.f32.mrb[0].mxu0
  %v679 = vadd.f32 0.0, %v678
  %v680 = vpop.f32.mrb[0].mxu0
  %v681 = vadd.f32 0.0, %v680
  %v682 = vpop.f32.mrb[0].mxu0
  %v683 = vadd.f32 0.0, %v682
  %684 = vmatprep.mubr.bf16.mxu0 %v560
  %685 = vmatmul.mubr.bf16.gmra.mrb[0].mxu0 %v303
  %v686 = vpop.f32.mrb[0].mxu0
  %v687 = vadd.f32 0.0, %v686
  %v688 = vpop.f32.mrb[0].mxu0
  %v689 = vadd.f32 0.0, %v688
  %v690 = vpop.f32.mrb[0].mxu0
  %v691 = vadd.f32 0.0, %v690
  %v692 = vpop.f32.mrb[0].mxu0
  %v693 = vadd.f32 0.0, %v692
  %694 = vmatprep.mubr.bf16.mxu0 %v563
  %695 = vmatmul.mubr.bf16.gmra.mrb[0].mxu0 %v305
  %v696 = vpop.f32.mrb[0].mxu0
  %v697 = vadd.f32 0.0, %v696
  %v698 = vpop.f32.mrb[0].mxu0
  %v699 = vadd.f32 0.0, %v698
  %v700 = vpop.f32.mrb[0].mxu0
  %v701 = vadd.f32 0.0, %v700
  %v702 = vpop.f32.mrb[0].mxu0
  %v703 = vadd.f32 0.0, %v702
  %704 = vmatprep.mubr.bf16.mxu0 %v566
  %705 = vmatmul.mubr.bf16.gmra.mrb[0].mxu0 %v307
  %v706 = vpop.f32.mrb[0].mxu0
  %v707 = vadd.f32 0.0, %v706
  %v708 = vpop.f32.mrb[0].mxu0
  %v709 = vadd.f32 0.0, %v708
  %v710 = vpop.f32.mrb[0].mxu0
  %v711 = vadd.f32 0.0, %v710
  %v712 = vpop.f32.mrb[0].mxu0
  %v713 = vadd.f32 0.0, %v712
  %714 = vmatprep.mubr.bf16.mxu0 %v569
  %715 = vmatmul.mubr.bf16.gmra.mrb[0].mxu0 %v309
  %v716 = vpop.f32.mrb[0].mxu0
  %v717 = vadd.f32 0.0, %v716
  %v718 = vpop.f32.mrb[0].mxu0
  %v719 = vadd.f32 0.0, %v718
  %v720 = vpop.f32.mrb[0].mxu0
  %v721 = vadd.f32 0.0, %v720
  %v722 = vpop.f32.mrb[0].mxu0
  %v723 = vadd.f32 0.0, %v722
  %724 = vmatprep.mubr.bf16.mxu0 %v572
  %725 = vmatmul.mubr.bf16.gmra.mrb[0].mxu0 %v311
  %v726 = vpop.f32.mrb[0].mxu0
  %v727 = vadd.f32 0.0, %v726
  %v728 = vpop.f32.mrb[0].mxu0
  %v729 = vadd.f32 0.0, %v728
  %v730 = vpop.f32.mrb[0].mxu0
  %v731 = vadd.f32 0.0, %v730
  %v732 = vpop.f32.mrb[0].mxu0
  %v733 = vadd.f32 0.0, %v732
  %734 = vmatprep.mubr.bf16.mxu0 %v575
  %735 = vmatmul.mubr.bf16.gmra.mrb[0].mxu0 %v313
  %v736 = vpop.f32.mrb[0].mxu0
  %v737 = vadd.f32 0.0, %v736
  %v738 = vpop.f32.mrb[0].mxu0
  %v739 = vadd.f32 0.0, %v738
  %v740 = vpop.f32.mrb[0].mxu0
  %v741 = vadd.f32 0.0, %v740
  %v742 = vpop.f32.mrb[0].mxu0
  %v743 = vadd.f32 0.0, %v742
  %744 = vmatprep.mubr.bf16.mxu0 %v578
  %745 = vmatmul.mubr.bf16.gmra.mrb[0].mxu0 %v315
  %v746 = vpop.f32.mrb[0].mxu0
  %v747 = vadd.f32 0.0, %v746
  %v748 = vpop.f32.mrb[0].mxu0
  %v749 = vadd.f32 0.0, %v748
  %v750 = vpop.f32.mrb[0].mxu0
  %v751 = vadd.f32 0.0, %v750
  %v752 = vpop.f32.mrb[0].mxu0
  %v753 = vadd.f32 0.0, %v752
  %754 = vmatprep.mubr.bf16.mxu0 %v581
  %755 = vmatmul.mubr.bf16.gmra.mrb[0].mxu0 %v317
  %v756 = vpop.f32.mrb[0].mxu0
  %v757 = vadd.f32 0.0, %v756
  %v758 = vpop.f32.mrb[0].mxu0
  %v759 = vadd.f32 0.0, %v758
  %v760 = vpop.f32.mrb[0].mxu0
  %v761 = vadd.f32 0.0, %v760
  %v762 = vpop.f32.mrb[0].mxu0
  %v763 = vadd.f32 0.0, %v762
  %764 = vmatprep.mubr.bf16.mxu0 %v584
  %765 = vmatmul.mubr.bf16.gmra.mrb[0].mxu0 %v319
  %v766 = vpop.f32.mrb[0].mxu0
  %v767 = vadd.f32 0.0, %v766
  %v768 = vpop.f32.mrb[0].mxu0
  %v769 = vadd.f32 0.0, %v768
  %v770 = vpop.f32.mrb[0].mxu0
  %v771 = vadd.f32 0.0, %v770
  %v772 = vpop.f32.mrb[0].mxu0
  %v773 = vadd.f32 0.0, %v772
  %774 = vmatprep.mubr.bf16.mxu0 %v587
  %775 = vmatmul.mubr.bf16.gmra.mrb[0].mxu0 %v321
  %v776 = vpop.f32.mrb[0].mxu0
  %v777 = vadd.f32 0.0, %v776
  %v778 = vpop.f32.mrb[0].mxu0
  %v779 = vadd.f32 0.0, %v778
  %v780 = vpop.f32.mrb[0].mxu0
  %v781 = vadd.f32 0.0, %v780
  %v782 = vpop.f32.mrb[0].mxu0
  %v783 = vadd.f32 0.0, %v782
  %784 = vmatprep.mubr.bf16.mxu0 %v590
  %785 = vmatmul.mubr.bf16.gmra.mrb[0].mxu0 %v323
  %v786 = vpop.f32.mrb[0].mxu0
  %v787 = vadd.f32 0.0, %v786
  %v788 = vpop.f32.mrb[0].mxu0
  %v789 = vadd.f32 0.0, %v788
  %v790 = vpop.f32.mrb[0].mxu0
  %v791 = vadd.f32 0.0, %v790
  %v792 = vpop.f32.mrb[0].mxu0
  %v793 = vadd.f32 0.0, %v792
  %794 = vmatprep.mubr.bf16.mxu0 %v593
  %795 = vmatmul.mubr.bf16.gmra.mrb[0].mxu0 %v325
  %v796 = vpop.f32.mrb[0].mxu0
  %v797 = vadd.f32 0.0, %v796
  %v798 = vpop.f32.mrb[0].mxu0
  %v799 = vadd.f32 0.0, %v798
  %v800 = vpop.f32.mrb[0].mxu0
  %v801 = vadd.f32 0.0, %v800
  %v802 = vpop.f32.mrb[0].mxu0
  %v803 = vadd.f32 0.0, %v802
  %804 = vmatprep.mubr.bf16.mxu0 %v596
  %805 = vmatmul.mubr.bf16.gmra.mrb[0].mxu0 %v327
  %v806 = vpop.f32.mrb[0].mxu0
  %v807 = vadd.f32 0.0, %v806
  %v808 = vpop.f32.mrb[0].mxu0
  %v809 = vadd.f32 0.0, %v808
  %v810 = vpop.f32.mrb[0].mxu0
  %v811 = vadd.f32 0.0, %v810
  %v812 = vpop.f32.mrb[0].mxu0
  %v813 = vadd.f32 0.0, %v812
  %814 = vmatprep.mubr.bf16.mxu0 %v599
  %815 = vmatmul.mubr.bf16.gmra.mrb[0].mxu0 %v329
  %v816 = vpop.f32.mrb[0].mxu0
  %v817 = vadd.f32 0.0, %v816
  %v818 = vpop.f32.mrb[0].mxu0
  %v819 = vadd.f32 0.0, %v818
  %v820 = vpop.f32.mrb[0].mxu0
  %v821 = vadd.f32 0.0, %v820
  %v822 = vpop.f32.mrb[0].mxu0
  %v823 = vadd.f32 0.0, %v822
  %824 = vmatprep.mubr.bf16.mxu0 %v602
  %825 = vmatmul.mubr.bf16.gmra.mrb[0].mxu0 %v331
  %v826 = vpop.f32.mrb[0].mxu0
  %v827 = vadd.f32 0.0, %v826
  %v828 = vpop.f32.mrb[0].mxu0
  %v829 = vadd.f32 0.0, %v828
  %v830 = vpop.f32.mrb[0].mxu0
  %v831 = vadd.f32 0.0, %v830
  %v832 = vpop.f32.mrb[0].mxu0
  %v833 = vadd.f32 0.0, %v832
  %834 = vmatprep.mubr.bf16.mxu0 %v605
  %835 = vmatmul.mubr.bf16.gmra.mrb[0].mxu0 %v333
  %v836 = vpop.f32.mrb[0].mxu0
  %v837 = vadd.f32 0.0, %v836
  %v838 = vpop.f32.mrb[0].mxu0
  %v839 = vadd.f32 0.0, %v838
  %v840 = vpop.f32.mrb[0].mxu0
  %v841 = vadd.f32 0.0, %v840
  %v842 = vpop.f32.mrb[0].mxu0
  %v843 = vadd.f32 0.0, %v842
  %844 = vmatprep.mubr.bf16.mxu0 %v608
  %845 = vmatmul.mubr.bf16.gmra.mrb[0].mxu0 %v335
  %v846 = vpop.f32.mrb[0].mxu0
  %v847 = vadd.f32 0.0, %v846
  %v848 = vpop.f32.mrb[0].mxu0
  %v849 = vadd.f32 0.0, %v848
  %v850 = vpop.f32.mrb[0].mxu0
  %v851 = vadd.f32 0.0, %v850
  %v852 = vpop.f32.mrb[0].mxu0
  %v853 = vadd.f32 0.0, %v852
  %854 = vmatprep.mubr.bf16.mxu0 %v611
  %855 = vmatmul.mubr.bf16.gmra.mrb[0].mxu0 %v337
  %v856 = vpop.f32.mrb[0].mxu0
  %v857 = vadd.f32 0.0, %v856
  %v858 = vpop.f32.mrb[0].mxu0
  %v859 = vadd.f32 0.0, %v858
  %v860 = vpop.f32.mrb[0].mxu0
  %v861 = vadd.f32 0.0, %v860
  %v862 = vpop.f32.mrb[0].mxu0
  %v863 = vadd.f32 0.0, %v862
  %864 = vmatprep.mubr.bf16.mxu0 %v614
  %865 = vmatmul.mubr.bf16.gmra.mrb[0].mxu0 %v339
  %v866 = vpop.f32.mrb[0].mxu0
  %v867 = vadd.f32 0.0, %v866
  %v868 = vpop.f32.mrb[0].mxu0
  %v869 = vadd.f32 0.0, %v868
  %v870 = vpop.f32.mrb[0].mxu0
  %v871 = vadd.f32 0.0, %v870
  %v872 = vpop.f32.mrb[0].mxu0
  %v873 = vadd.f32 0.0, %v872
  %874 = vmatprep.mubr.bf16.mxu0 %v617
  %875 = vmatmul.mubr.bf16.gmra.mrb[0].mxu0 %v341
  %v876 = vpop.f32.mrb[0].mxu0
  %v877 = vadd.f32 0.0, %v876
  %v878 = vpop.f32.mrb[0].mxu0
  %v879 = vadd.f32 0.0, %v878
  %v880 = vpop.f32.mrb[0].mxu0
  %v881 = vadd.f32 0.0, %v880
  %v882 = vpop.f32.mrb[0].mxu0
  %v883 = vadd.f32 0.0, %v882
  %884 = vmatprep.mubr.bf16.mxu0 %v620
  %885 = vmatmul.mubr.bf16.gmra.mrb[0].mxu0 %v343
  %v886 = vpop.f32.mrb[0].mxu0
  %v887 = vadd.f32 0.0, %v886
  %v888 = vpop.f32.mrb[0].mxu0
  %v889 = vadd.f32 0.0, %v888
  %v890 = vpop.f32.mrb[0].mxu0
  %v891 = vadd.f32 0.0, %v890
  %v892 = vpop.f32.mrb[0].mxu0
  %v893 = vadd.f32 0.0, %v892
  %894 = vdwg.mxu0
  %895 = vmatprep.subr.bf16.mxu0 %v480
  %896 = vmatpush1.bf16.msra.mxu0 %v479
  %897 = vmatprep.subr.bf16.mxu0 %v484
  %898 = vmatpush1.bf16.msra.mxu0 %v483
  %899 = vmatprep.subr.bf16.mxu0 %v488
  %900 = vmatpush1.bf16.msra.mxu0 %v487
  %901 = vmatprep.subr.bf16.mxu0 %v492
  %902 = vmatpush1.bf16.msra.mxu0 %v491
  %903 = vmatprep.subr.bf16.mxu0 %v496
  %904 = vmatpush1.bf16.msra.mxu0 %v495
  %905 = vmatprep.subr.bf16.mxu0 %v500
  %906 = vmatpush1.bf16.msra.mxu0 %v499
  %907 = vmatprep.subr.bf16.mxu0 %v504
  %908 = vmatpush1.bf16.msra.mxu0 %v503
  %909 = vmatprep.subr.bf16.mxu0 %v508
  %910 = vmatpush1.bf16.msra.mxu0 %v507
  %911 = vmatprep.subr.bf16.mxu0 %v512
  %912 = vmatpush1.bf16.msra.mxu0 %v511
  %913 = vmatprep.subr.bf16.mxu0 0
  %914 = vmatpush1.bf16.msra.mxu0 0
  %915 = vmatprep.subr.bf16.mxu0 0
  %916 = vmatpush1.bf16.msra.mxu0 0
  %917 = vmatprep.subr.bf16.mxu0 0
  %918 = vmatpush1.bf16.msra.mxu0 0
  %919 = vmatprep.subr.bf16.mxu0 0
  %920 = vmatpush1.bf16.msra.mxu0 0
  %921 = vmatprep.subr.bf16.mxu0 0
  %922 = vmatpush1.bf16.msra.mxu0 0
  %923 = vmatprep.subr.bf16.mxu0 0
  %924 = vmatpush1.bf16.msra.mxu0 0
  %925 = vmatprep.subr.bf16.mxu0 0
  %926 = vmatpush1.bf16.msra.mxu0 0
  %927 = vmatprep.mubr.bf16.mxu0 %v551
  %928 = vmatmul.mubr.bf16.gmra.mrb[0].mxu0 %v297
  %v929 = vpop.f32.mrb[0].mxu0
  %v930 = vadd.f32 0.0, %v929
  %v931 = vpop.f32.mrb[0].mxu0
  %v932 = vadd.f32 0.0, %v931
  %v933 = vpop.f32.mrb[0].mxu0
  %v934 = vadd.f32 0.0, %v933
  %v935 = vpop.f32.mrb[0].mxu0
  %v936 = vadd.f32 0.0, %v935
  %937 = vmatprep.mubr.bf16.mxu0 %v554
  %938 = vmatmul.mubr.bf16.gmra.mrb[0].mxu0 %v299
  %v939 = vpop.f32.mrb[0].mxu0
  %v940 = vadd.f32 0.0, %v939
  %v941 = vpop.f32.mrb[0].mxu0
  %v942 = vadd.f32 0.0, %v941
  %v943 = vpop.f32.mrb[0].mxu0
  %v944 = vadd.f32 0.0, %v943
  %v945 = vpop.f32.mrb[0].mxu0
  %v946 = vadd.f32 0.0, %v945
  %947 = vmatprep.mubr.bf16.mxu0 %v557
  %948 = vmatmul.mubr.bf16.gmra.mrb[0].mxu0 %v301
  %v949 = vpop.f32.mrb[0].mxu0
  %v950 = vadd.f32 0.0, %v949
  %v951 = vpop.f32.mrb[0].mxu0
  %v952 = vadd.f32 0.0, %v951
  %v953 = vpop.f32.mrb[0].mxu0
  %v954 = vadd.f32 0.0, %v953
  %v955 = vpop.f32.mrb[0].mxu0
  %v956 = vadd.f32 0.0, %v955
  %957 = vmatprep.mubr.bf16.mxu0 %v560
  %958 = vmatmul.mubr.bf16.gmra.mrb[0].mxu0 %v303
  %v959 = vpop.f32.mrb[0].mxu0
  %v960 = vadd.f32 0.0, %v959
  %v961 = vpop.f32.mrb[0].mxu0
  %v962 = vadd.f32 0.0, %v961
  %v963 = vpop.f32.mrb[0].mxu0
  %v964 = vadd.f32 0.0, %v963
  %v965 = vpop.f32.mrb[0].mxu0
  %v966 = vadd.f32 0.0, %v965
  %967 = vmatprep.mubr.bf16.mxu0 %v563
  %968 = vmatmul.mubr.bf16.gmra.mrb[0].mxu0 %v305
  %v969 = vpop.f32.mrb[0].mxu0
  %v970 = vadd.f32 0.0, %v969
  %v971 = vpop.f32.mrb[0].mxu0
  %v972 = vadd.f32 0.0, %v971
  %v973 = vpop.f32.mrb[0].mxu0
  %v974 = vadd.f32 0.0, %v973
  %v975 = vpop.f32.mrb[0].mxu0
  %v976 = vadd.f32 0.0, %v975
  %977 = vmatprep.mubr.bf16.mxu0 %v566
  %978 = vmatmul.mubr.bf16.gmra.mrb[0].mxu0 %v307
  %v979 = vpop.f32.mrb[0].mxu0
  %v980 = vadd.f32 0.0, %v979
  %v981 = vpop.f32.mrb[0].mxu0
  %v982 = vadd.f32 0.0, %v981
  %v983 = vpop.f32.mrb[0].mxu0
  %v984 = vadd.f32 0.0, %v983
  %v985 = vpop.f32.mrb[0].mxu0
  %v986 = vadd.f32 0.0, %v985
  %987 = vmatprep.mubr.bf16.mxu0 %v569
  %988 = vmatmul.mubr.bf16.gmra.mrb[0].mxu0 %v309
  %v989 = vpop.f32.mrb[0].mxu0
  %v990 = vadd.f32 0.0, %v989
  %v991 = vpop.f32.mrb[0].mxu0
  %v992 = vadd.f32 0.0, %v991
  %v993 = vpop.f32.mrb[0].mxu0
  %v994 = vadd.f32 0.0, %v993
  %v995 = vpop.f32.mrb[0].mxu0
  %v996 = vadd.f32 0.0, %v995
  %997 = vmatprep.mubr.bf16.mxu0 %v572
  %998 = vmatmul.mubr.bf16.gmra.mrb[0].mxu0 %v311
  %v999 = vpop.f32.mrb[0].mxu0
  %v1000 = vadd.f32 0.0, %v999
  %v1001 = vpop.f32.mrb[0].mxu0
  %v1002 = vadd.f32 0.0, %v1001
  %v1003 = vpop.f32.mrb[0].mxu0
  %v1004 = vadd.f32 0.0, %v1003
  %v1005 = vpop.f32.mrb[0].mxu0
  %v1006 = vadd.f32 0.0, %v1005
  %1007 = vmatprep.mubr.bf16.mxu0 %v575
  %1008 = vmatmul.mubr.bf16.gmra.mrb[0].mxu0 %v313
  %v1009 = vpop.f32.mrb[0].mxu0
  %v1010 = vadd.f32 0.0, %v1009
  %v1011 = vpop.f32.mrb[0].mxu0
  %v1012 = vadd.f32 0.0, %v1011
  %v1013 = vpop.f32.mrb[0].mxu0
  %v1014 = vadd.f32 0.0, %v1013
  %v1015 = vpop.f32.mrb[0].mxu0
  %v1016 = vadd.f32 0.0, %v1015
  %1017 = vmatprep.mubr.bf16.mxu0 %v578
  %1018 = vmatmul.mubr.bf16.gmra.mrb[0].mxu0 %v315
  %v1019 = vpop.f32.mrb[0].mxu0
  %v1020 = vadd.f32 0.0, %v1019
  %v1021 = vpop.f32.mrb[0].mxu0
  %v1022 = vadd.f32 0.0, %v1021
  %v1023 = vpop.f32.mrb[0].mxu0
  %v1024 = vadd.f32 0.0, %v1023
  %v1025 = vpop.f32.mrb[0].mxu0
  %v1026 = vadd.f32 0.0, %v1025
  %1027 = vmatprep.mubr.bf16.mxu0 %v581
  %1028 = vmatmul.mubr.bf16.gmra.mrb[0].mxu0 %v317
  %v1029 = vpop.f32.mrb[0].mxu0
  %v1030 = vadd.f32 0.0, %v1029
  %v1031 = vpop.f32.mrb[0].mxu0
  %v1032 = vadd.f32 0.0, %v1031
  %v1033 = vpop.f32.mrb[0].mxu0
  %v1034 = vadd.f32 0.0, %v1033
  %v1035 = vpop.f32.mrb[0].mxu0
  %v1036 = vadd.f32 0.0, %v1035
  %1037 = vmatprep.mubr.bf16.mxu0 %v584
  %1038 = vmatmul.mubr.bf16.gmra.mrb[0].mxu0 %v319
  %v1039 = vpop.f32.mrb[0].mxu0
  %v1040 = vadd.f32 0.0, %v1039
  %v1041 = vpop.f32.mrb[0].mxu0
  %v1042 = vadd.f32 0.0, %v1041
  %v1043 = vpop.f32.mrb[0].mxu0
  %v1044 = vadd.f32 0.0, %v1043
  %v1045 = vpop.f32.mrb[0].mxu0
  %v1046 = vadd.f32 0.0, %v1045
  %1047 = vmatprep.mubr.bf16.mxu0 %v587
  %1048 = vmatmul.mubr.bf16.gmra.mrb[0].mxu0 %v321
  %v1049 = vpop.f32.mrb[0].mxu0
  %v1050 = vadd.f32 0.0, %v1049
  %v1051 = vpop.f32.mrb[0].mxu0
  %v1052 = vadd.f32 0.0, %v1051
  %v1053 = vpop.f32.mrb[0].mxu0
  %v1054 = vadd.f32 0.0, %v1053
  %v1055 = vpop.f32.mrb[0].mxu0
  %v1056 = vadd.f32 0.0, %v1055
  %1057 = vmatprep.mubr.bf16.mxu0 %v590
  %1058 = vmatmul.mubr.bf16.gmra.mrb[0].mxu0 %v323
  %v1059 = vpop.f32.mrb[0].mxu0
  %v1060 = vadd.f32 0.0, %v1059
  %v1061 = vpop.f32.mrb[0].mxu0
  %v1062 = vadd.f32 0.0, %v1061
  %v1063 = vpop.f32.mrb[0].mxu0
  %v1064 = vadd.f32 0.0, %v1063
  %v1065 = vpop.f32.mrb[0].mxu0
  %v1066 = vadd.f32 0.0, %v1065
  %1067 = vmatprep.mubr.bf16.mxu0 %v593
  %1068 = vmatmul.mubr.bf16.gmra.mrb[0].mxu0 %v325
  %v1069 = vpop.f32.mrb[0].mxu0
  %v1070 = vadd.f32 0.0, %v1069
  %v1071 = vpop.f32.mrb[0].mxu0
  %v1072 = vadd.f32 0.0, %v1071
  %v1073 = vpop.f32.mrb[0].mxu0
  %v1074 = vadd.f32 0.0, %v1073
  %v1075 = vpop.f32.mrb[0].mxu0
  %v1076 = vadd.f32 0.0, %v1075
  %1077 = vmatprep.mubr.bf16.mxu0 %v596
  %1078 = vmatmul.mubr.bf16.gmra.mrb[0].mxu0 %v327
  %v1079 = vpop.f32.mrb[0].mxu0
  %v1080 = vadd.f32 0.0, %v1079
  %v1081 = vpop.f32.mrb[0].mxu0
  %v1082 = vadd.f32 0.0, %v1081
  %v1083 = vpop.f32.mrb[0].mxu0
  %v1084 = vadd.f32 0.0, %v1083
  %v1085 = vpop.f32.mrb[0].mxu0
  %v1086 = vadd.f32 0.0, %v1085
  %1087 = vmatprep.mubr.bf16.mxu0 %v599
  %1088 = vmatmul.mubr.bf16.gmra.mrb[0].mxu0 %v329
  %v1089 = vpop.f32.mrb[0].mxu0
  %v1090 = vadd.f32 0.0, %v1089
  %v1091 = vpop.f32.mrb[0].mxu0
  %v1092 = vadd.f32 0.0, %v1091
  %v1093 = vpop.f32.mrb[0].mxu0
  %v1094 = vadd.f32 0.0, %v1093
  %v1095 = vpop.f32.mrb[0].mxu0
  %v1096 = vadd.f32 0.0, %v1095
  %1097 = vmatprep.mubr.bf16.mxu0 %v602
  %1098 = vmatmul.mubr.bf16.gmra.mrb[0].mxu0 %v331
  %v1099 = vpop.f32.mrb[0].mxu0
  %v1100 = vadd.f32 0.0, %v1099
  %v1101 = vpop.f32.mrb[0].mxu0
  %v1102 = vadd.f32 0.0, %v1101
  %v1103 = vpop.f32.mrb[0].mxu0
  %v1104 = vadd.f32 0.0, %v1103
  %v1105 = vpop.f32.mrb[0].mxu0
  %v1106 = vadd.f32 0.0, %v1105
  %1107 = vmatprep.mubr.bf16.mxu0 %v605
  %1108 = vmatmul.mubr.bf16.gmra.mrb[0].mxu0 %v333
  %v1109 = vpop.f32.mrb[0].mxu0
  %v1110 = vadd.f32 0.0, %v1109
  %v1111 = vpop.f32.mrb[0].mxu0
  %v1112 = vadd.f32 0.0, %v1111
  %v1113 = vpop.f32.mrb[0].mxu0
  %v1114 = vadd.f32 0.0, %v1113
  %v1115 = vpop.f32.mrb[0].mxu0
  %v1116 = vadd.f32 0.0, %v1115
  %1117 = vmatprep.mubr.bf16.mxu0 %v608
  %1118 = vmatmul.mubr.bf16.gmra.mrb[0].mxu0 %v335
  %v1119 = vpop.f32.mrb[0].mxu0
  %v1120 = vadd.f32 0.0, %v1119
  %v1121 = vpop.f32.mrb[0].mxu0
  %v1122 = vadd.f32 0.0, %v1121
  %v1123 = vpop.f32.mrb[0].mxu0
  %v1124 = vadd.f32 0.0, %v1123
  %v1125 = vpop.f32.mrb[0].mxu0
  %v1126 = vadd.f32 0.0, %v1125
  %1127 = vmatprep.mubr.bf16.mxu0 %v611
  %1128 = vmatmul.mubr.bf16.gmra.mrb[0].mxu0 %v337
  %v1129 = vpop.f32.mrb[0].mxu0
  %v1130 = vadd.f32 0.0, %v1129
  %v1131 = vpop.f32.mrb[0].mxu0
  %v1132 = vadd.f32 0.0, %v1131
  %v1133 = vpop.f32.mrb[0].mxu0
  %v1134 = vadd.f32 0.0, %v1133
  %v1135 = vpop.f32.mrb[0].mxu0
  %v1136 = vadd.f32 0.0, %v1135
  %1137 = vmatprep.mubr.bf16.mxu0 %v614
  %1138 = vmatmul.mubr.bf16.gmra.mrb[0].mxu0 %v339
  %v1139 = vpop.f32.mrb[0].mxu0
  %v1140 = vadd.f32 0.0, %v1139
  %v1141 = vpop.f32.mrb[0].mxu0
  %v1142 = vadd.f32 0.0, %v1141
  %v1143 = vpop.f32.mrb[0].mxu0
  %v1144 = vadd.f32 0.0, %v1143
  %v1145 = vpop.f32.mrb[0].mxu0
  %v1146 = vadd.f32 0.0, %v1145
  %1147 = vmatprep.mubr.bf16.mxu0 %v617
  %1148 = vmatmul.mubr.bf16.gmra.mrb[0].mxu0 %v341
  %v1149 = vpop.f32.mrb[0].mxu0
  %v1150 = vadd.f32 0.0, %v1149
  %v1151 = vpop.f32.mrb[0].mxu0
  %v1152 = vadd.f32 0.0, %v1151
  %v1153 = vpop.f32.mrb[0].mxu0
  %v1154 = vadd.f32 0.0, %v1153
  %v1155 = vpop.f32.mrb[0].mxu0
  %v1156 = vadd.f32 0.0, %v1155
  %1157 = vmatprep.mubr.bf16.mxu0 %v620
  %1158 = vmatmul.mubr.bf16.gmra.mrb[0].mxu0 %v343
  %v1159 = vpop.f32.mrb[0].mxu0
  %v1160 = vadd.f32 0.0, %v1159
  %v1161 = vpop.f32.mrb[0].mxu0
  %v1162 = vadd.f32 0.0, %v1161
  %v1163 = vpop.f32.mrb[0].mxu0
  %v1164 = vadd.f32 0.0, %v1163
  %v1165 = vpop.f32.mrb[0].mxu0
  %v1166 = vadd.f32 0.0, %v1165
  %1167 = vdwg.mxu0
  %v1216 = vunpack.c.l.b16 %v69
  %v1217 = vunpack.c.h.b16 %v69
  %v1218 = vunpack.c.l.b16 %v70
  %v1219 = vunpack.c.h.b16 %v70
  %v1220 = vunpack.c.l.b16 %v71
  %v1221 = vunpack.c.h.b16 %v71
  %v1222 = vunpack.c.l.b16 %v72
  %v1223 = vunpack.c.h.b16 %v72
  %v1224 = vunpack.c.l.b16 %v73
  %v1225 = vunpack.c.h.b16 %v73
  %v1226 = vunpack.c.l.b16 %v74
  %v1227 = vunpack.c.h.b16 %v74
  %v1228 = vunpack.c.l.b16 %v75
  %v1229 = vunpack.c.h.b16 %v75
  %v1230 = vunpack.c.l.b16 %v76
  %v1231 = vunpack.c.h.b16 %v76
  %v1232 = vunpack.c.l.b16 %v77
  %v1233 = vunpack.c.h.b16 %v77
  %v1234 = vunpack.c.l.b16 %v78
  %v1235 = vunpack.c.h.b16 %v78
  %v1236 = vunpack.c.l.b16 %v79
  %v1237 = vunpack.c.h.b16 %v79
  %v1238 = vunpack.c.l.b16 %v80
  %v1239 = vunpack.c.h.b16 %v80
  %v1240 = vunpack.c.l.b16 %v81
  %v1241 = vunpack.c.h.b16 %v81
  %v1242 = vunpack.c.l.b16 %v82
  %v1243 = vunpack.c.h.b16 %v82
  %v1244 = vunpack.c.l.b16 %v83
  %v1245 = vunpack.c.h.b16 %v83
  %v1246 = vunpack.c.l.b16 %v84
  %v1247 = vunpack.c.h.b16 %v84
  %v1248 = vunpack.c.l.b16 %v85
  %v1249 = vunpack.c.h.b16 %v85
  %v1250 = vunpack.c.l.b16 %v86
  %v1251 = vunpack.c.h.b16 %v86
  %v1252 = vunpack.c.l.b16 %v87
  %v1253 = vunpack.c.h.b16 %v87
  %v1254 = vunpack.c.l.b16 %v88
  %v1255 = vunpack.c.h.b16 %v88
  %v1256 = vunpack.c.l.b16 %v89
  %v1257 = vunpack.c.h.b16 %v89
  %v1258 = vunpack.c.l.b16 %v90
  %v1259 = vunpack.c.h.b16 %v90
  %v1260 = vunpack.c.l.b16 %v91
  %v1261 = vunpack.c.h.b16 %v91
  %v1262 = vunpack.c.l.b16 %v92
  %v1263 = vunpack.c.h.b16 %v92
  %v1264 = vunpack.c.l.b16 %v93
  %v1265 = vunpack.c.h.b16 %v93
  %v1266 = vunpack.c.l.b16 %v94
  %v1267 = vunpack.c.h.b16 %v94
  %v1268 = vunpack.c.l.b16 %v95
  %v1269 = vunpack.c.h.b16 %v95
  %v1270 = vunpack.c.l.b16 %v96
  %v1271 = vunpack.c.h.b16 %v96
  %v1272 = vunpack.c.l.b16 %v97
  %v1273 = vunpack.c.h.b16 %v97
  %v1274 = vunpack.c.l.b16 %v98
  %v1275 = vunpack.c.h.b16 %v98
  %v1276 = vunpack.c.l.b16 %v99
  %v1277 = vunpack.c.h.b16 %v99
  %v1278 = vunpack.c.l.b16 %v100
  %v1279 = vunpack.c.h.b16 %v100
  %v1280 = vunpack.c.l.b16 %v101
  %v1281 = vunpack.c.h.b16 %v101
  %v1282 = vunpack.c.l.b16 %v102
  %v1283 = vunpack.c.h.b16 %v102
  %v1284 = vunpack.c.l.b16 %v103
  %v1285 = vunpack.c.h.b16 %v103
  %v1286 = vunpack.c.l.b16 %v104
  %v1287 = vunpack.c.h.b16 %v104
  %v1288 = vunpack.c.l.b16 %v105
  %v1289 = vunpack.c.h.b16 %v105
  %v1290 = vunpack.c.l.b16 %v106
  %v1291 = vunpack.c.h.b16 %v106
  %v1292 = vunpack.c.l.b16 %v107
  %v1293 = vunpack.c.h.b16 %v107
  %v1294 = vunpack.c.l.b16 %v108
  %v1295 = vunpack.c.h.b16 %v108
  %v1296 = vunpack.c.l.b16 %v109
  %v1297 = vunpack.c.h.b16 %v109
  %v1298 = vunpack.c.l.b16 %v110
  %v1299 = vunpack.c.h.b16 %v110
  %v1300 = vunpack.c.l.b16 %v111
  %v1301 = vunpack.c.h.b16 %v111
  %v1302 = vunpack.c.l.b16 %v112
  %v1303 = vunpack.c.h.b16 %v112
  %v1304 = vunpack.c.l.b16 %v113
  %v1305 = vunpack.c.h.b16 %v113
  %v1306 = vunpack.c.l.b16 %v114
  %v1307 = vunpack.c.h.b16 %v114
  %v1308 = vunpack.c.l.b16 %v115
  %v1309 = vunpack.c.h.b16 %v115
  %v1310 = vunpack.c.l.b16 %v116
  %v1311 = vunpack.c.h.b16 %v116
  %v1312 = vpack.c.b16 %v1218, %v1216
  %v1313 = vpack.c.b16 %v1219, %v1217
  %v1314 = vpack.c.b16 %v1222, %v1220
  %v1315 = vpack.c.b16 %v1223, %v1221
  %v1316 = vpack.c.b16 %v1226, %v1224
  %v1317 = vpack.c.b16 %v1227, %v1225
  %v1318 = vpack.c.b16 %v1230, %v1228
  %v1319 = vpack.c.b16 %v1231, %v1229
  %v1320 = vpack.c.b16 %v1234, %v1232
  %v1321 = vpack.c.b16 %v1235, %v1233
  %v1322 = vpack.c.b16 %v1238, %v1236
  %v1323 = vpack.c.b16 %v1239, %v1237
  %v1324 = vpack.c.b16 %v1242, %v1240
  %v1325 = vpack.c.b16 %v1243, %v1241
  %v1326 = vpack.c.b16 %v1246, %v1244
  %v1327 = vpack.c.b16 %v1247, %v1245
  %v1328 = vpack.c.b16 %v1250, %v1248
  %v1329 = vpack.c.b16 %v1251, %v1249
  %v1330 = vpack.c.b16 %v1254, %v1252
  %v1331 = vpack.c.b16 %v1255, %v1253
  %v1332 = vpack.c.b16 %v1258, %v1256
  %v1333 = vpack.c.b16 %v1259, %v1257
  %v1334 = vpack.c.b16 %v1262, %v1260
  %v1335 = vpack.c.b16 %v1263, %v1261
  %v1336 = vpack.c.b16 %v1266, %v1264
  %v1337 = vpack.c.b16 %v1267, %v1265
  %v1338 = vpack.c.b16 %v1270, %v1268
  %v1339 = vpack.c.b16 %v1271, %v1269
  %v1340 = vpack.c.b16 %v1274, %v1272
  %v1341 = vpack.c.b16 %v1275, %v1273
  %v1342 = vpack.c.b16 %v1278, %v1276
  %v1343 = vpack.c.b16 %v1279, %v1277
  %v1344 = vpack.c.b16 %v1282, %v1280
  %v1345 = vpack.c.b16 %v1283, %v1281
  %v1346 = vpack.c.b16 %v1286, %v1284
  %v1347 = vpack.c.b16 %v1287, %v1285
  %v1348 = vpack.c.b16 %v1290, %v1288
  %v1349 = vpack.c.b16 %v1291, %v1289
  %v1350 = vpack.c.b16 %v1294, %v1292
  %v1351 = vpack.c.b16 %v1295, %v1293
  %v1352 = vpack.c.b16 %v1298, %v1296
  %v1353 = vpack.c.b16 %v1299, %v1297
  %v1354 = vpack.c.b16 %v1302, %v1300
  %v1355 = vpack.c.b16 %v1303, %v1301
  %v1356 = vpack.c.b16 %v1306, %v1304
  %v1357 = vpack.c.b16 %v1307, %v1305
  %v1358 = vpack.c.b16 %v1310, %v1308
  %v1359 = vpack.c.b16 %v1311, %v1309
  %v1385 = vsel %vm549, %v1313, 0
  %v1388 = vsel %vm549, %v1315, 0
  %v1391 = vsel %vm549, %v1317, 0
  %v1394 = vsel %vm549, %v1319, 0
  %v1397 = vsel %vm549, %v1321, 0
  %v1400 = vsel %vm549, %v1323, 0
  %v1403 = vsel %vm549, %v1325, 0
  %v1406 = vsel %vm549, %v1327, 0
  %v1409 = vsel %vm549, %v1329, 0
  %v1412 = vsel %vm549, %v1331, 0
  %v1415 = vsel %vm549, %v1333, 0
  %v1418 = vsel %vm549, %v1335, 0
  %v1421 = vsel %vm549, %v1337, 0
  %v1424 = vsel %vm549, %v1339, 0
  %v1427 = vsel %vm549, %v1341, 0
  %v1430 = vsel %vm549, %v1343, 0
  %v1433 = vsel %vm549, %v1345, 0
  %v1436 = vsel %vm549, %v1347, 0
  %v1439 = vsel %vm549, %v1349, 0
  %v1442 = vsel %vm549, %v1351, 0
  %v1445 = vsel %vm549, %v1353, 0
  %v1448 = vsel %vm549, %v1355, 0
  %v1451 = vsel %vm549, %v1357, 0
  %v1454 = vsel %vm549, %v1359, 0
  %1456 = vmatprep.subr.bf16.mxu0 %v478
  %1457 = vmatpush1.bf16.msra.mxu0 %v477
  %1458 = vmatprep.subr.bf16.mxu0 %v482
  %1459 = vmatpush1.bf16.msra.mxu0 %v481
  %1460 = vmatprep.subr.bf16.mxu0 %v486
  %1461 = vmatpush1.bf16.msra.mxu0 %v485
  %1462 = vmatprep.subr.bf16.mxu0 %v490
  %1463 = vmatpush1.bf16.msra.mxu0 %v489
  %1464 = vmatprep.subr.bf16.mxu0 %v494
  %1465 = vmatpush1.bf16.msra.mxu0 %v493
  %1466 = vmatprep.subr.bf16.mxu0 %v498
  %1467 = vmatpush1.bf16.msra.mxu0 %v497
  %1468 = vmatprep.subr.bf16.mxu0 %v502
  %1469 = vmatpush1.bf16.msra.mxu0 %v501
  %1470 = vmatprep.subr.bf16.mxu0 %v506
  %1471 = vmatpush1.bf16.msra.mxu0 %v505
  %1472 = vmatprep.subr.bf16.mxu0 %v510
  %1473 = vmatpush1.bf16.msra.mxu0 %v509
  %1474 = vmatprep.subr.bf16.mxu0 0
  %1475 = vmatpush1.bf16.msra.mxu0 0
  %1476 = vmatprep.subr.bf16.mxu0 0
  %1477 = vmatpush1.bf16.msra.mxu0 0
  %1478 = vmatprep.subr.bf16.mxu0 0
  %1479 = vmatpush1.bf16.msra.mxu0 0
  %1480 = vmatprep.subr.bf16.mxu0 0
  %1481 = vmatpush1.bf16.msra.mxu0 0
  %1482 = vmatprep.subr.bf16.mxu0 0
  %1483 = vmatpush1.bf16.msra.mxu0 0
  %1484 = vmatprep.subr.bf16.mxu0 0
  %1485 = vmatpush1.bf16.msra.mxu0 0
  %1486 = vmatprep.subr.bf16.mxu0 0
  %1487 = vmatpush1.bf16.msra.mxu0 0
  %1488 = vmatprep.mubr.bf16.mxu0 %v1385
  %1489 = vmatmul.mubr.bf16.gmra.mrb[0].mxu0 %v1312
  %v1490 = vpop.f32.mrb[0].mxu0
  %v1491 = vadd.f32 0.0, %v1490
  %v1492 = vpop.f32.mrb[0].mxu0
  %v1493 = vadd.f32 0.0, %v1492
  %v1494 = vpop.f32.mrb[0].mxu0
  %v1495 = vadd.f32 0.0, %v1494
  %v1496 = vpop.f32.mrb[0].mxu0
  %v1497 = vadd.f32 0.0, %v1496
  %1498 = vmatprep.mubr.bf16.mxu0 %v1388
  %1499 = vmatmul.mubr.bf16.gmra.mrb[0].mxu0 %v1314
  %v1500 = vpop.f32.mrb[0].mxu0
  %v1501 = vadd.f32 0.0, %v1500
  %v1502 = vpop.f32.mrb[0].mxu0
  %v1503 = vadd.f32 0.0, %v1502
  %v1504 = vpop.f32.mrb[0].mxu0
  %v1505 = vadd.f32 0.0, %v1504
  %v1506 = vpop.f32.mrb[0].mxu0
  %v1507 = vadd.f32 0.0, %v1506
  %1508 = vmatprep.mubr.bf16.mxu0 %v1391
  %1509 = vmatmul.mubr.bf16.gmra.mrb[0].mxu0 %v1316
  %v1510 = vpop.f32.mrb[0].mxu0
  %v1511 = vadd.f32 0.0, %v1510
  %v1512 = vpop.f32.mrb[0].mxu0
  %v1513 = vadd.f32 0.0, %v1512
  %v1514 = vpop.f32.mrb[0].mxu0
  %v1515 = vadd.f32 0.0, %v1514
  %v1516 = vpop.f32.mrb[0].mxu0
  %v1517 = vadd.f32 0.0, %v1516
  %1518 = vmatprep.mubr.bf16.mxu0 %v1394
  %1519 = vmatmul.mubr.bf16.gmra.mrb[0].mxu0 %v1318
  %v1520 = vpop.f32.mrb[0].mxu0
  %v1521 = vadd.f32 0.0, %v1520
  %v1522 = vpop.f32.mrb[0].mxu0
  %v1523 = vadd.f32 0.0, %v1522
  %v1524 = vpop.f32.mrb[0].mxu0
  %v1525 = vadd.f32 0.0, %v1524
  %v1526 = vpop.f32.mrb[0].mxu0
  %v1527 = vadd.f32 0.0, %v1526
  %1528 = vmatprep.mubr.bf16.mxu0 %v1397
  %1529 = vmatmul.mubr.bf16.gmra.mrb[0].mxu0 %v1320
  %v1530 = vpop.f32.mrb[0].mxu0
  %v1531 = vadd.f32 0.0, %v1530
  %v1532 = vpop.f32.mrb[0].mxu0
  %v1533 = vadd.f32 0.0, %v1532
  %v1534 = vpop.f32.mrb[0].mxu0
  %v1535 = vadd.f32 0.0, %v1534
  %v1536 = vpop.f32.mrb[0].mxu0
  %v1537 = vadd.f32 0.0, %v1536
  %1538 = vmatprep.mubr.bf16.mxu0 %v1400
  %1539 = vmatmul.mubr.bf16.gmra.mrb[0].mxu0 %v1322
  %v1540 = vpop.f32.mrb[0].mxu0
  %v1541 = vadd.f32 0.0, %v1540
  %v1542 = vpop.f32.mrb[0].mxu0
  %v1543 = vadd.f32 0.0, %v1542
  %v1544 = vpop.f32.mrb[0].mxu0
  %v1545 = vadd.f32 0.0, %v1544
  %v1546 = vpop.f32.mrb[0].mxu0
  %v1547 = vadd.f32 0.0, %v1546
  %1548 = vmatprep.mubr.bf16.mxu0 %v1403
  %1549 = vmatmul.mubr.bf16.gmra.mrb[0].mxu0 %v1324
  %v1550 = vpop.f32.mrb[0].mxu0
  %v1551 = vadd.f32 0.0, %v1550
  %v1552 = vpop.f32.mrb[0].mxu0
  %v1553 = vadd.f32 0.0, %v1552
  %v1554 = vpop.f32.mrb[0].mxu0
  %v1555 = vadd.f32 0.0, %v1554
  %v1556 = vpop.f32.mrb[0].mxu0
  %v1557 = vadd.f32 0.0, %v1556
  %1558 = vmatprep.mubr.bf16.mxu0 %v1406
  %1559 = vmatmul.mubr.bf16.gmra.mrb[0].mxu0 %v1326
  %v1560 = vpop.f32.mrb[0].mxu0
  %v1561 = vadd.f32 0.0, %v1560
  %v1562 = vpop.f32.mrb[0].mxu0
  %v1563 = vadd.f32 0.0, %v1562
  %v1564 = vpop.f32.mrb[0].mxu0
  %v1565 = vadd.f32 0.0, %v1564
  %v1566 = vpop.f32.mrb[0].mxu0
  %v1567 = vadd.f32 0.0, %v1566
  %1568 = vmatprep.mubr.bf16.mxu0 %v1409
  %1569 = vmatmul.mubr.bf16.gmra.mrb[0].mxu0 %v1328
  %v1570 = vpop.f32.mrb[0].mxu0
  %v1571 = vadd.f32 0.0, %v1570
  %v1572 = vpop.f32.mrb[0].mxu0
  %v1573 = vadd.f32 0.0, %v1572
  %v1574 = vpop.f32.mrb[0].mxu0
  %v1575 = vadd.f32 0.0, %v1574
  %v1576 = vpop.f32.mrb[0].mxu0
  %v1577 = vadd.f32 0.0, %v1576
  %1578 = vmatprep.mubr.bf16.mxu0 %v1412
  %1579 = vmatmul.mubr.bf16.gmra.mrb[0].mxu0 %v1330
  %v1580 = vpop.f32.mrb[0].mxu0
  %v1581 = vadd.f32 0.0, %v1580
  %v1582 = vpop.f32.mrb[0].mxu0
  %v1583 = vadd.f32 0.0, %v1582
  %v1584 = vpop.f32.mrb[0].mxu0
  %v1585 = vadd.f32 0.0, %v1584
  %v1586 = vpop.f32.mrb[0].mxu0
  %v1587 = vadd.f32 0.0, %v1586
  %1588 = vmatprep.mubr.bf16.mxu0 %v1415
  %1589 = vmatmul.mubr.bf16.gmra.mrb[0].mxu0 %v1332
  %v1590 = vpop.f32.mrb[0].mxu0
  %v1591 = vadd.f32 0.0, %v1590
  %v1592 = vpop.f32.mrb[0].mxu0
  %v1593 = vadd.f32 0.0, %v1592
  %v1594 = vpop.f32.mrb[0].mxu0
  %v1595 = vadd.f32 0.0, %v1594
  %v1596 = vpop.f32.mrb[0].mxu0
  %v1597 = vadd.f32 0.0, %v1596
  %1598 = vmatprep.mubr.bf16.mxu0 %v1418
  %1599 = vmatmul.mubr.bf16.gmra.mrb[0].mxu0 %v1334
  %v1600 = vpop.f32.mrb[0].mxu0
  %v1601 = vadd.f32 0.0, %v1600
  %v1602 = vpop.f32.mrb[0].mxu0
  %v1603 = vadd.f32 0.0, %v1602
  %v1604 = vpop.f32.mrb[0].mxu0
  %v1605 = vadd.f32 0.0, %v1604
  %v1606 = vpop.f32.mrb[0].mxu0
  %v1607 = vadd.f32 0.0, %v1606
  %1608 = vmatprep.mubr.bf16.mxu0 %v1421
  %1609 = vmatmul.mubr.bf16.gmra.mrb[0].mxu0 %v1336
  %v1610 = vpop.f32.mrb[0].mxu0
  %v1611 = vadd.f32 0.0, %v1610
  %v1612 = vpop.f32.mrb[0].mxu0
  %v1613 = vadd.f32 0.0, %v1612
  %v1614 = vpop.f32.mrb[0].mxu0
  %v1615 = vadd.f32 0.0, %v1614
  %v1616 = vpop.f32.mrb[0].mxu0
  %v1617 = vadd.f32 0.0, %v1616
  %1618 = vmatprep.mubr.bf16.mxu0 %v1424
  %1619 = vmatmul.mubr.bf16.gmra.mrb[0].mxu0 %v1338
  %v1620 = vpop.f32.mrb[0].mxu0
  %v1621 = vadd.f32 0.0, %v1620
  %v1622 = vpop.f32.mrb[0].mxu0
  %v1623 = vadd.f32 0.0, %v1622
  %v1624 = vpop.f32.mrb[0].mxu0
  %v1625 = vadd.f32 0.0, %v1624
  %v1626 = vpop.f32.mrb[0].mxu0
  %v1627 = vadd.f32 0.0, %v1626
  %1628 = vmatprep.mubr.bf16.mxu0 %v1427
  %1629 = vmatmul.mubr.bf16.gmra.mrb[0].mxu0 %v1340
  %v1630 = vpop.f32.mrb[0].mxu0
  %v1631 = vadd.f32 0.0, %v1630
  %v1632 = vpop.f32.mrb[0].mxu0
  %v1633 = vadd.f32 0.0, %v1632
  %v1634 = vpop.f32.mrb[0].mxu0
  %v1635 = vadd.f32 0.0, %v1634
  %v1636 = vpop.f32.mrb[0].mxu0
  %v1637 = vadd.f32 0.0, %v1636
  %1638 = vmatprep.mubr.bf16.mxu0 %v1430
  %1639 = vmatmul.mubr.bf16.gmra.mrb[0].mxu0 %v1342
  %v1640 = vpop.f32.mrb[0].mxu0
  %v1641 = vadd.f32 0.0, %v1640
  %v1642 = vpop.f32.mrb[0].mxu0
  %v1643 = vadd.f32 0.0, %v1642
  %v1644 = vpop.f32.mrb[0].mxu0
  %v1645 = vadd.f32 0.0, %v1644
  %v1646 = vpop.f32.mrb[0].mxu0
  %v1647 = vadd.f32 0.0, %v1646
  %1648 = vmatprep.mubr.bf16.mxu0 %v1433
  %1649 = vmatmul.mubr.bf16.gmra.mrb[0].mxu0 %v1344
  %v1650 = vpop.f32.mrb[0].mxu0
  %v1651 = vadd.f32 0.0, %v1650
  %v1652 = vpop.f32.mrb[0].mxu0
  %v1653 = vadd.f32 0.0, %v1652
  %v1654 = vpop.f32.mrb[0].mxu0
  %v1655 = vadd.f32 0.0, %v1654
  %v1656 = vpop.f32.mrb[0].mxu0
  %v1657 = vadd.f32 0.0, %v1656
  %1658 = vmatprep.mubr.bf16.mxu0 %v1436
  %1659 = vmatmul.mubr.bf16.gmra.mrb[0].mxu0 %v1346
  %v1660 = vpop.f32.mrb[0].mxu0
  %v1661 = vadd.f32 0.0, %v1660
  %v1662 = vpop.f32.mrb[0].mxu0
  %v1663 = vadd.f32 0.0, %v1662
  %v1664 = vpop.f32.mrb[0].mxu0
  %v1665 = vadd.f32 0.0, %v1664
  %v1666 = vpop.f32.mrb[0].mxu0
  %v1667 = vadd.f32 0.0, %v1666
  %1668 = vmatprep.mubr.bf16.mxu0 %v1439
  %1669 = vmatmul.mubr.bf16.gmra.mrb[0].mxu0 %v1348
  %v1670 = vpop.f32.mrb[0].mxu0
  %v1671 = vadd.f32 0.0, %v1670
  %v1672 = vpop.f32.mrb[0].mxu0
  %v1673 = vadd.f32 0.0, %v1672
  %v1674 = vpop.f32.mrb[0].mxu0
  %v1675 = vadd.f32 0.0, %v1674
  %v1676 = vpop.f32.mrb[0].mxu0
  %v1677 = vadd.f32 0.0, %v1676
  %1678 = vmatprep.mubr.bf16.mxu0 %v1442
  %1679 = vmatmul.mubr.bf16.gmra.mrb[0].mxu0 %v1350
  %v1680 = vpop.f32.mrb[0].mxu0
  %v1681 = vadd.f32 0.0, %v1680
  %v1682 = vpop.f32.mrb[0].mxu0
  %v1683 = vadd.f32 0.0, %v1682
  %v1684 = vpop.f32.mrb[0].mxu0
  %v1685 = vadd.f32 0.0, %v1684
  %v1686 = vpop.f32.mrb[0].mxu0
  %v1687 = vadd.f32 0.0, %v1686
  %1688 = vmatprep.mubr.bf16.mxu0 %v1445
  %1689 = vmatmul.mubr.bf16.gmra.mrb[0].mxu0 %v1352
  %v1690 = vpop.f32.mrb[0].mxu0
  %v1691 = vadd.f32 0.0, %v1690
  %v1692 = vpop.f32.mrb[0].mxu0
  %v1693 = vadd.f32 0.0, %v1692
  %v1694 = vpop.f32.mrb[0].mxu0
  %v1695 = vadd.f32 0.0, %v1694
  %v1696 = vpop.f32.mrb[0].mxu0
  %v1697 = vadd.f32 0.0, %v1696
  %1698 = vmatprep.mubr.bf16.mxu0 %v1448
  %1699 = vmatmul.mubr.bf16.gmra.mrb[0].mxu0 %v1354
  %v1700 = vpop.f32.mrb[0].mxu0
  %v1701 = vadd.f32 0.0, %v1700
  %v1702 = vpop.f32.mrb[0].mxu0
  %v1703 = vadd.f32 0.0, %v1702
  %v1704 = vpop.f32.mrb[0].mxu0
  %v1705 = vadd.f32 0.0, %v1704
  %v1706 = vpop.f32.mrb[0].mxu0
  %v1707 = vadd.f32 0.0, %v1706
  %1708 = vmatprep.mubr.bf16.mxu0 %v1451
  %1709 = vmatmul.mubr.bf16.gmra.mrb[0].mxu0 %v1356
  %v1710 = vpop.f32.mrb[0].mxu0
  %v1711 = vadd.f32 0.0, %v1710
  %v1712 = vpop.f32.mrb[0].mxu0
  %v1713 = vadd.f32 0.0, %v1712
  %v1714 = vpop.f32.mrb[0].mxu0
  %v1715 = vadd.f32 0.0, %v1714
  %v1716 = vpop.f32.mrb[0].mxu0
  %v1717 = vadd.f32 0.0, %v1716
  %1718 = vmatprep.mubr.bf16.mxu0 %v1454
  %1719 = vmatmul.mubr.bf16.gmra.mrb[0].mxu0 %v1358
  %v1720 = vpop.f32.mrb[0].mxu0
  %v1721 = vadd.f32 0.0, %v1720
  %v1722 = vpop.f32.mrb[0].mxu0
  %v1723 = vadd.f32 0.0, %v1722
  %v1724 = vpop.f32.mrb[0].mxu0
  %v1725 = vadd.f32 0.0, %v1724
  %v1726 = vpop.f32.mrb[0].mxu0
  %v1727 = vadd.f32 0.0, %v1726
  %1728 = vdwg.mxu0
  %1729 = vmatprep.subr.bf16.mxu0 %v480
  %1730 = vmatpush1.bf16.msra.mxu0 %v479
  %1731 = vmatprep.subr.bf16.mxu0 %v484
  %1732 = vmatpush1.bf16.msra.mxu0 %v483
  %1733 = vmatprep.subr.bf16.mxu0 %v488
  %1734 = vmatpush1.bf16.msra.mxu0 %v487
  %1735 = vmatprep.subr.bf16.mxu0 %v492
  %1736 = vmatpush1.bf16.msra.mxu0 %v491
  %1737 = vmatprep.subr.bf16.mxu0 %v496
  %1738 = vmatpush1.bf16.msra.mxu0 %v495
  %1739 = vmatprep.subr.bf16.mxu0 %v500
  %1740 = vmatpush1.bf16.msra.mxu0 %v499
  %1741 = vmatprep.subr.bf16.mxu0 %v504
  %1742 = vmatpush1.bf16.msra.mxu0 %v503
  %1743 = vmatprep.subr.bf16.mxu0 %v508
  %1744 = vmatpush1.bf16.msra.mxu0 %v507
  %1745 = vmatprep.subr.bf16.mxu0 %v512
  %1746 = vmatpush1.bf16.msra.mxu0 %v511
  %1747 = vmatprep.subr.bf16.mxu0 0
  %1748 = vmatpush1.bf16.msra.mxu0 0
  %1749 = vmatprep.subr.bf16.mxu0 0
  %1750 = vmatpush1.bf16.msra.mxu0 0
  %1751 = vmatprep.subr.bf16.mxu0 0
  %1752 = vmatpush1.bf16.msra.mxu0 0
  %1753 = vmatprep.subr.bf16.mxu0 0
  %1754 = vmatpush1.bf16.msra.mxu0 0
  %1755 = vmatprep.subr.bf16.mxu0 0
  %1756 = vmatpush1.bf16.msra.mxu0 0
  %1757 = vmatprep.subr.bf16.mxu0 0
  %1758 = vmatpush1.bf16.msra.mxu0 0
  %1759 = vmatprep.subr.bf16.mxu0 0
  %1760 = vmatpush1.bf16.msra.mxu0 0
  %1761 = vmatprep.mubr.bf16.mxu0 %v1385
  %1762 = vmatmul.mubr.bf16.gmra.mrb[0].mxu0 %v1312
  %v1763 = vpop.f32.mrb[0].mxu0
  %v1764 = vadd.f32 0.0, %v1763
  %v1765 = vpop.f32.mrb[0].mxu0
  %v1766 = vadd.f32 0.0, %v1765
  %v1767 = vpop.f32.mrb[0].mxu0
  %v1768 = vadd.f32 0.0, %v1767
  %v1769 = vpop.f32.mrb[0].mxu0
  %v1770 = vadd.f32 0.0, %v1769
  %1771 = vmatprep.mubr.bf16.mxu0 %v1388
  %1772 = vmatmul.mubr.bf16.gmra.mrb[0].mxu0 %v1314
  %v1773 = vpop.f32.mrb[0].mxu0
  %v1774 = vadd.f32 0.0, %v1773
  %v1775 = vpop.f32.mrb[0].mxu0
  %v1776 = vadd.f32 0.0, %v1775
  %v1777 = vpop.f32.mrb[0].mxu0
  %v1778 = vadd.f32 0.0, %v1777
  %v1779 = vpop.f32.mrb[0].mxu0
  %v1780 = vadd.f32 0.0, %v1779
  %1781 = vmatprep.mubr.bf16.mxu0 %v1391
  %1782 = vmatmul.mubr.bf16.gmra.mrb[0].mxu0 %v1316
  %v1783 = vpop.f32.mrb[0].mxu0
  %v1784 = vadd.f32 0.0, %v1783
  %v1785 = vpop.f32.mrb[0].mxu0
  %v1786 = vadd.f32 0.0, %v1785
  %v1787 = vpop.f32.mrb[0].mxu0
  %v1788 = vadd.f32 0.0, %v1787
  %v1789 = vpop.f32.mrb[0].mxu0
  %v1790 = vadd.f32 0.0, %v1789
  %1791 = vmatprep.mubr.bf16.mxu0 %v1394
  %1792 = vmatmul.mubr.bf16.gmra.mrb[0].mxu0 %v1318
  %v1793 = vpop.f32.mrb[0].mxu0
  %v1794 = vadd.f32 0.0, %v1793
  %v1795 = vpop.f32.mrb[0].mxu0
  %v1796 = vadd.f32 0.0, %v1795
  %v1797 = vpop.f32.mrb[0].mxu0
  %v1798 = vadd.f32 0.0, %v1797
  %v1799 = vpop.f32.mrb[0].mxu0
  %v1800 = vadd.f32 0.0, %v1799
  %1801 = vmatprep.mubr.bf16.mxu0 %v1397
  %1802 = vmatmul.mubr.bf16.gmra.mrb[0].mxu0 %v1320
  %v1803 = vpop.f32.mrb[0].mxu0
  %v1804 = vadd.f32 0.0, %v1803
  %v1805 = vpop.f32.mrb[0].mxu0
  %v1806 = vadd.f32 0.0, %v1805
  %v1807 = vpop.f32.mrb[0].mxu0
  %v1808 = vadd.f32 0.0, %v1807
  %v1809 = vpop.f32.mrb[0].mxu0
  %v1810 = vadd.f32 0.0, %v1809
  %1811 = vmatprep.mubr.bf16.mxu0 %v1400
  %1812 = vmatmul.mubr.bf16.gmra.mrb[0].mxu0 %v1322
  %v1813 = vpop.f32.mrb[0].mxu0
  %v1814 = vadd.f32 0.0, %v1813
  %v1815 = vpop.f32.mrb[0].mxu0
  %v1816 = vadd.f32 0.0, %v1815
  %v1817 = vpop.f32.mrb[0].mxu0
  %v1818 = vadd.f32 0.0, %v1817
  %v1819 = vpop.f32.mrb[0].mxu0
  %v1820 = vadd.f32 0.0, %v1819
  %1821 = vmatprep.mubr.bf16.mxu0 %v1403
  %1822 = vmatmul.mubr.bf16.gmra.mrb[0].mxu0 %v1324
  %v1823 = vpop.f32.mrb[0].mxu0
  %v1824 = vadd.f32 0.0, %v1823
  %v1825 = vpop.f32.mrb[0].mxu0
  %v1826 = vadd.f32 0.0, %v1825
  %v1827 = vpop.f32.mrb[0].mxu0
  %v1828 = vadd.f32 0.0, %v1827
  %v1829 = vpop.f32.mrb[0].mxu0
  %v1830 = vadd.f32 0.0, %v1829
  %1831 = vmatprep.mubr.bf16.mxu0 %v1406
  %1832 = vmatmul.mubr.bf16.gmra.mrb[0].mxu0 %v1326
  %v1833 = vpop.f32.mrb[0].mxu0
  %v1834 = vadd.f32 0.0, %v1833
  %v1835 = vpop.f32.mrb[0].mxu0
  %v1836 = vadd.f32 0.0, %v1835
  %v1837 = vpop.f32.mrb[0].mxu0
  %v1838 = vadd.f32 0.0, %v1837
  %v1839 = vpop.f32.mrb[0].mxu0
  %v1840 = vadd.f32 0.0, %v1839
  %1841 = vmatprep.mubr.bf16.mxu0 %v1409
  %1842 = vmatmul.mubr.bf16.gmra.mrb[0].mxu0 %v1328
  %v1843 = vpop.f32.mrb[0].mxu0
  %v1844 = vadd.f32 0.0, %v1843
  %v1845 = vpop.f32.mrb[0].mxu0
  %v1846 = vadd.f32 0.0, %v1845
  %v1847 = vpop.f32.mrb[0].mxu0
  %v1848 = vadd.f32 0.0, %v1847
  %v1849 = vpop.f32.mrb[0].mxu0
  %v1850 = vadd.f32 0.0, %v1849
  %1851 = vmatprep.mubr.bf16.mxu0 %v1412
  %1852 = vmatmul.mubr.bf16.gmra.mrb[0].mxu0 %v1330
  %v1853 = vpop.f32.mrb[0].mxu0
  %v1854 = vadd.f32 0.0, %v1853
  %v1855 = vpop.f32.mrb[0].mxu0
  %v1856 = vadd.f32 0.0, %v1855
  %v1857 = vpop.f32.mrb[0].mxu0
  %v1858 = vadd.f32 0.0, %v1857
  %v1859 = vpop.f32.mrb[0].mxu0
  %v1860 = vadd.f32 0.0, %v1859
  %1861 = vmatprep.mubr.bf16.mxu0 %v1415
  %1862 = vmatmul.mubr.bf16.gmra.mrb[0].mxu0 %v1332
  %v1863 = vpop.f32.mrb[0].mxu0
  %v1864 = vadd.f32 0.0, %v1863
  %v1865 = vpop.f32.mrb[0].mxu0
  %v1866 = vadd.f32 0.0, %v1865
  %v1867 = vpop.f32.mrb[0].mxu0
  %v1868 = vadd.f32 0.0, %v1867
  %v1869 = vpop.f32.mrb[0].mxu0
  %v1870 = vadd.f32 0.0, %v1869
  %1871 = vmatprep.mubr.bf16.mxu0 %v1418
  %1872 = vmatmul.mubr.bf16.gmra.mrb[0].mxu0 %v1334
  %v1873 = vpop.f32.mrb[0].mxu0
  %v1874 = vadd.f32 0.0, %v1873
  %v1875 = vpop.f32.mrb[0].mxu0
  %v1876 = vadd.f32 0.0, %v1875
  %v1877 = vpop.f32.mrb[0].mxu0
  %v1878 = vadd.f32 0.0, %v1877
  %v1879 = vpop.f32.mrb[0].mxu0
  %v1880 = vadd.f32 0.0, %v1879
  %1881 = vmatprep.mubr.bf16.mxu0 %v1421
  %1882 = vmatmul.mubr.bf16.gmra.mrb[0].mxu0 %v1336
  %v1883 = vpop.f32.mrb[0].mxu0
  %v1884 = vadd.f32 0.0, %v1883
  %v1885 = vpop.f32.mrb[0].mxu0
  %v1886 = vadd.f32 0.0, %v1885
  %v1887 = vpop.f32.mrb[0].mxu0
  %v1888 = vadd.f32 0.0, %v1887
  %v1889 = vpop.f32.mrb[0].mxu0
  %v1890 = vadd.f32 0.0, %v1889
  %1891 = vmatprep.mubr.bf16.mxu0 %v1424
  %1892 = vmatmul.mubr.bf16.gmra.mrb[0].mxu0 %v1338
  %v1893 = vpop.f32.mrb[0].mxu0
  %v1894 = vadd.f32 0.0, %v1893
  %v1895 = vpop.f32.mrb[0].mxu0
  %v1896 = vadd.f32 0.0, %v1895
  %v1897 = vpop.f32.mrb[0].mxu0
  %v1898 = vadd.f32 0.0, %v1897
  %v1899 = vpop.f32.mrb[0].mxu0
  %v1900 = vadd.f32 0.0, %v1899
  %1901 = vmatprep.mubr.bf16.mxu0 %v1427
  %1902 = vmatmul.mubr.bf16.gmra.mrb[0].mxu0 %v1340
  %v1903 = vpop.f32.mrb[0].mxu0
  %v1904 = vadd.f32 0.0, %v1903
  %v1905 = vpop.f32.mrb[0].mxu0
  %v1906 = vadd.f32 0.0, %v1905
  %v1907 = vpop.f32.mrb[0].mxu0
  %v1908 = vadd.f32 0.0, %v1907
  %v1909 = vpop.f32.mrb[0].mxu0
  %v1910 = vadd.f32 0.0, %v1909
  %1911 = vmatprep.mubr.bf16.mxu0 %v1430
  %1912 = vmatmul.mubr.bf16.gmra.mrb[0].mxu0 %v1342
  %v1913 = vpop.f32.mrb[0].mxu0
  %v1914 = vadd.f32 0.0, %v1913
  %v1915 = vpop.f32.mrb[0].mxu0
  %v1916 = vadd.f32 0.0, %v1915
  %v1917 = vpop.f32.mrb[0].mxu0
  %v1918 = vadd.f32 0.0, %v1917
  %v1919 = vpop.f32.mrb[0].mxu0
  %v1920 = vadd.f32 0.0, %v1919
  %1921 = vmatprep.mubr.bf16.mxu0 %v1433
  %1922 = vmatmul.mubr.bf16.gmra.mrb[0].mxu0 %v1344
  %v1923 = vpop.f32.mrb[0].mxu0
  %v1924 = vadd.f32 0.0, %v1923
  %v1925 = vpop.f32.mrb[0].mxu0
  %v1926 = vadd.f32 0.0, %v1925
  %v1927 = vpop.f32.mrb[0].mxu0
  %v1928 = vadd.f32 0.0, %v1927
  %v1929 = vpop.f32.mrb[0].mxu0
  %v1930 = vadd.f32 0.0, %v1929
  %1931 = vmatprep.mubr.bf16.mxu0 %v1436
  %1932 = vmatmul.mubr.bf16.gmra.mrb[0].mxu0 %v1346
  %v1933 = vpop.f32.mrb[0].mxu0
  %v1934 = vadd.f32 0.0, %v1933
  %v1935 = vpop.f32.mrb[0].mxu0
  %v1936 = vadd.f32 0.0, %v1935
  %v1937 = vpop.f32.mrb[0].mxu0
  %v1938 = vadd.f32 0.0, %v1937
  %v1939 = vpop.f32.mrb[0].mxu0
  %v1940 = vadd.f32 0.0, %v1939
  %1941 = vmatprep.mubr.bf16.mxu0 %v1439
  %1942 = vmatmul.mubr.bf16.gmra.mrb[0].mxu0 %v1348
  %v1943 = vpop.f32.mrb[0].mxu0
  %v1944 = vadd.f32 0.0, %v1943
  %v1945 = vpop.f32.mrb[0].mxu0
  %v1946 = vadd.f32 0.0, %v1945
  %v1947 = vpop.f32.mrb[0].mxu0
  %v1948 = vadd.f32 0.0, %v1947
  %v1949 = vpop.f32.mrb[0].mxu0
  %v1950 = vadd.f32 0.0, %v1949
  %1951 = vmatprep.mubr.bf16.mxu0 %v1442
  %1952 = vmatmul.mubr.bf16.gmra.mrb[0].mxu0 %v1350
  %v1953 = vpop.f32.mrb[0].mxu0
  %v1954 = vadd.f32 0.0, %v1953
  %v1955 = vpop.f32.mrb[0].mxu0
  %v1956 = vadd.f32 0.0, %v1955
  %v1957 = vpop.f32.mrb[0].mxu0
  %v1958 = vadd.f32 0.0, %v1957
  %v1959 = vpop.f32.mrb[0].mxu0
  %v1960 = vadd.f32 0.0, %v1959
  %1961 = vmatprep.mubr.bf16.mxu0 %v1445
  %1962 = vmatmul.mubr.bf16.gmra.mrb[0].mxu0 %v1352
  %v1963 = vpop.f32.mrb[0].mxu0
  %v1964 = vadd.f32 0.0, %v1963
  %v1965 = vpop.f32.mrb[0].mxu0
  %v1966 = vadd.f32 0.0, %v1965
  %v1967 = vpop.f32.mrb[0].mxu0
  %v1968 = vadd.f32 0.0, %v1967
  %v1969 = vpop.f32.mrb[0].mxu0
  %v1970 = vadd.f32 0.0, %v1969
  %1971 = vmatprep.mubr.bf16.mxu0 %v1448
  %1972 = vmatmul.mubr.bf16.gmra.mrb[0].mxu0 %v1354
  %v1973 = vpop.f32.mrb[0].mxu0
  %v1974 = vadd.f32 0.0, %v1973
  %v1975 = vpop.f32.mrb[0].mxu0
  %v1976 = vadd.f32 0.0, %v1975
  %v1977 = vpop.f32.mrb[0].mxu0
  %v1978 = vadd.f32 0.0, %v1977
  %v1979 = vpop.f32.mrb[0].mxu0
  %v1980 = vadd.f32 0.0, %v1979
  %1981 = vmatprep.mubr.bf16.mxu0 %v1451
  %1982 = vmatmul.mubr.bf16.gmra.mrb[0].mxu0 %v1356
  %v1983 = vpop.f32.mrb[0].mxu0
  %v1984 = vadd.f32 0.0, %v1983
  %v1985 = vpop.f32.mrb[0].mxu0
  %v1986 = vadd.f32 0.0, %v1985
  %v1987 = vpop.f32.mrb[0].mxu0
  %v1988 = vadd.f32 0.0, %v1987
  %v1989 = vpop.f32.mrb[0].mxu0
  %v1990 = vadd.f32 0.0, %v1989
  %1991 = vmatprep.mubr.bf16.mxu0 %v1454
  %1992 = vmatmul.mubr.bf16.gmra.mrb[0].mxu0 %v1358
  %v1993 = vpop.f32.mrb[0].mxu0
  %v1994 = vadd.f32 0.0, %v1993
  %v1995 = vpop.f32.mrb[0].mxu0
  %v1996 = vadd.f32 0.0, %v1995
  %v1997 = vpop.f32.mrb[0].mxu0
  %v1998 = vadd.f32 0.0, %v1997
  %v1999 = vpop.f32.mrb[0].mxu0
  %v2000 = vadd.f32 0.0, %v1999
  %2001 = vdwg.mxu0
  %v2002 = vmax.f32 %v657, %v1491
  %v2003 = vmax.f32 %v659, %v1493
  %v2004 = vmax.f32 %v930, %v1764
  %v2005 = vmax.f32 %v932, %v1766
  %v2006 = vmax.f32 %v661, %v1495
  %v2007 = vmax.f32 %v663, %v1497
  %v2008 = vmax.f32 %v934, %v1768
  %v2009 = vmax.f32 %v936, %v1770
  %v2010 = vmax.f32 %v667, %v1501
  %v2011 = vmax.f32 %v669, %v1503
  %v2012 = vmax.f32 %v940, %v1774
  %v2013 = vmax.f32 %v942, %v1776
  %v2014 = vmax.f32 %v671, %v1505
  %v2015 = vmax.f32 %v673, %v1507
  %v2016 = vmax.f32 %v944, %v1778
  %v2017 = vmax.f32 %v946, %v1780
  %v2018 = vmax.f32 %v677, %v1511
  %v2019 = vmax.f32 %v679, %v1513
  %v2020 = vmax.f32 %v950, %v1784
  %v2021 = vmax.f32 %v952, %v1786
  %v2022 = vmax.f32 %v681, %v1515
  %v2023 = vmax.f32 %v683, %v1517
  %v2024 = vmax.f32 %v954, %v1788
  %v2025 = vmax.f32 %v956, %v1790
  %v2026 = vmax.f32 %v687, %v1521
  %v2027 = vmax.f32 %v689, %v1523
  %v2028 = vmax.f32 %v960, %v1794
  %v2029 = vmax.f32 %v962, %v1796
  %v2030 = vmax.f32 %v691, %v1525
  %v2031 = vmax.f32 %v693, %v1527
  %v2032 = vmax.f32 %v964, %v1798
  %v2033 = vmax.f32 %v966, %v1800
  %v2034 = vmax.f32 %v697, %v1531
  %v2035 = vmax.f32 %v699, %v1533
  %v2036 = vmax.f32 %v970, %v1804
  %v2037 = vmax.f32 %v972, %v1806
  %v2038 = vmax.f32 %v701, %v1535
  %v2039 = vmax.f32 %v703, %v1537
  %v2040 = vmax.f32 %v974, %v1808
  %v2041 = vmax.f32 %v976, %v1810
  %v2042 = vmax.f32 %v707, %v1541
  %v2043 = vmax.f32 %v709, %v1543
  %v2044 = vmax.f32 %v980, %v1814
  %v2045 = vmax.f32 %v982, %v1816
  %v2046 = vmax.f32 %v711, %v1545
  %v2047 = vmax.f32 %v713, %v1547
  %v2048 = vmax.f32 %v984, %v1818
  %v2049 = vmax.f32 %v986, %v1820
  %v2050 = vmax.f32 %v717, %v1551
  %v2051 = vmax.f32 %v719, %v1553
  %v2052 = vmax.f32 %v990, %v1824
  %v2053 = vmax.f32 %v992, %v1826
  %v2054 = vmax.f32 %v721, %v1555
  %v2055 = vmax.f32 %v723, %v1557
  %v2056 = vmax.f32 %v994, %v1828
  %v2057 = vmax.f32 %v996, %v1830
  %v2058 = vmax.f32 %v727, %v1561
  %v2059 = vmax.f32 %v729, %v1563
  %v2060 = vmax.f32 %v1000, %v1834
  %v2061 = vmax.f32 %v1002, %v1836
  %v2062 = vmax.f32 %v731, %v1565
  %v2063 = vmax.f32 %v733, %v1567
  %v2064 = vmax.f32 %v1004, %v1838
  %v2065 = vmax.f32 %v1006, %v1840
  %v2066 = vmax.f32 %v737, %v1571
  %v2067 = vmax.f32 %v739, %v1573
  %v2068 = vmax.f32 %v1010, %v1844
  %v2069 = vmax.f32 %v1012, %v1846
  %v2070 = vmax.f32 %v741, %v1575
  %v2071 = vmax.f32 %v743, %v1577
  %v2072 = vmax.f32 %v1014, %v1848
  %v2073 = vmax.f32 %v1016, %v1850
  %v2074 = vmax.f32 %v747, %v1581
  %v2075 = vmax.f32 %v749, %v1583
  %v2076 = vmax.f32 %v1020, %v1854
  %v2077 = vmax.f32 %v1022, %v1856
  %v2078 = vmax.f32 %v751, %v1585
  %v2079 = vmax.f32 %v753, %v1587
  %v2080 = vmax.f32 %v1024, %v1858
  %v2081 = vmax.f32 %v1026, %v1860
  %v2082 = vmax.f32 %v757, %v1591
  %v2083 = vmax.f32 %v759, %v1593
  %v2084 = vmax.f32 %v1030, %v1864
  %v2085 = vmax.f32 %v1032, %v1866
  %v2086 = vmax.f32 %v761, %v1595
  %v2087 = vmax.f32 %v763, %v1597
  %v2088 = vmax.f32 %v1034, %v1868
  %v2089 = vmax.f32 %v1036, %v1870
  %v2090 = vmax.f32 %v767, %v1601
  %v2091 = vmax.f32 %v769, %v1603
  %v2092 = vmax.f32 %v1040, %v1874
  %v2093 = vmax.f32 %v1042, %v1876
  %v2094 = vmax.f32 %v771, %v1605
  %v2095 = vmax.f32 %v773, %v1607
  %v2096 = vmax.f32 %v1044, %v1878
  %v2097 = vmax.f32 %v1046, %v1880
  %v2098 = vmax.f32 %v777, %v1611
  %v2099 = vmax.f32 %v779, %v1613
  %v2100 = vmax.f32 %v1050, %v1884
  %v2101 = vmax.f32 %v1052, %v1886
  %v2102 = vmax.f32 %v781, %v1615
  %v2103 = vmax.f32 %v783, %v1617
  %v2104 = vmax.f32 %v1054, %v1888
  %v2105 = vmax.f32 %v1056, %v1890
  %v2106 = vmax.f32 %v787, %v1621
  %v2107 = vmax.f32 %v789, %v1623
  %v2108 = vmax.f32 %v1060, %v1894
  %v2109 = vmax.f32 %v1062, %v1896
  %v2110 = vmax.f32 %v791, %v1625
  %v2111 = vmax.f32 %v793, %v1627
  %v2112 = vmax.f32 %v1064, %v1898
  %v2113 = vmax.f32 %v1066, %v1900
  %v2114 = vmax.f32 %v797, %v1631
  %v2115 = vmax.f32 %v799, %v1633
  %v2116 = vmax.f32 %v1070, %v1904
  %v2117 = vmax.f32 %v1072, %v1906
  %v2118 = vmax.f32 %v801, %v1635
  %v2119 = vmax.f32 %v803, %v1637
  %v2120 = vmax.f32 %v1074, %v1908
  %v2121 = vmax.f32 %v1076, %v1910
  %v2122 = vmax.f32 %v807, %v1641
  %v2123 = vmax.f32 %v809, %v1643
  %v2124 = vmax.f32 %v1080, %v1914
  %v2125 = vmax.f32 %v1082, %v1916
  %v2126 = vmax.f32 %v811, %v1645
  %v2127 = vmax.f32 %v813, %v1647
  %v2128 = vmax.f32 %v1084, %v1918
  %v2129 = vmax.f32 %v1086, %v1920
  %v2130 = vmax.f32 %v817, %v1651
  %v2131 = vmax.f32 %v819, %v1653
  %v2132 = vmax.f32 %v1090, %v1924
  %v2133 = vmax.f32 %v1092, %v1926
  %v2134 = vmax.f32 %v821, %v1655
  %v2135 = vmax.f32 %v823, %v1657
  %v2136 = vmax.f32 %v1094, %v1928
  %v2137 = vmax.f32 %v1096, %v1930
  %v2138 = vmax.f32 %v827, %v1661
  %v2139 = vmax.f32 %v829, %v1663
  %v2140 = vmax.f32 %v1100, %v1934
  %v2141 = vmax.f32 %v1102, %v1936
  %v2142 = vmax.f32 %v831, %v1665
  %v2143 = vmax.f32 %v833, %v1667
  %v2144 = vmax.f32 %v1104, %v1938
  %v2145 = vmax.f32 %v1106, %v1940
  %v2146 = vmax.f32 %v837, %v1671
  %v2147 = vmax.f32 %v839, %v1673
  %v2148 = vmax.f32 %v1110, %v1944
  %v2149 = vmax.f32 %v1112, %v1946
  %v2150 = vmax.f32 %v841, %v1675
  %v2151 = vmax.f32 %v843, %v1677
  %v2152 = vmax.f32 %v1114, %v1948
  %v2153 = vmax.f32 %v1116, %v1950
  %v2154 = vmax.f32 %v847, %v1681
  %v2155 = vmax.f32 %v849, %v1683
  %v2156 = vmax.f32 %v1120, %v1954
  %v2157 = vmax.f32 %v1122, %v1956
  %v2158 = vmax.f32 %v851, %v1685
  %v2159 = vmax.f32 %v853, %v1687
  %v2160 = vmax.f32 %v1124, %v1958
  %v2161 = vmax.f32 %v1126, %v1960
  %v2162 = vmax.f32 %v857, %v1691
  %v2163 = vmax.f32 %v859, %v1693
  %v2164 = vmax.f32 %v1130, %v1964
  %v2165 = vmax.f32 %v1132, %v1966
  %v2166 = vmax.f32 %v861, %v1695
  %v2167 = vmax.f32 %v863, %v1697
  %v2168 = vmax.f32 %v1134, %v1968
  %v2169 = vmax.f32 %v1136, %v1970
  %v2170 = vmax.f32 %v867, %v1701
  %v2171 = vmax.f32 %v869, %v1703
  %v2172 = vmax.f32 %v1140, %v1974
  %v2173 = vmax.f32 %v1142, %v1976
  %v2174 = vmax.f32 %v871, %v1705
  %v2175 = vmax.f32 %v873, %v1707
  %v2176 = vmax.f32 %v1144, %v1978
  %v2177 = vmax.f32 %v1146, %v1980
  %v2178 = vmax.f32 %v877, %v1711
  %v2179 = vmax.f32 %v879, %v1713
  %v2180 = vmax.f32 %v1150, %v1984
  %v2181 = vmax.f32 %v1152, %v1986
  %v2182 = vmax.f32 %v881, %v1715
  %v2183 = vmax.f32 %v883, %v1717
  %v2184 = vmax.f32 %v1154, %v1988
  %v2185 = vmax.f32 %v1156, %v1990
  %v2186 = vmax.f32 %v887, %v1721
  %v2187 = vmax.f32 %v889, %v1723
  %v2188 = vmax.f32 %v1160, %v1994
  %v2189 = vmax.f32 %v1162, %v1996
  %v2190 = vmax.f32 %v891, %v1725
  %v2191 = vmax.f32 %v893, %v1727
  %v2192 = vmax.f32 %v1164, %v1998
  %v2193 = vmax.f32 %v1166, %v2000
  %v2194 = vmax.f32 %v2002, %v2004
  %v2195 = vmax.f32 %v2003, %v2005
  %v2196 = vmax.f32 %v2006, %v2008
  %v2197 = vmax.f32 %v2007, %v2009
  %v2198 = vmax.f32 %v2010, %v2012
  %v2199 = vmax.f32 %v2011, %v2013
  %v2200 = vmax.f32 %v2014, %v2016
  %v2201 = vmax.f32 %v2015, %v2017
  %v2202 = vmax.f32 %v2018, %v2020
  %v2203 = vmax.f32 %v2019, %v2021
  %v2204 = vmax.f32 %v2022, %v2024
  %v2205 = vmax.f32 %v2023, %v2025
  %v2206 = vmax.f32 %v2026, %v2028
  %v2207 = vmax.f32 %v2027, %v2029
  %v2208 = vmax.f32 %v2030, %v2032
  %v2209 = vmax.f32 %v2031, %v2033
  %v2210 = vmax.f32 %v2034, %v2036
  %v2211 = vmax.f32 %v2035, %v2037
  %v2212 = vmax.f32 %v2038, %v2040
  %v2213 = vmax.f32 %v2039, %v2041
  %v2214 = vmax.f32 %v2042, %v2044
  %v2215 = vmax.f32 %v2043, %v2045
  %v2216 = vmax.f32 %v2046, %v2048
  %v2217 = vmax.f32 %v2047, %v2049
  %v2218 = vmax.f32 %v2050, %v2052
  %v2219 = vmax.f32 %v2051, %v2053
  %v2220 = vmax.f32 %v2054, %v2056
  %v2221 = vmax.f32 %v2055, %v2057
  %v2222 = vmax.f32 %v2058, %v2060
  %v2223 = vmax.f32 %v2059, %v2061
  %v2224 = vmax.f32 %v2062, %v2064
  %v2225 = vmax.f32 %v2063, %v2065
  %v2226 = vmax.f32 %v2066, %v2068
  %v2227 = vmax.f32 %v2067, %v2069
  %v2228 = vmax.f32 %v2070, %v2072
  %v2229 = vmax.f32 %v2071, %v2073
  %v2230 = vmax.f32 %v2074, %v2076
  %v2231 = vmax.f32 %v2075, %v2077
  %v2232 = vmax.f32 %v2078, %v2080
  %v2233 = vmax.f32 %v2079, %v2081
  %v2234 = vmax.f32 %v2082, %v2084
  %v2235 = vmax.f32 %v2083, %v2085
  %v2236 = vmax.f32 %v2086, %v2088
  %v2237 = vmax.f32 %v2087, %v2089
  %v2238 = vmax.f32 %v2090, %v2092
  %v2239 = vmax.f32 %v2091, %v2093
  %v2240 = vmax.f32 %v2094, %v2096
  %v2241 = vmax.f32 %v2095, %v2097
  %v2242 = vmax.f32 %v2098, %v2100
  %v2243 = vmax.f32 %v2099, %v2101
  %v2244 = vmax.f32 %v2102, %v2104
  %v2245 = vmax.f32 %v2103, %v2105
  %v2246 = vmax.f32 %v2106, %v2108
  %v2247 = vmax.f32 %v2107, %v2109
  %v2248 = vmax.f32 %v2110, %v2112
  %v2249 = vmax.f32 %v2111, %v2113
  %v2250 = vmax.f32 %v2114, %v2116
  %v2251 = vmax.f32 %v2115, %v2117
  %v2252 = vmax.f32 %v2118, %v2120
  %v2253 = vmax.f32 %v2119, %v2121
  %v2254 = vmax.f32 %v2122, %v2124
  %v2255 = vmax.f32 %v2123, %v2125
  %v2256 = vmax.f32 %v2126, %v2128
  %v2257 = vmax.f32 %v2127, %v2129
  %v2258 = vmax.f32 %v2130, %v2132
  %v2259 = vmax.f32 %v2131, %v2133
  %v2260 = vmax.f32 %v2134, %v2136
  %v2261 = vmax.f32 %v2135, %v2137
  %v2262 = vmax.f32 %v2138, %v2140
  %v2263 = vmax.f32 %v2139, %v2141
  %v2264 = vmax.f32 %v2142, %v2144
  %v2265 = vmax.f32 %v2143, %v2145
  %v2266 = vmax.f32 %v2146, %v2148
  %v2267 = vmax.f32 %v2147, %v2149
  %v2268 = vmax.f32 %v2150, %v2152
  %v2269 = vmax.f32 %v2151, %v2153
  %v2270 = vmax.f32 %v2154, %v2156
  %v2271 = vmax.f32 %v2155, %v2157
  %v2272 = vmax.f32 %v2158, %v2160
  %v2273 = vmax.f32 %v2159, %v2161
  %v2274 = vmax.f32 %v2162, %v2164
  %v2275 = vmax.f32 %v2163, %v2165
  %v2276 = vmax.f32 %v2166, %v2168
  %v2277 = vmax.f32 %v2167, %v2169
  %v2278 = vmax.f32 %v2170, %v2172
  %v2279 = vmax.f32 %v2171, %v2173
  %v2280 = vmax.f32 %v2174, %v2176
  %v2281 = vmax.f32 %v2175, %v2177
  %v2282 = vmax.f32 %v2178, %v2180
  %v2283 = vmax.f32 %v2179, %v2181
  %v2284 = vmax.f32 %v2182, %v2184
  %v2285 = vmax.f32 %v2183, %v2185
  %v2286 = vmax.f32 %v2186, %v2188
  %v2287 = vmax.f32 %v2187, %v2189
  %v2288 = vmax.f32 %v2190, %v2192
  %v2289 = vmax.f32 %v2191, %v2193
  %v2290 = vmax.f32 %v2194, 0.0
  %v2291 = vmax.f32 %v2195, 0.0
  %v2292 = vmax.f32 %v2196, 0.0
  %v2293 = vmax.f32 %v2197, 0.0
  %v2294 = vmax.f32 %v2198, 0.0
  %v2295 = vmax.f32 %v2199, 0.0
  %v2296 = vmax.f32 %v2200, 0.0
  %v2297 = vmax.f32 %v2201, 0.0
  %v2298 = vmax.f32 %v2202, 0.0
  %v2299 = vmax.f32 %v2203, 0.0
  %v2300 = vmax.f32 %v2204, 0.0
  %v2301 = vmax.f32 %v2205, 0.0
  %v2302 = vmax.f32 %v2206, 0.0
  %v2303 = vmax.f32 %v2207, 0.0
  %v2304 = vmax.f32 %v2208, 0.0
  %v2305 = vmax.f32 %v2209, 0.0
  %v2306 = vmax.f32 %v2210, 0.0
  %v2307 = vmax.f32 %v2211, 0.0
  %v2308 = vmax.f32 %v2212, 0.0
  %v2309 = vmax.f32 %v2213, 0.0
  %v2310 = vmax.f32 %v2214, 0.0
  %v2311 = vmax.f32 %v2215, 0.0
  %v2312 = vmax.f32 %v2216, 0.0
  %v2313 = vmax.f32 %v2217, 0.0
  %v2314 = vmax.f32 %v2218, 0.0
  %v2315 = vmax.f32 %v2219, 0.0
  %v2316 = vmax.f32 %v2220, 0.0
  %v2317 = vmax.f32 %v2221, 0.0
  %v2318 = vmax.f32 %v2222, 0.0
  %v2319 = vmax.f32 %v2223, 0.0
  %v2320 = vmax.f32 %v2224, 0.0
  %v2321 = vmax.f32 %v2225, 0.0
  %v2322 = vmax.f32 %v2226, 0.0
  %v2323 = vmax.f32 %v2227, 0.0
  %v2324 = vmax.f32 %v2228, 0.0
  %v2325 = vmax.f32 %v2229, 0.0
  %v2326 = vmax.f32 %v2230, 0.0
  %v2327 = vmax.f32 %v2231, 0.0
  %v2328 = vmax.f32 %v2232, 0.0
  %v2329 = vmax.f32 %v2233, 0.0
  %v2330 = vmax.f32 %v2234, 0.0
  %v2331 = vmax.f32 %v2235, 0.0
  %v2332 = vmax.f32 %v2236, 0.0
  %v2333 = vmax.f32 %v2237, 0.0
  %v2334 = vmax.f32 %v2238, 0.0
  %v2335 = vmax.f32 %v2239, 0.0
  %v2336 = vmax.f32 %v2240, 0.0
  %v2337 = vmax.f32 %v2241, 0.0
  %v2338 = vmax.f32 %v2242, 0.0
  %v2339 = vmax.f32 %v2243, 0.0
  %v2340 = vmax.f32 %v2244, 0.0
  %v2341 = vmax.f32 %v2245, 0.0
  %v2342 = vmax.f32 %v2246, 0.0
  %v2343 = vmax.f32 %v2247, 0.0
  %v2344 = vmax.f32 %v2248, 0.0
  %v2345 = vmax.f32 %v2249, 0.0
  %v2346 = vmax.f32 %v2250, 0.0
  %v2347 = vmax.f32 %v2251, 0.0
  %v2348 = vmax.f32 %v2252, 0.0
  %v2349 = vmax.f32 %v2253, 0.0
  %v2350 = vmax.f32 %v2254, 0.0
  %v2351 = vmax.f32 %v2255, 0.0
  %v2352 = vmax.f32 %v2256, 0.0
  %v2353 = vmax.f32 %v2257, 0.0
  %v2354 = vmax.f32 %v2258, 0.0
  %v2355 = vmax.f32 %v2259, 0.0
  %v2356 = vmax.f32 %v2260, 0.0
  %v2357 = vmax.f32 %v2261, 0.0
  %v2358 = vmax.f32 %v2262, 0.0
  %v2359 = vmax.f32 %v2263, 0.0
  %v2360 = vmax.f32 %v2264, 0.0
  %v2361 = vmax.f32 %v2265, 0.0
  %v2362 = vmax.f32 %v2266, 0.0
  %v2363 = vmax.f32 %v2267, 0.0
  %v2364 = vmax.f32 %v2268, 0.0
  %v2365 = vmax.f32 %v2269, 0.0
  %v2366 = vmax.f32 %v2270, 0.0
  %v2367 = vmax.f32 %v2271, 0.0
  %v2368 = vmax.f32 %v2272, 0.0
  %v2369 = vmax.f32 %v2273, 0.0
  %v2370 = vmax.f32 %v2274, 0.0
  %v2371 = vmax.f32 %v2275, 0.0
  %v2372 = vmax.f32 %v2276, 0.0
  %v2373 = vmax.f32 %v2277, 0.0
  %v2374 = vmax.f32 %v2278, 0.0
  %v2375 = vmax.f32 %v2279, 0.0
  %v2376 = vmax.f32 %v2280, 0.0
  %v2377 = vmax.f32 %v2281, 0.0
  %v2378 = vmax.f32 %v2282, 0.0
  %v2379 = vmax.f32 %v2283, 0.0
  %v2380 = vmax.f32 %v2284, 0.0
  %v2381 = vmax.f32 %v2285, 0.0
  %v2382 = vmax.f32 %v2286, 0.0
  %v2383 = vmax.f32 %v2287, 0.0
  %v2384 = vmax.f32 %v2288, 0.0
  %v2385 = vmax.f32 %v2289, 0.0
  %v2386 = vpack.c.bf16 %v2292, %v2290
  %v2387 = vpack.c.bf16 %v2293, %v2291
  %v2388 = vpack.c.bf16 %v2296, %v2294
  %v2389 = vpack.c.bf16 %v2297, %v2295
  %v2390 = vpack.c.bf16 %v2300, %v2298
  %v2391 = vpack.c.bf16 %v2301, %v2299
  %v2392 = vpack.c.bf16 %v2304, %v2302
  %v2393 = vpack.c.bf16 %v2305, %v2303
  %v2394 = vpack.c.bf16 %v2308, %v2306
  %v2395 = vpack.c.bf16 %v2309, %v2307
  %v2396 = vpack.c.bf16 %v2312, %v2310
  %v2397 = vpack.c.bf16 %v2313, %v2311
  %v2398 = vpack.c.bf16 %v2316, %v2314
  %v2399 = vpack.c.bf16 %v2317, %v2315
  %v2400 = vpack.c.bf16 %v2320, %v2318
  %v2401 = vpack.c.bf16 %v2321, %v2319
  %v2402 = vpack.c.bf16 %v2324, %v2322
  %v2403 = vpack.c.bf16 %v2325, %v2323
  %v2404 = vpack.c.bf16 %v2328, %v2326
  %v2405 = vpack.c.bf16 %v2329, %v2327
  %v2406 = vpack.c.bf16 %v2332, %v2330
  %v2407 = vpack.c.bf16 %v2333, %v2331
  %v2408 = vpack.c.bf16 %v2336, %v2334
  %v2409 = vpack.c.bf16 %v2337, %v2335
  %v2410 = vpack.c.bf16 %v2340, %v2338
  %v2411 = vpack.c.bf16 %v2341, %v2339
  %v2412 = vpack.c.bf16 %v2344, %v2342
  %v2413 = vpack.c.bf16 %v2345, %v2343
  %v2414 = vpack.c.bf16 %v2348, %v2346
  %v2415 = vpack.c.bf16 %v2349, %v2347
  %v2416 = vpack.c.bf16 %v2352, %v2350
  %v2417 = vpack.c.bf16 %v2353, %v2351
  %v2418 = vpack.c.bf16 %v2356, %v2354
  %v2419 = vpack.c.bf16 %v2357, %v2355
  %v2420 = vpack.c.bf16 %v2360, %v2358
  %v2421 = vpack.c.bf16 %v2361, %v2359
  %v2422 = vpack.c.bf16 %v2364, %v2362
  %v2423 = vpack.c.bf16 %v2365, %v2363
  %v2424 = vpack.c.bf16 %v2368, %v2366
  %v2425 = vpack.c.bf16 %v2369, %v2367
  %v2426 = vpack.c.bf16 %v2372, %v2370
  %v2427 = vpack.c.bf16 %v2373, %v2371
  %v2428 = vpack.c.bf16 %v2376, %v2374
  %v2429 = vpack.c.bf16 %v2377, %v2375
  %v2430 = vpack.c.bf16 %v2380, %v2378
  %v2431 = vpack.c.bf16 %v2381, %v2379
  %v2432 = vpack.c.bf16 %v2384, %v2382
  %v2433 = vpack.c.bf16 %v2385, %v2383
  %2434 = vst [vmem:[#allocation2] sm:$0xff] %v2386
  %2435 = vst [vmem:[#allocation2 + $0x8] sm:$0xff] %v2387
  %2436 = vst [vmem:[#allocation2 + $0x10] sm:$0xff] %v2388
  %2437 = vst [vmem:[#allocation2 + $0x18] sm:$0xff] %v2389
  %2438 = vst [vmem:[#allocation2 + $0x20] sm:$0xff] %v2390
  %2439 = vst [vmem:[#allocation2 + $0x28] sm:$0xff] %v2391
  %2440 = vst [vmem:[#allocation2 + $0x30] sm:$0xff] %v2392
  %2441 = vst [vmem:[#allocation2 + $0x38] sm:$0xff] %v2393
  %2442 = vst [vmem:[#allocation2 + $0x40] sm:$0xff] %v2394
  %2443 = vst [vmem:[#allocation2 + $0x48] sm:$0xff] %v2395
  %2444 = vst [vmem:[#allocation2 + $0x50] sm:$0xff] %v2396
  %2445 = vst [vmem:[#allocation2 + $0x58] sm:$0xff] %v2397
  %2446 = vst [vmem:[#allocation2 + $0x60] sm:$0xff] %v2398
  %2447 = vst [vmem:[#allocation2 + $0x68] sm:$0xff] %v2399
  %2448 = vst [vmem:[#allocation2 + $0x70] sm:$0xff] %v2400
  %2449 = vst [vmem:[#allocation2 + $0x78] sm:$0xff] %v2401
  %2450 = vst [vmem:[#allocation2 + $0x80] sm:$0xff] %v2402
  %2451 = vst [vmem:[#allocation2 + $0x88] sm:$0xff] %v2403
  %2452 = vst [vmem:[#allocation2 + $0x90] sm:$0xff] %v2404
  %2453 = vst [vmem:[#allocation2 + $0x98] sm:$0xff] %v2405
  %2454 = vst [vmem:[#allocation2 + $0xa0] sm:$0xff] %v2406
  %2455 = vst [vmem:[#allocation2 + $0xa8] sm:$0xff] %v2407
  %2456 = vst [vmem:[#allocation2 + $0xb0] sm:$0xff] %v2408
  %2457 = vst [vmem:[#allocation2 + $0xb8] sm:$0xff] %v2409
  %2458 = vst [vmem:[#allocation2 + $0xc0] sm:$0xff] %v2410
  %2459 = vst [vmem:[#allocation2 + $0xc8] sm:$0xff] %v2411
  %2460 = vst [vmem:[#allocation2 + $0xd0] sm:$0xff] %v2412
  %2461 = vst [vmem:[#allocation2 + $0xd8] sm:$0xff] %v2413
  %2462 = vst [vmem:[#allocation2 + $0xe0] sm:$0xff] %v2414
  %2463 = vst [vmem:[#allocation2 + $0xe8] sm:$0xff] %v2415
  %2464 = vst [vmem:[#allocation2 + $0xf0] sm:$0xff] %v2416
  %2465 = vst [vmem:[#allocation2 + $0xf8] sm:$0xff] %v2417
  %2466 = vst [vmem:[#allocation2 + $0x100] sm:$0xff] %v2418
  %2467 = vst [vmem:[#allocation2 + $0x108] sm:$0xff] %v2419
  %2468 = vst [vmem:[#allocation2 + $0x110] sm:$0xff] %v2420
  %2469 = vst [vmem:[#allocation2 + $0x118] sm:$0xff] %v2421
  %2470 = vst [vmem:[#allocation2 + $0x120] sm:$0xff] %v2422
  %2471 = vst [vmem:[#allocation2 + $0x128] sm:$0xff] %v2423
  %2472 = vst [vmem:[#allocation2 + $0x130] sm:$0xff] %v2424
  %2473 = vst [vmem:[#allocation2 + $0x138] sm:$0xff] %v2425
  %2474 = vst [vmem:[#allocation2 + $0x140] sm:$0xff] %v2426
  %2475 = vst [vmem:[#allocation2 + $0x148] sm:$0xff] %v2427
  %2476 = vst [vmem:[#allocation2 + $0x150] sm:$0xff] %v2428
  %2477 = vst [vmem:[#allocation2 + $0x158] sm:$0xff] %v2429
  %2478 = vst [vmem:[#allocation2 + $0x160] sm:$0xff] %v2430
  %2479 = vst [vmem:[#allocation2 + $0x168] sm:$0xff] %v2431
  %2480 = vst [vmem:[#allocation2 + $0x170] sm:$0xff] %v2432
  %2481 = vst [vmem:[#allocation2 + $0x178] sm:$0xff] %v2433
  %v2482 = vld [vmem:[#allocation2] sm:$0xff]
  %v2483 = vld [vmem:[#allocation2 + $0x8] sm:$0xff]
  %v2484 = vld [vmem:[#allocation2 + $0x10] sm:$0xff]
  %v2485 = vld [vmem:[#allocation2 + $0x18] sm:$0xff]
  %v2486 = vld [vmem:[#allocation2 + $0x20] sm:$0xff]
  %v2487 = vld [vmem:[#allocation2 + $0x28] sm:$0xff]
  %v2488 = vld [vmem:[#allocation2 + $0x30] sm:$0xff]
  %v2489 = vld [vmem:[#allocation2 + $0x38] sm:$0xff]
  %v2490 = vld [vmem:[#allocation2 + $0x40] sm:$0xff]
  %v2491 = vld [vmem:[#allocation2 + $0x48] sm:$0xff]
  %v2492 = vld [vmem:[#allocation2 + $0x50] sm:$0xff]
  %v2493 = vld [vmem:[#allocation2 + $0x58] sm:$0xff]
  %v2494 = vld [vmem:[#allocation2 + $0x60] sm:$0xff]
  %v2495 = vld [vmem:[#allocation2 + $0x68] sm:$0xff]
  %v2496 = vld [vmem:[#allocation2 + $0x70] sm:$0xff]
  %v2497 = vld [vmem:[#allocation2 + $0x78] sm:$0xff]
  %v2498 = vld [vmem:[#allocation2 + $0x80] sm:$0xff]
  %v2499 = vld [vmem:[#allocation2 + $0x88] sm:$0xff]
  %v2500 = vld [vmem:[#allocation2 + $0x90] sm:$0xff]
  %v2501 = vld [vmem:[#allocation2 + $0x98] sm:$0xff]
  %v2502 = vld [vmem:[#allocation2 + $0xa0] sm:$0xff]
  %v2503 = vld [vmem:[#allocation2 + $0xa8] sm:$0xff]
  %v2504 = vld [vmem:[#allocation2 + $0xb0] sm:$0xff]
  %v2505 = vld [vmem:[#allocation2 + $0xb8] sm:$0xff]
  %v2506 = vld [vmem:[%s2] sm:$0xff]
  %v2507 = vld [vmem:[%s2 + $0x8] sm:$0xff]
  %v2508 = vld [vmem:[%s2 + $0x10] sm:$0xff]
  %v2509 = vld [vmem:[%s2 + $0x18] sm:$0xff]
  %v2510 = vld [vmem:[%s2 + $0x20] sm:$0xff]
  %v2511 = vld [vmem:[%s2 + $0x28] sm:$0xff]
  %v2512 = vld [vmem:[%s2 + $0x30] sm:$0xff]
  %v2513 = vld [vmem:[%s2 + $0x38] sm:$0xff]
  %v2514 = vld [vmem:[%s2 + $0x40] sm:$0xff]
  %v2515 = vld [vmem:[%s2 + $0x48] sm:$0xff]
  %v2516 = vld [vmem:[%s2 + $0x50] sm:$0xff]
  %v2517 = vld [vmem:[%s2 + $0x58] sm:$0xff]
  %v2518 = vld [vmem:[%s2 + $0x60] sm:$0xff]
  %v2519 = vld [vmem:[%s2 + $0x68] sm:$0xff]
  %v2520 = vld [vmem:[%s2 + $0x70] sm:$0xff]
  %v2521 = vld [vmem:[%s2 + $0x78] sm:$0xff]
  %v2522 = vld [vmem:[%s2 + $0x80] sm:$0xff]
  %v2523 = vld [vmem:[%s2 + $0x88] sm:$0xff]
  %v2524 = vld [vmem:[%s2 + $0x90] sm:$0xff]
  %v2525 = vld [vmem:[%s2 + $0x98] sm:$0xff]
  %v2526 = vld [vmem:[%s2 + $0xa0] sm:$0xff]
  %v2527 = vld [vmem:[%s2 + $0xa8] sm:$0xff]
  %v2528 = vld [vmem:[%s2 + $0xb0] sm:$0xff]
  %v2529 = vld [vmem:[%s2 + $0xb8] sm:$0xff]
  %v2530 = vld [vmem:[%s2 + $0xc0] sm:$0xff]
  %v2531 = vld [vmem:[%s2 + $0xc8] sm:$0xff]
  %v2532 = vld [vmem:[%s2 + $0xd0] sm:$0xff]
  %v2533 = vld [vmem:[%s2 + $0xd8] sm:$0xff]
  %v2534 = vld [vmem:[%s2 + $0xe0] sm:$0xff]
  %v2535 = vld [vmem:[%s2 + $0xe8] sm:$0xff]
  %v2536 = vld [vmem:[%s2 + $0xf0] sm:$0xff]
  %v2537 = vld [vmem:[%s2 + $0xf8] sm:$0xff]
  %v2538 = vld [vmem:[#allocation2 + $0xc0] sm:$0xff]
  %v2539 = vld [vmem:[#allocation2 + $0xc8] sm:$0xff]
  %v2540 = vld [vmem:[#allocation2 + $0xd0] sm:$0xff]
  %v2541 = vld [vmem:[#allocation2 + $0xd8] sm:$0xff]
  %s2542 = scalar_lea.vmem %s2, 256
  %v2543 = vld [vmem:[%s2542] sm:$0xff]
  %v2544 = vld [vmem:[%s2542 + $0x8] sm:$0xff]
  %v2545 = vld [vmem:[%s2542 + $0x10] sm:$0xff]
  %v2546 = vld [vmem:[%s2542 + $0x18] sm:$0xff]
  %v2547 = vld [vmem:[%s2542 + $0x20] sm:$0xff]
  %v2548 = vld [vmem:[%s2542 + $0x28] sm:$0xff]
  %v2549 = vld [vmem:[%s2542 + $0x30] sm:$0xff]
  %v2550 = vld [vmem:[%s2542 + $0x38] sm:$0xff]
  %v2551 = vld [vmem:[%s2542 + $0x40] sm:$0xff]
  %v2552 = vld [vmem:[%s2542 + $0x48] sm:$0xff]
  %v2553 = vld [vmem:[%s2542 + $0x50] sm:$0xff]
  %v2554 = vld [vmem:[%s2542 + $0x58] sm:$0xff]
  %v2555 = vld [vmem:[%s2542 + $0x60] sm:$0xff]
  %v2556 = vld [vmem:[%s2542 + $0x68] sm:$0xff]
  %v2557 = vld [vmem:[%s2542 + $0x70] sm:$0xff]
  %v2558 = vld [vmem:[%s2542 + $0x78] sm:$0xff]
  %v2559 = vld [vmem:[%s2542 + $0x80] sm:$0xff]
  %v2560 = vld [vmem:[%s2542 + $0x88] sm:$0xff]
  %v2561 = vld [vmem:[%s2542 + $0x90] sm:$0xff]
  %v2562 = vld [vmem:[%s2542 + $0x98] sm:$0xff]
  %v2563 = vld [vmem:[%s2542 + $0xa0] sm:$0xff]
  %v2564 = vld [vmem:[%s2542 + $0xa8] sm:$0xff]
  %v2565 = vld [vmem:[%s2542 + $0xb0] sm:$0xff]
  %v2566 = vld [vmem:[%s2542 + $0xb8] sm:$0xff]
  %v2567 = vld [vmem:[%s2542 + $0xc0] sm:$0xff]
  %v2568 = vld [vmem:[%s2542 + $0xc8] sm:$0xff]
  %v2569 = vld [vmem:[%s2542 + $0xd0] sm:$0xff]
  %v2570 = vld [vmem:[%s2542 + $0xd8] sm:$0xff]
  %v2571 = vld [vmem:[%s2542 + $0xe0] sm:$0xff]
  %v2572 = vld [vmem:[%s2542 + $0xe8] sm:$0xff]
  %v2573 = vld [vmem:[%s2542 + $0xf0] sm:$0xff]
  %v2574 = vld [vmem:[%s2542 + $0xf8] sm:$0xff]
  %v2607 = vunpack.c.l.b16 %v2543
  %v2608 = vunpack.c.h.b16 %v2543
  %v2609 = vunpack.c.l.b16 %v2544
  %v2610 = vunpack.c.h.b16 %v2544
  %v2611 = vunpack.c.l.b16 %v2545
  %v2612 = vunpack.c.h.b16 %v2545
  %v2613 = vunpack.c.l.b16 %v2546
  %v2614 = vunpack.c.h.b16 %v2546
  %v2615 = vunpack.c.l.b16 %v2547
  %v2616 = vunpack.c.h.b16 %v2547
  %v2617 = vunpack.c.l.b16 %v2548
  %v2618 = vunpack.c.h.b16 %v2548
  %v2619 = vunpack.c.l.b16 %v2549
  %v2620 = vunpack.c.h.b16 %v2549
  %v2621 = vunpack.c.l.b16 %v2550
  %v2622 = vunpack.c.h.b16 %v2550
  %v2623 = vunpack.c.l.b16 %v2551
  %v2624 = vunpack.c.h.b16 %v2551
  %v2625 = vunpack.c.l.b16 %v2552
  %v2626 = vunpack.c.h.b16 %v2552
  %v2627 = vunpack.c.l.b16 %v2553
  %v2628 = vunpack.c.h.b16 %v2553
  %v2629 = vunpack.c.l.b16 %v2554
  %v2630 = vunpack.c.h.b16 %v2554
  %v2631 = vunpack.c.l.b16 %v2555
  %v2632 = vunpack.c.h.b16 %v2555
  %v2633 = vunpack.c.l.b16 %v2556
  %v2634 = vunpack.c.h.b16 %v2556
  %v2635 = vunpack.c.l.b16 %v2557
  %v2636 = vunpack.c.h.b16 %v2557
  %v2637 = vunpack.c.l.b16 %v2558
  %v2638 = vunpack.c.h.b16 %v2558
  %v2639 = vunpack.c.l.b16 %v2559
  %v2640 = vunpack.c.h.b16 %v2559
  %v2641 = vunpack.c.l.b16 %v2560
  %v2642 = vunpack.c.h.b16 %v2560
  %v2643 = vunpack.c.l.b16 %v2561
  %v2644 = vunpack.c.h.b16 %v2561
  %v2645 = vunpack.c.l.b16 %v2562
  %v2646 = vunpack.c.h.b16 %v2562
  %v2647 = vunpack.c.l.b16 %v2563
  %v2648 = vunpack.c.h.b16 %v2563
  %v2649 = vunpack.c.l.b16 %v2564
  %v2650 = vunpack.c.h.b16 %v2564
  %v2651 = vunpack.c.l.b16 %v2565
  %v2652 = vunpack.c.h.b16 %v2565
  %v2653 = vunpack.c.l.b16 %v2566
  %v2654 = vunpack.c.h.b16 %v2566
  %v2655 = vunpack.c.l.b16 %v2567
  %v2656 = vunpack.c.h.b16 %v2567
  %v2657 = vunpack.c.l.b16 %v2568
  %v2658 = vunpack.c.h.b16 %v2568
  %v2659 = vunpack.c.l.b16 %v2569
  %v2660 = vunpack.c.h.b16 %v2569
  %v2661 = vunpack.c.l.b16 %v2570
  %v2662 = vunpack.c.h.b16 %v2570
  %v2663 = vunpack.c.l.b16 %v2571
  %v2664 = vunpack.c.h.b16 %v2571
  %v2665 = vunpack.c.l.b16 %v2572
  %v2666 = vunpack.c.h.b16 %v2572
  %v2667 = vunpack.c.l.b16 %v2573
  %v2668 = vunpack.c.h.b16 %v2573
  %v2669 = vunpack.c.l.b16 %v2574
  %v2670 = vunpack.c.h.b16 %v2574
  %v2671 = vpack.c.b16 %v2609, %v2607
  %v2672 = vpack.c.b16 %v2610, %v2608
  %v2673 = vpack.c.b16 %v2613, %v2611
  %v2674 = vpack.c.b16 %v2614, %v2612
  %v2675 = vpack.c.b16 %v2617, %v2615
  %v2676 = vpack.c.b16 %v2618, %v2616
  %v2677 = vpack.c.b16 %v2621, %v2619
  %v2678 = vpack.c.b16 %v2622, %v2620
  %v2679 = vpack.c.b16 %v2625, %v2623
  %v2680 = vpack.c.b16 %v2626, %v2624
  %v2681 = vpack.c.b16 %v2629, %v2627
  %v2682 = vpack.c.b16 %v2630, %v2628
  %v2683 = vpack.c.b16 %v2633, %v2631
  %v2684 = vpack.c.b16 %v2634, %v2632
  %v2685 = vpack.c.b16 %v2637, %v2635
  %v2686 = vpack.c.b16 %v2638, %v2636
  %v2687 = vpack.c.b16 %v2641, %v2639
  %v2688 = vpack.c.b16 %v2642, %v2640
  %v2689 = vpack.c.b16 %v2645, %v2643
  %v2690 = vpack.c.b16 %v2646, %v2644
  %v2691 = vpack.c.b16 %v2649, %v2647
  %v2692 = vpack.c.b16 %v2650, %v2648
  %v2693 = vpack.c.b16 %v2653, %v2651
  %v2694 = vpack.c.b16 %v2654, %v2652
  %v2695 = vpack.c.b16 %v2657, %v2655
  %v2696 = vpack.c.b16 %v2658, %v2656
  %v2697 = vpack.c.b16 %v2661, %v2659
  %v2698 = vpack.c.b16 %v2662, %v2660
  %v2699 = vpack.c.b16 %v2665, %v2663
  %v2700 = vpack.c.b16 %v2666, %v2664
  %v2701 = vpack.c.b16 %v2669, %v2667
  %v2702 = vpack.c.b16 %v2670, %v2668
  %2735 = vmatprep.subr.bf16.mxu0 %v2672
  %2736 = vmatpush1.bf16.msra.mxu0 %v2671
  %2737 = vmatprep.subr.bf16.mxu0 %v2674
  %2738 = vmatpush1.bf16.msra.mxu0 %v2673
  %2739 = vmatprep.subr.bf16.mxu0 %v2676
  %2740 = vmatpush1.bf16.msra.mxu0 %v2675
  %2741 = vmatprep.subr.bf16.mxu0 %v2678
  %2742 = vmatpush1.bf16.msra.mxu0 %v2677
  %2743 = vmatprep.subr.bf16.mxu0 %v2680
  %2744 = vmatpush1.bf16.msra.mxu0 %v2679
  %2745 = vmatprep.subr.bf16.mxu0 %v2682
  %2746 = vmatpush1.bf16.msra.mxu0 %v2681
  %2747 = vmatprep.subr.bf16.mxu0 %v2684
  %2748 = vmatpush1.bf16.msra.mxu0 %v2683
  %2749 = vmatprep.subr.bf16.mxu0 %v2686
  %2750 = vmatpush1.bf16.msra.mxu0 %v2685
  %2751 = vmatprep.subr.bf16.mxu0 %v2688
  %2752 = vmatpush1.bf16.msra.mxu0 %v2687
  %2753 = vmatprep.subr.bf16.mxu0 %v2690
  %2754 = vmatpush1.bf16.msra.mxu0 %v2689
  %2755 = vmatprep.subr.bf16.mxu0 %v2692
  %2756 = vmatpush1.bf16.msra.mxu0 %v2691
  %2757 = vmatprep.subr.bf16.mxu0 %v2694
  %2758 = vmatpush1.bf16.msra.mxu0 %v2693
  %2759 = vmatprep.subr.bf16.mxu0 %v2696
  %2760 = vmatpush1.bf16.msra.mxu0 %v2695
  %2761 = vmatprep.subr.bf16.mxu0 %v2698
  %2762 = vmatpush1.bf16.msra.mxu0 %v2697
  %2763 = vmatprep.subr.bf16.mxu0 %v2700
  %2764 = vmatpush1.bf16.msra.mxu0 %v2699
  %2765 = vmatprep.subr.bf16.mxu0 %v2702
  %2766 = vmatpush1.bf16.msra.mxu0 %v2701
  %2767 = vmatprep.mubr.bf16.mxu0 %v2487
  %2768 = vmatmul.mubr.bf16.gmra.mrb[0].mxu0 %v2486
  %v2769 = vpop.f32.mrb[0].mxu0
  %v2770 = vadd.f32 0.0, %v2769
  %v2771 = vpop.f32.mrb[0].mxu0
  %v2772 = vadd.f32 0.0, %v2771
  %v2773 = vpop.f32.mrb[0].mxu0
  %v2774 = vadd.f32 0.0, %v2773
  %v2775 = vpop.f32.mrb[0].mxu0
  %v2776 = vadd.f32 0.0, %v2775
  %2777 = vmatprep.mubr.bf16.mxu0 %v2489
  %2778 = vmatmul.mubr.bf16.gmra.mrb[0].mxu0 %v2488
  %v2779 = vpop.f32.mrb[0].mxu0
  %v2780 = vadd.f32 0.0, %v2779
  %v2781 = vpop.f32.mrb[0].mxu0
  %v2782 = vadd.f32 0.0, %v2781
  %v2783 = vpop.f32.mrb[0].mxu0
  %v2784 = vadd.f32 0.0, %v2783
  %v2785 = vpop.f32.mrb[0].mxu0
  %v2786 = vadd.f32 0.0, %v2785
  %2787 = vmatprep.mubr.bf16.mxu0 %v2491
  %2788 = vmatmul.mubr.bf16.gmra.mrb[0].mxu0 %v2490
  %v2789 = vpop.f32.mrb[0].mxu0
  %v2790 = vadd.f32 0.0, %v2789
  %v2791 = vpop.f32.mrb[0].mxu0
  %v2792 = vadd.f32 0.0, %v2791
  %v2793 = vpop.f32.mrb[0].mxu0
  %v2794 = vadd.f32 0.0, %v2793
  %v2795 = vpop.f32.mrb[0].mxu0
  %v2796 = vadd.f32 0.0, %v2795
  %2797 = vmatprep.mubr.bf16.mxu0 %v2493
  %2798 = vmatmul.mubr.bf16.gmra.mrb[0].mxu0 %v2492
  %v2799 = vpop.f32.mrb[0].mxu0
  %v2800 = vadd.f32 0.0, %v2799
  %v2801 = vpop.f32.mrb[0].mxu0
  %v2802 = vadd.f32 0.0, %v2801
  %v2803 = vpop.f32.mrb[0].mxu0
  %v2804 = vadd.f32 0.0, %v2803
  %v2805 = vpop.f32.mrb[0].mxu0
  %v2806 = vadd.f32 0.0, %v2805
  %2807 = vmatprep.mubr.bf16.mxu0 %v2495
  %2808 = vmatmul.mubr.bf16.gmra.mrb[0].mxu0 %v2494
  %v2809 = vpop.f32.mrb[0].mxu0
  %v2810 = vadd.f32 0.0, %v2809
  %v2811 = vpop.f32.mrb[0].mxu0
  %v2812 = vadd.f32 0.0, %v2811
  %v2813 = vpop.f32.mrb[0].mxu0
  %v2814 = vadd.f32 0.0, %v2813
  %v2815 = vpop.f32.mrb[0].mxu0
  %v2816 = vadd.f32 0.0, %v2815
  %2817 = vmatprep.mubr.bf16.mxu0 %v2497
  %2818 = vmatmul.mubr.bf16.gmra.mrb[0].mxu0 %v2496
  %v2819 = vpop.f32.mrb[0].mxu0
  %v2820 = vadd.f32 0.0, %v2819
  %v2821 = vpop.f32.mrb[0].mxu0
  %v2822 = vadd.f32 0.0, %v2821
  %v2823 = vpop.f32.mrb[0].mxu0
  %v2824 = vadd.f32 0.0, %v2823
  %v2825 = vpop.f32.mrb[0].mxu0
  %v2826 = vadd.f32 0.0, %v2825
  %2827 = vmatprep.mubr.bf16.mxu0 %v2499
  %2828 = vmatmul.mubr.bf16.gmra.mrb[0].mxu0 %v2498
  %v2829 = vpop.f32.mrb[0].mxu0
  %v2830 = vadd.f32 0.0, %v2829
  %v2831 = vpop.f32.mrb[0].mxu0
  %v2832 = vadd.f32 0.0, %v2831
  %v2833 = vpop.f32.mrb[0].mxu0
  %v2834 = vadd.f32 0.0, %v2833
  %v2835 = vpop.f32.mrb[0].mxu0
  %v2836 = vadd.f32 0.0, %v2835
  %2837 = vmatprep.mubr.bf16.mxu0 %v2501
  %2838 = vmatmul.mubr.bf16.gmra.mrb[0].mxu0 %v2500
  %v2839 = vpop.f32.mrb[0].mxu0
  %v2840 = vadd.f32 0.0, %v2839
  %v2841 = vpop.f32.mrb[0].mxu0
  %v2842 = vadd.f32 0.0, %v2841
  %v2843 = vpop.f32.mrb[0].mxu0
  %v2844 = vadd.f32 0.0, %v2843
  %v2845 = vpop.f32.mrb[0].mxu0
  %v2846 = vadd.f32 0.0, %v2845
  %2847 = vmatprep.mubr.bf16.mxu0 %v2503
  %2848 = vmatmul.mubr.bf16.gmra.mrb[0].mxu0 %v2502
  %v2849 = vpop.f32.mrb[0].mxu0
  %v2850 = vadd.f32 0.0, %v2849
  %v2851 = vpop.f32.mrb[0].mxu0
  %v2852 = vadd.f32 0.0, %v2851
  %v2853 = vpop.f32.mrb[0].mxu0
  %v2854 = vadd.f32 0.0, %v2853
  %v2855 = vpop.f32.mrb[0].mxu0
  %v2856 = vadd.f32 0.0, %v2855
  %2857 = vmatprep.mubr.bf16.mxu0 %v2505
  %2858 = vmatmul.mubr.bf16.gmra.mrb[0].mxu0 %v2504
  %v2859 = vpop.f32.mrb[0].mxu0
  %v2860 = vadd.f32 0.0, %v2859
  %v2861 = vpop.f32.mrb[0].mxu0
  %v2862 = vadd.f32 0.0, %v2861
  %v2863 = vpop.f32.mrb[0].mxu0
  %v2864 = vadd.f32 0.0, %v2863
  %v2865 = vpop.f32.mrb[0].mxu0
  %v2866 = vadd.f32 0.0, %v2865
  %2867 = vmatprep.mubr.bf16.mxu0 %v2539
  %2868 = vmatmul.mubr.bf16.gmra.mrb[0].mxu0 %v2538
  %v2869 = vpop.f32.mrb[0].mxu0
  %v2870 = vadd.f32 0.0, %v2869
  %v2871 = vpop.f32.mrb[0].mxu0
  %v2872 = vadd.f32 0.0, %v2871
  %v2873 = vpop.f32.mrb[0].mxu0
  %v2874 = vadd.f32 0.0, %v2873
  %v2875 = vpop.f32.mrb[0].mxu0
  %v2876 = vadd.f32 0.0, %v2875
  %2877 = vmatprep.mubr.bf16.mxu0 %v2541
  %2878 = vmatmul.mubr.bf16.gmra.mrb[0].mxu0 %v2540
  %v2879 = vpop.f32.mrb[0].mxu0
  %v2880 = vadd.f32 0.0, %v2879
  %v2881 = vpop.f32.mrb[0].mxu0
  %v2882 = vadd.f32 0.0, %v2881
  %v2883 = vpop.f32.mrb[0].mxu0
  %v2884 = vadd.f32 0.0, %v2883
  %v2885 = vpop.f32.mrb[0].mxu0
  %v2886 = vadd.f32 0.0, %v2885
  %2887 = vdwg.mxu0
  %v2920 = vunpack.c.l.b16 %v2506
  %v2921 = vunpack.c.h.b16 %v2506
  %v2922 = vunpack.c.l.b16 %v2507
  %v2923 = vunpack.c.h.b16 %v2507
  %v2924 = vunpack.c.l.b16 %v2508
  %v2925 = vunpack.c.h.b16 %v2508
  %v2926 = vunpack.c.l.b16 %v2509
  %v2927 = vunpack.c.h.b16 %v2509
  %v2928 = vunpack.c.l.b16 %v2510
  %v2929 = vunpack.c.h.b16 %v2510
  %v2930 = vunpack.c.l.b16 %v2511
  %v2931 = vunpack.c.h.b16 %v2511
  %v2932 = vunpack.c.l.b16 %v2512
  %v2933 = vunpack.c.h.b16 %v2512
  %v2934 = vunpack.c.l.b16 %v2513
  %v2935 = vunpack.c.h.b16 %v2513
  %v2936 = vunpack.c.l.b16 %v2514
  %v2937 = vunpack.c.h.b16 %v2514
  %v2938 = vunpack.c.l.b16 %v2515
  %v2939 = vunpack.c.h.b16 %v2515
  %v2940 = vunpack.c.l.b16 %v2516
  %v2941 = vunpack.c.h.b16 %v2516
  %v2942 = vunpack.c.l.b16 %v2517
  %v2943 = vunpack.c.h.b16 %v2517
  %v2944 = vunpack.c.l.b16 %v2518
  %v2945 = vunpack.c.h.b16 %v2518
  %v2946 = vunpack.c.l.b16 %v2519
  %v2947 = vunpack.c.h.b16 %v2519
  %v2948 = vunpack.c.l.b16 %v2520
  %v2949 = vunpack.c.h.b16 %v2520
  %v2950 = vunpack.c.l.b16 %v2521
  %v2951 = vunpack.c.h.b16 %v2521
  %v2952 = vunpack.c.l.b16 %v2522
  %v2953 = vunpack.c.h.b16 %v2522
  %v2954 = vunpack.c.l.b16 %v2523
  %v2955 = vunpack.c.h.b16 %v2523
  %v2956 = vunpack.c.l.b16 %v2524
  %v2957 = vunpack.c.h.b16 %v2524
  %v2958 = vunpack.c.l.b16 %v2525
  %v2959 = vunpack.c.h.b16 %v2525
  %v2960 = vunpack.c.l.b16 %v2526
  %v2961 = vunpack.c.h.b16 %v2526
  %v2962 = vunpack.c.l.b16 %v2527
  %v2963 = vunpack.c.h.b16 %v2527
  %v2964 = vunpack.c.l.b16 %v2528
  %v2965 = vunpack.c.h.b16 %v2528
  %v2966 = vunpack.c.l.b16 %v2529
  %v2967 = vunpack.c.h.b16 %v2529
  %v2968 = vunpack.c.l.b16 %v2530
  %v2969 = vunpack.c.h.b16 %v2530
  %v2970 = vunpack.c.l.b16 %v2531
  %v2971 = vunpack.c.h.b16 %v2531
  %v2972 = vunpack.c.l.b16 %v2532
  %v2973 = vunpack.c.h.b16 %v2532
  %v2974 = vunpack.c.l.b16 %v2533
  %v2975 = vunpack.c.h.b16 %v2533
  %v2976 = vunpack.c.l.b16 %v2534
  %v2977 = vunpack.c.h.b16 %v2534
  %v2978 = vunpack.c.l.b16 %v2535
  %v2979 = vunpack.c.h.b16 %v2535
  %v2980 = vunpack.c.l.b16 %v2536
  %v2981 = vunpack.c.h.b16 %v2536
  %v2982 = vunpack.c.l.b16 %v2537
  %v2983 = vunpack.c.h.b16 %v2537
  %v2984 = vpack.c.b16 %v2922, %v2920
  %v2985 = vpack.c.b16 %v2923, %v2921
  %v2986 = vpack.c.b16 %v2926, %v2924
  %v2987 = vpack.c.b16 %v2927, %v2925
  %v2988 = vpack.c.b16 %v2930, %v2928
  %v2989 = vpack.c.b16 %v2931, %v2929
  %v2990 = vpack.c.b16 %v2934, %v2932
  %v2991 = vpack.c.b16 %v2935, %v2933
  %v2992 = vpack.c.b16 %v2938, %v2936
  %v2993 = vpack.c.b16 %v2939, %v2937
  %v2994 = vpack.c.b16 %v2942, %v2940
  %v2995 = vpack.c.b16 %v2943, %v2941
  %v2996 = vpack.c.b16 %v2946, %v2944
  %v2997 = vpack.c.b16 %v2947, %v2945
  %v2998 = vpack.c.b16 %v2950, %v2948
  %v2999 = vpack.c.b16 %v2951, %v2949
  %v3000 = vpack.c.b16 %v2954, %v2952
  %v3001 = vpack.c.b16 %v2955, %v2953
  %v3002 = vpack.c.b16 %v2958, %v2956
  %v3003 = vpack.c.b16 %v2959, %v2957
  %v3004 = vpack.c.b16 %v2962, %v2960
  %v3005 = vpack.c.b16 %v2963, %v2961
  %v3006 = vpack.c.b16 %v2966, %v2964
  %v3007 = vpack.c.b16 %v2967, %v2965
  %v3008 = vpack.c.b16 %v2970, %v2968
  %v3009 = vpack.c.b16 %v2971, %v2969
  %v3010 = vpack.c.b16 %v2974, %v2972
  %v3011 = vpack.c.b16 %v2975, %v2973
  %v3012 = vpack.c.b16 %v2978, %v2976
  %v3013 = vpack.c.b16 %v2979, %v2977
  %v3014 = vpack.c.b16 %v2982, %v2980
  %v3015 = vpack.c.b16 %v2983, %v2981
  %3048 = vmatprep.subr.bf16.mxu0 %v2985
  %3049 = vmatpush1.bf16.msra.mxu0 %v2984
  %3050 = vmatprep.subr.bf16.mxu0 %v2987
  %3051 = vmatpush1.bf16.msra.mxu0 %v2986
  %3052 = vmatprep.subr.bf16.mxu0 %v2989
  %3053 = vmatpush1.bf16.msra.mxu0 %v2988
  %3054 = vmatprep.subr.bf16.mxu0 %v2991
  %3055 = vmatpush1.bf16.msra.mxu0 %v2990
  %3056 = vmatprep.subr.bf16.mxu0 %v2993
  %3057 = vmatpush1.bf16.msra.mxu0 %v2992
  %3058 = vmatprep.subr.bf16.mxu0 %v2995
  %3059 = vmatpush1.bf16.msra.mxu0 %v2994
  %3060 = vmatprep.subr.bf16.mxu0 %v2997
  %3061 = vmatpush1.bf16.msra.mxu0 %v2996
  %3062 = vmatprep.subr.bf16.mxu0 %v2999
  %3063 = vmatpush1.bf16.msra.mxu0 %v2998
  %3064 = vmatprep.subr.bf16.mxu0 %v3001
  %3065 = vmatpush1.bf16.msra.mxu0 %v3000
  %3066 = vmatprep.subr.bf16.mxu0 %v3003
  %3067 = vmatpush1.bf16.msra.mxu0 %v3002
  %3068 = vmatprep.subr.bf16.mxu0 %v3005
  %3069 = vmatpush1.bf16.msra.mxu0 %v3004
  %3070 = vmatprep.subr.bf16.mxu0 %v3007
  %3071 = vmatpush1.bf16.msra.mxu0 %v3006
  %3072 = vmatprep.subr.bf16.mxu0 %v3009
  %3073 = vmatpush1.bf16.msra.mxu0 %v3008
  %3074 = vmatprep.subr.bf16.mxu0 %v3011
  %3075 = vmatpush1.bf16.msra.mxu0 %v3010
  %3076 = vmatprep.subr.bf16.mxu0 %v3013
  %3077 = vmatpush1.bf16.msra.mxu0 %v3012
  %3078 = vmatprep.subr.bf16.mxu0 %v3015
  %3079 = vmatpush1.bf16.msra.mxu0 %v3014
  %3080 = vmatprep.mubr.bf16.mxu0 %v2483
  %3081 = vmatmul.mubr.bf16.gmra.mrb[0].mxu0 %v2482
  %v3082 = vpop.f32.mrb[0].mxu0
  %v3083 = vadd.f32 %v2770, %v3082
  %v3084 = vpop.f32.mrb[0].mxu0
  %v3085 = vadd.f32 %v2772, %v3084
  %v3086 = vpop.f32.mrb[0].mxu0
  %v3087 = vadd.f32 %v2774, %v3086
  %v3088 = vpop.f32.mrb[0].mxu0
  %v3089 = vadd.f32 %v2776, %v3088
  %3090 = vmatprep.mubr.bf16.mxu0 %v2485
  %3091 = vmatmul.mubr.bf16.gmra.mrb[0].mxu0 %v2484
  %v3092 = vpop.f32.mrb[0].mxu0
  %v3093 = vadd.f32 %v2780, %v3092
  %v3094 = vpop.f32.mrb[0].mxu0
  %v3095 = vadd.f32 %v2782, %v3094
  %v3096 = vpop.f32.mrb[0].mxu0
  %v3097 = vadd.f32 %v2784, %v3096
  %v3098 = vpop.f32.mrb[0].mxu0
  %v3099 = vadd.f32 %v2786, %v3098
  %3100 = vmatprep.mubr.bf16.mxu0 %v2487
  %3101 = vmatmul.mubr.bf16.gmra.mrb[0].mxu0 %v2486
  %v3102 = vpop.f32.mrb[0].mxu0
  %v3103 = vadd.f32 %v2790, %v3102
  %v3104 = vpop.f32.mrb[0].mxu0
  %v3105 = vadd.f32 %v2792, %v3104
  %v3106 = vpop.f32.mrb[0].mxu0
  %v3107 = vadd.f32 %v2794, %v3106
  %v3108 = vpop.f32.mrb[0].mxu0
  %v3109 = vadd.f32 %v2796, %v3108
  %3110 = vmatprep.mubr.bf16.mxu0 %v2489
  %3111 = vmatmul.mubr.bf16.gmra.mrb[0].mxu0 %v2488
  %v3112 = vpop.f32.mrb[0].mxu0
  %v3113 = vadd.f32 %v2800, %v3112
  %v3114 = vpop.f32.mrb[0].mxu0
  %v3115 = vadd.f32 %v2802, %v3114
  %v3116 = vpop.f32.mrb[0].mxu0
  %v3117 = vadd.f32 %v2804, %v3116
  %v3118 = vpop.f32.mrb[0].mxu0
  %v3119 = vadd.f32 %v2806, %v3118
  %3120 = vmatprep.mubr.bf16.mxu0 %v2491
  %3121 = vmatmul.mubr.bf16.gmra.mrb[0].mxu0 %v2490
  %v3122 = vpop.f32.mrb[0].mxu0
  %v3123 = vadd.f32 %v2810, %v3122
  %v3124 = vpop.f32.mrb[0].mxu0
  %v3125 = vadd.f32 %v2812, %v3124
  %v3126 = vpop.f32.mrb[0].mxu0
  %v3127 = vadd.f32 %v2814, %v3126
  %v3128 = vpop.f32.mrb[0].mxu0
  %v3129 = vadd.f32 %v2816, %v3128
  %3130 = vmatprep.mubr.bf16.mxu0 %v2493
  %3131 = vmatmul.mubr.bf16.gmra.mrb[0].mxu0 %v2492
  %v3132 = vpop.f32.mrb[0].mxu0
  %v3133 = vadd.f32 %v2820, %v3132
  %v3134 = vpop.f32.mrb[0].mxu0
  %v3135 = vadd.f32 %v2822, %v3134
  %v3136 = vpop.f32.mrb[0].mxu0
  %v3137 = vadd.f32 %v2824, %v3136
  %v3138 = vpop.f32.mrb[0].mxu0
  %v3139 = vadd.f32 %v2826, %v3138
  %3140 = vmatprep.mubr.bf16.mxu0 %v2495
  %3141 = vmatmul.mubr.bf16.gmra.mrb[0].mxu0 %v2494
  %v3142 = vpop.f32.mrb[0].mxu0
  %v3143 = vadd.f32 %v2830, %v3142
  %v3144 = vpop.f32.mrb[0].mxu0
  %v3145 = vadd.f32 %v2832, %v3144
  %v3146 = vpop.f32.mrb[0].mxu0
  %v3147 = vadd.f32 %v2834, %v3146
  %v3148 = vpop.f32.mrb[0].mxu0
  %v3149 = vadd.f32 %v2836, %v3148
  %3150 = vmatprep.mubr.bf16.mxu0 %v2497
  %3151 = vmatmul.mubr.bf16.gmra.mrb[0].mxu0 %v2496
  %v3152 = vpop.f32.mrb[0].mxu0
  %v3153 = vadd.f32 %v2840, %v3152
  %v3154 = vpop.f32.mrb[0].mxu0
  %v3155 = vadd.f32 %v2842, %v3154
  %v3156 = vpop.f32.mrb[0].mxu0
  %v3157 = vadd.f32 %v2844, %v3156
  %v3158 = vpop.f32.mrb[0].mxu0
  %v3159 = vadd.f32 %v2846, %v3158
  %3160 = vmatprep.mubr.bf16.mxu0 %v2499
  %3161 = vmatmul.mubr.bf16.gmra.mrb[0].mxu0 %v2498
  %v3162 = vpop.f32.mrb[0].mxu0
  %v3163 = vadd.f32 %v2850, %v3162
  %v3164 = vpop.f32.mrb[0].mxu0
  %v3165 = vadd.f32 %v2852, %v3164
  %v3166 = vpop.f32.mrb[0].mxu0
  %v3167 = vadd.f32 %v2854, %v3166
  %v3168 = vpop.f32.mrb[0].mxu0
  %v3169 = vadd.f32 %v2856, %v3168
  %3170 = vmatprep.mubr.bf16.mxu0 %v2501
  %3171 = vmatmul.mubr.bf16.gmra.mrb[0].mxu0 %v2500
  %v3172 = vpop.f32.mrb[0].mxu0
  %v3173 = vadd.f32 %v2860, %v3172
  %v3174 = vpop.f32.mrb[0].mxu0
  %v3175 = vadd.f32 %v2862, %v3174
  %v3176 = vpop.f32.mrb[0].mxu0
  %v3177 = vadd.f32 %v2864, %v3176
  %v3178 = vpop.f32.mrb[0].mxu0
  %v3179 = vadd.f32 %v2866, %v3178
  %3180 = vmatprep.mubr.bf16.mxu0 %v2503
  %3181 = vmatmul.mubr.bf16.gmra.mrb[0].mxu0 %v2502
  %v3182 = vpop.f32.mrb[0].mxu0
  %v3183 = vadd.f32 %v2870, %v3182
  %v3184 = vpop.f32.mrb[0].mxu0
  %v3185 = vadd.f32 %v2872, %v3184
  %v3186 = vpop.f32.mrb[0].mxu0
  %v3187 = vadd.f32 %v2874, %v3186
  %v3188 = vpop.f32.mrb[0].mxu0
  %v3189 = vadd.f32 %v2876, %v3188
  %3190 = vmatprep.mubr.bf16.mxu0 %v2505
  %3191 = vmatmul.mubr.bf16.gmra.mrb[0].mxu0 %v2504
  %v3192 = vpop.f32.mrb[0].mxu0
  %v3193 = vadd.f32 %v2880, %v3192
  %v3194 = vpop.f32.mrb[0].mxu0
  %v3195 = vadd.f32 %v2882, %v3194
  %v3196 = vpop.f32.mrb[0].mxu0
  %v3197 = vadd.f32 %v2884, %v3196
  %v3198 = vpop.f32.mrb[0].mxu0
  %v3199 = vadd.f32 %v2886, %v3198
  %3200 = vdwg.mxu0
  %v3201 = vld [vmem:[#allocation2 + $0x40] sm:$0xff]
  %v3202 = vld [vmem:[#allocation2 + $0x48] sm:$0xff]
  %v3203 = vld [vmem:[#allocation2 + $0x50] sm:$0xff]
  %v3204 = vld [vmem:[#allocation2 + $0x58] sm:$0xff]
  %v3205 = vld [vmem:[#allocation2 + $0x60] sm:$0xff]
  %v3206 = vld [vmem:[#allocation2 + $0x68] sm:$0xff]
  %v3207 = vld [vmem:[#allocation2 + $0x70] sm:$0xff]
  %v3208 = vld [vmem:[#allocation2 + $0x78] sm:$0xff]
  %v3209 = vld [vmem:[#allocation2 + $0x80] sm:$0xff]
  %v3210 = vld [vmem:[#allocation2 + $0x88] sm:$0xff]
  %v3211 = vld [vmem:[#allocation2 + $0x90] sm:$0xff]
  %v3212 = vld [vmem:[#allocation2 + $0x98] sm:$0xff]
  %v3213 = vld [vmem:[#allocation2 + $0xa0] sm:$0xff]
  %v3214 = vld [vmem:[#allocation2 + $0xa8] sm:$0xff]
  %v3215 = vld [vmem:[#allocation2 + $0xb0] sm:$0xff]
  %v3216 = vld [vmem:[#allocation2 + $0xb8] sm:$0xff]
  %v3217 = vld [vmem:[#allocation2 + $0xc0] sm:$0xff]
  %v3218 = vld [vmem:[#allocation2 + $0xc8] sm:$0xff]
  %v3219 = vld [vmem:[#allocation2 + $0xd0] sm:$0xff]
  %v3220 = vld [vmem:[#allocation2 + $0xd8] sm:$0xff]
  %v3221 = vld [vmem:[#allocation2 + $0xe0] sm:$0xff]
  %v3222 = vld [vmem:[#allocation2 + $0xe8] sm:$0xff]
  %v3223 = vld [vmem:[#allocation2 + $0xf0] sm:$0xff]
  %v3224 = vld [vmem:[#allocation2 + $0xf8] sm:$0xff]
  %s3225 = scalar_lea.vmem %s2, 512
  %v3226 = vld [vmem:[%s3225] sm:$0xff]
  %v3227 = vld [vmem:[%s3225 + $0x8] sm:$0xff]
  %v3228 = vld [vmem:[%s3225 + $0x10] sm:$0xff]
  %v3229 = vld [vmem:[%s3225 + $0x18] sm:$0xff]
  %v3230 = vld [vmem:[%s3225 + $0x20] sm:$0xff]
  %v3231 = vld [vmem:[%s3225 + $0x28] sm:$0xff]
  %v3232 = vld [vmem:[%s3225 + $0x30] sm:$0xff]
  %v3233 = vld [vmem:[%s3225 + $0x38] sm:$0xff]
  %v3234 = vld [vmem:[%s3225 + $0x40] sm:$0xff]
  %v3235 = vld [vmem:[%s3225 + $0x48] sm:$0xff]
  %v3236 = vld [vmem:[%s3225 + $0x50] sm:$0xff]
  %v3237 = vld [vmem:[%s3225 + $0x58] sm:$0xff]
  %v3238 = vld [vmem:[%s3225 + $0x60] sm:$0xff]
  %v3239 = vld [vmem:[%s3225 + $0x68] sm:$0xff]
  %v3240 = vld [vmem:[%s3225 + $0x70] sm:$0xff]
  %v3241 = vld [vmem:[%s3225 + $0x78] sm:$0xff]
  %v3242 = vld [vmem:[%s3225 + $0x80] sm:$0xff]
  %v3243 = vld [vmem:[%s3225 + $0x88] sm:$0xff]
  %v3244 = vld [vmem:[%s3225 + $0x90] sm:$0xff]
  %v3245 = vld [vmem:[%s3225 + $0x98] sm:$0xff]
  %v3246 = vld [vmem:[%s3225 + $0xa0] sm:$0xff]
  %v3247 = vld [vmem:[%s3225 + $0xa8] sm:$0xff]
  %v3248 = vld [vmem:[%s3225 + $0xb0] sm:$0xff]
  %v3249 = vld [vmem:[%s3225 + $0xb8] sm:$0xff]
  %v3250 = vld [vmem:[%s3225 + $0xc0] sm:$0xff]
  %v3251 = vld [vmem:[%s3225 + $0xc8] sm:$0xff]
  %v3252 = vld [vmem:[%s3225 + $0xd0] sm:$0xff]
  %v3253 = vld [vmem:[%s3225 + $0xd8] sm:$0xff]
  %v3254 = vld [vmem:[%s3225 + $0xe0] sm:$0xff]
  %v3255 = vld [vmem:[%s3225 + $0xe8] sm:$0xff]
  %v3256 = vld [vmem:[%s3225 + $0xf0] sm:$0xff]
  %v3257 = vld [vmem:[%s3225 + $0xf8] sm:$0xff]
  %v3290 = vunpack.c.l.b16 %v3226
  %v3291 = vunpack.c.h.b16 %v3226
  %v3292 = vunpack.c.l.b16 %v3227
  %v3293 = vunpack.c.h.b16 %v3227
  %v3294 = vunpack.c.l.b16 %v3228
  %v3295 = vunpack.c.h.b16 %v3228
  %v3296 = vunpack.c.l.b16 %v3229
  %v3297 = vunpack.c.h.b16 %v3229
  %v3298 = vunpack.c.l.b16 %v3230
  %v3299 = vunpack.c.h.b16 %v3230
  %v3300 = vunpack.c.l.b16 %v3231
  %v3301 = vunpack.c.h.b16 %v3231
  %v3302 = vunpack.c.l.b16 %v3232
  %v3303 = vunpack.c.h.b16 %v3232
  %v3304 = vunpack.c.l.b16 %v3233
  %v3305 = vunpack.c.h.b16 %v3233
  %v3306 = vunpack.c.l.b16 %v3234
  %v3307 = vunpack.c.h.b16 %v3234
  %v3308 = vunpack.c.l.b16 %v3235
  %v3309 = vunpack.c.h.b16 %v3235
  %v3310 = vunpack.c.l.b16 %v3236
  %v3311 = vunpack.c.h.b16 %v3236
  %v3312 = vunpack.c.l.b16 %v3237
  %v3313 = vunpack.c.h.b16 %v3237
  %v3314 = vunpack.c.l.b16 %v3238
  %v3315 = vunpack.c.h.b16 %v3238
  %v3316 = vunpack.c.l.b16 %v3239
  %v3317 = vunpack.c.h.b16 %v3239
  %v3318 = vunpack.c.l.b16 %v3240
  %v3319 = vunpack.c.h.b16 %v3240
  %v3320 = vunpack.c.l.b16 %v3241
  %v3321 = vunpack.c.h.b16 %v3241
  %v3322 = vunpack.c.l.b16 %v3242
  %v3323 = vunpack.c.h.b16 %v3242
  %v3324 = vunpack.c.l.b16 %v3243
  %v3325 = vunpack.c.h.b16 %v3243
  %v3326 = vunpack.c.l.b16 %v3244
  %v3327 = vunpack.c.h.b16 %v3244
  %v3328 = vunpack.c.l.b16 %v3245
  %v3329 = vunpack.c.h.b16 %v3245
  %v3330 = vunpack.c.l.b16 %v3246
  %v3331 = vunpack.c.h.b16 %v3246
  %v3332 = vunpack.c.l.b16 %v3247
  %v3333 = vunpack.c.h.b16 %v3247
  %v3334 = vunpack.c.l.b16 %v3248
  %v3335 = vunpack.c.h.b16 %v3248
  %v3336 = vunpack.c.l.b16 %v3249
  %v3337 = vunpack.c.h.b16 %v3249
  %v3338 = vunpack.c.l.b16 %v3250
  %v3339 = vunpack.c.h.b16 %v3250
  %v3340 = vunpack.c.l.b16 %v3251
  %v3341 = vunpack.c.h.b16 %v3251
  %v3342 = vunpack.c.l.b16 %v3252
  %v3343 = vunpack.c.h.b16 %v3252
  %v3344 = vunpack.c.l.b16 %v3253
  %v3345 = vunpack.c.h.b16 %v3253
  %v3346 = vunpack.c.l.b16 %v3254
  %v3347 = vunpack.c.h.b16 %v3254
  %v3348 = vunpack.c.l.b16 %v3255
  %v3349 = vunpack.c.h.b16 %v3255
  %v3350 = vunpack.c.l.b16 %v3256
  %v3351 = vunpack.c.h.b16 %v3256
  %v3352 = vunpack.c.l.b16 %v3257
  %v3353 = vunpack.c.h.b16 %v3257
  %v3354 = vpack.c.b16 %v3292, %v3290
  %v3355 = vpack.c.b16 %v3293, %v3291
  %v3356 = vpack.c.b16 %v3296, %v3294
  %v3357 = vpack.c.b16 %v3297, %v3295
  %v3358 = vpack.c.b16 %v3300, %v3298
  %v3359 = vpack.c.b16 %v3301, %v3299
  %v3360 = vpack.c.b16 %v3304, %v3302
  %v3361 = vpack.c.b16 %v3305, %v3303
  %v3362 = vpack.c.b16 %v3308, %v3306
  %v3363 = vpack.c.b16 %v3309, %v3307
  %v3364 = vpack.c.b16 %v3312, %v3310
  %v3365 = vpack.c.b16 %v3313, %v3311
  %v3366 = vpack.c.b16 %v3316, %v3314
  %v3367 = vpack.c.b16 %v3317, %v3315
  %v3368 = vpack.c.b16 %v3320, %v3318
  %v3369 = vpack.c.b16 %v3321, %v3319
  %v3370 = vpack.c.b16 %v3324, %v3322
  %v3371 = vpack.c.b16 %v3325, %v3323
  %v3372 = vpack.c.b16 %v3328, %v3326
  %v3373 = vpack.c.b16 %v3329, %v3327
  %v3374 = vpack.c.b16 %v3332, %v3330
  %v3375 = vpack.c.b16 %v3333, %v3331
  %v3376 = vpack.c.b16 %v3336, %v3334
  %v3377 = vpack.c.b16 %v3337, %v3335
  %v3378 = vpack.c.b16 %v3340, %v3338
  %v3379 = vpack.c.b16 %v3341, %v3339
  %v3380 = vpack.c.b16 %v3344, %v3342
  %v3381 = vpack.c.b16 %v3345, %v3343
  %v3382 = vpack.c.b16 %v3348, %v3346
  %v3383 = vpack.c.b16 %v3349, %v3347
  %v3384 = vpack.c.b16 %v3352, %v3350
  %v3385 = vpack.c.b16 %v3353, %v3351
  %3418 = vmatprep.subr.bf16.mxu0 %v3355
  %3419 = vmatpush1.bf16.msra.mxu0 %v3354
  %3420 = vmatprep.subr.bf16.mxu0 %v3357
  %3421 = vmatpush1.bf16.msra.mxu0 %v3356
  %3422 = vmatprep.subr.bf16.mxu0 %v3359
  %3423 = vmatpush1.bf16.msra.mxu0 %v3358
  %3424 = vmatprep.subr.bf16.mxu0 %v3361
  %3425 = vmatpush1.bf16.msra.mxu0 %v3360
  %3426 = vmatprep.subr.bf16.mxu0 %v3363
  %3427 = vmatpush1.bf16.msra.mxu0 %v3362
  %3428 = vmatprep.subr.bf16.mxu0 %v3365
  %3429 = vmatpush1.bf16.msra.mxu0 %v3364
  %3430 = vmatprep.subr.bf16.mxu0 %v3367
  %3431 = vmatpush1.bf16.msra.mxu0 %v3366
  %3432 = vmatprep.subr.bf16.mxu0 %v3369
  %3433 = vmatpush1.bf16.msra.mxu0 %v3368
  %3434 = vmatprep.subr.bf16.mxu0 %v3371
  %3435 = vmatpush1.bf16.msra.mxu0 %v3370
  %3436 = vmatprep.subr.bf16.mxu0 %v3373
  %3437 = vmatpush1.bf16.msra.mxu0 %v3372
  %3438 = vmatprep.subr.bf16.mxu0 %v3375
  %3439 = vmatpush1.bf16.msra.mxu0 %v3374
  %3440 = vmatprep.subr.bf16.mxu0 %v3377
  %3441 = vmatpush1.bf16.msra.mxu0 %v3376
  %3442 = vmatprep.subr.bf16.mxu0 %v3379
  %3443 = vmatpush1.bf16.msra.mxu0 %v3378
  %3444 = vmatprep.subr.bf16.mxu0 %v3381
  %3445 = vmatpush1.bf16.msra.mxu0 %v3380
  %3446 = vmatprep.subr.bf16.mxu0 %v3383
  %3447 = vmatpush1.bf16.msra.mxu0 %v3382
  %3448 = vmatprep.subr.bf16.mxu0 %v3385
  %3449 = vmatpush1.bf16.msra.mxu0 %v3384
  %3450 = vmatprep.mubr.bf16.mxu0 %v3202
  %3451 = vmatmul.mubr.bf16.gmra.mrb[0].mxu0 %v3201
  %v3452 = vpop.f32.mrb[0].mxu0
  %v3453 = vadd.f32 0.0, %v3452
  %v3454 = vpop.f32.mrb[0].mxu0
  %v3455 = vadd.f32 0.0, %v3454
  %v3456 = vpop.f32.mrb[0].mxu0
  %v3457 = vadd.f32 0.0, %v3456
  %v3458 = vpop.f32.mrb[0].mxu0
  %v3459 = vadd.f32 0.0, %v3458
  %3460 = vmatprep.mubr.bf16.mxu0 %v3204
  %3461 = vmatmul.mubr.bf16.gmra.mrb[0].mxu0 %v3203
  %v3462 = vpop.f32.mrb[0].mxu0
  %v3463 = vadd.f32 0.0, %v3462
  %v3464 = vpop.f32.mrb[0].mxu0
  %v3465 = vadd.f32 0.0, %v3464
  %v3466 = vpop.f32.mrb[0].mxu0
  %v3467 = vadd.f32 0.0, %v3466
  %v3468 = vpop.f32.mrb[0].mxu0
  %v3469 = vadd.f32 0.0, %v3468
  %3470 = vmatprep.mubr.bf16.mxu0 %v3206
  %3471 = vmatmul.mubr.bf16.gmra.mrb[0].mxu0 %v3205
  %v3472 = vpop.f32.mrb[0].mxu0
  %v3473 = vadd.f32 0.0, %v3472
  %v3474 = vpop.f32.mrb[0].mxu0
  %v3475 = vadd.f32 0.0, %v3474
  %v3476 = vpop.f32.mrb[0].mxu0
  %v3477 = vadd.f32 0.0, %v3476
  %v3478 = vpop.f32.mrb[0].mxu0
  %v3479 = vadd.f32 0.0, %v3478
  %3480 = vmatprep.mubr.bf16.mxu0 %v3208
  %3481 = vmatmul.mubr.bf16.gmra.mrb[0].mxu0 %v3207
  %v3482 = vpop.f32.mrb[0].mxu0
  %v3483 = vadd.f32 0.0, %v3482
  %v3484 = vpop.f32.mrb[0].mxu0
  %v3485 = vadd.f32 0.0, %v3484
  %v3486 = vpop.f32.mrb[0].mxu0
  %v3487 = vadd.f32 0.0, %v3486
  %v3488 = vpop.f32.mrb[0].mxu0
  %v3489 = vadd.f32 0.0, %v3488
  %3490 = vmatprep.mubr.bf16.mxu0 %v3210
  %3491 = vmatmul.mubr.bf16.gmra.mrb[0].mxu0 %v3209
  %v3492 = vpop.f32.mrb[0].mxu0
  %v3493 = vadd.f32 0.0, %v3492
  %v3494 = vpop.f32.mrb[0].mxu0
  %v3495 = vadd.f32 0.0, %v3494
  %v3496 = vpop.f32.mrb[0].mxu0
  %v3497 = vadd.f32 0.0, %v3496
  %v3498 = vpop.f32.mrb[0].mxu0
  %v3499 = vadd.f32 0.0, %v3498
  %3500 = vmatprep.mubr.bf16.mxu0 %v3212
  %3501 = vmatmul.mubr.bf16.gmra.mrb[0].mxu0 %v3211
  %v3502 = vpop.f32.mrb[0].mxu0
  %v3503 = vadd.f32 0.0, %v3502
  %v3504 = vpop.f32.mrb[0].mxu0
  %v3505 = vadd.f32 0.0, %v3504
  %v3506 = vpop.f32.mrb[0].mxu0
  %v3507 = vadd.f32 0.0, %v3506
  %v3508 = vpop.f32.mrb[0].mxu0
  %v3509 = vadd.f32 0.0, %v3508
  %3510 = vmatprep.mubr.bf16.mxu0 %v3214
  %3511 = vmatmul.mubr.bf16.gmra.mrb[0].mxu0 %v3213
  %v3512 = vpop.f32.mrb[0].mxu0
  %v3513 = vadd.f32 0.0, %v3512
  %v3514 = vpop.f32.mrb[0].mxu0
  %v3515 = vadd.f32 0.0, %v3514
  %v3516 = vpop.f32.mrb[0].mxu0
  %v3517 = vadd.f32 0.0, %v3516
  %v3518 = vpop.f32.mrb[0].mxu0
  %v3519 = vadd.f32 0.0, %v3518
  %3520 = vmatprep.mubr.bf16.mxu0 %v3216
  %3521 = vmatmul.mubr.bf16.gmra.mrb[0].mxu0 %v3215
  %v3522 = vpop.f32.mrb[0].mxu0
  %v3523 = vadd.f32 0.0, %v3522
  %v3524 = vpop.f32.mrb[0].mxu0
  %v3525 = vadd.f32 0.0, %v3524
  %v3526 = vpop.f32.mrb[0].mxu0
  %v3527 = vadd.f32 0.0, %v3526
  %v3528 = vpop.f32.mrb[0].mxu0
  %v3529 = vadd.f32 0.0, %v3528
  %3530 = vmatprep.mubr.bf16.mxu0 %v3218
  %3531 = vmatmul.mubr.bf16.gmra.mrb[0].mxu0 %v3217
  %v3532 = vpop.f32.mrb[0].mxu0
  %v3533 = vadd.f32 0.0, %v3532
  %v3534 = vpop.f32.mrb[0].mxu0
  %v3535 = vadd.f32 0.0, %v3534
  %v3536 = vpop.f32.mrb[0].mxu0
  %v3537 = vadd.f32 0.0, %v3536
  %v3538 = vpop.f32.mrb[0].mxu0
  %v3539 = vadd.f32 0.0, %v3538
  %3540 = vmatprep.mubr.bf16.mxu0 %v3220
  %3541 = vmatmul.mubr.bf16.gmra.mrb[0].mxu0 %v3219
  %v3542 = vpop.f32.mrb[0].mxu0
  %v3543 = vadd.f32 0.0, %v3542
  %v3544 = vpop.f32.mrb[0].mxu0
  %v3545 = vadd.f32 0.0, %v3544
  %v3546 = vpop.f32.mrb[0].mxu0
  %v3547 = vadd.f32 0.0, %v3546
  %v3548 = vpop.f32.mrb[0].mxu0
  %v3549 = vadd.f32 0.0, %v3548
  %3550 = vmatprep.mubr.bf16.mxu0 %v3222
  %3551 = vmatmul.mubr.bf16.gmra.mrb[0].mxu0 %v3221
  %v3552 = vpop.f32.mrb[0].mxu0
  %v3553 = vadd.f32 0.0, %v3552
  %v3554 = vpop.f32.mrb[0].mxu0
  %v3555 = vadd.f32 0.0, %v3554
  %v3556 = vpop.f32.mrb[0].mxu0
  %v3557 = vadd.f32 0.0, %v3556
  %v3558 = vpop.f32.mrb[0].mxu0
  %v3559 = vadd.f32 0.0, %v3558
  %3560 = vmatprep.mubr.bf16.mxu0 %v3224
  %3561 = vmatmul.mubr.bf16.gmra.mrb[0].mxu0 %v3223
  %v3562 = vpop.f32.mrb[0].mxu0
  %v3563 = vadd.f32 0.0, %v3562
  %v3564 = vpop.f32.mrb[0].mxu0
  %v3565 = vadd.f32 0.0, %v3564
  %v3566 = vpop.f32.mrb[0].mxu0
  %v3567 = vadd.f32 0.0, %v3566
  %v3568 = vpop.f32.mrb[0].mxu0
  %v3569 = vadd.f32 0.0, %v3568
  %3570 = vdwg.mxu0
  %v3571 = vadd.f32 %v3083, %v3453
  %v3572 = vadd.f32 %v3085, %v3455
  %v3573 = vadd.f32 %v3087, %v3457
  %v3574 = vadd.f32 %v3089, %v3459
  %v3575 = vadd.f32 %v3093, %v3463
  %v3576 = vadd.f32 %v3095, %v3465
  %v3577 = vadd.f32 %v3097, %v3467
  %v3578 = vadd.f32 %v3099, %v3469
  %v3579 = vadd.f32 %v3103, %v3473
  %v3580 = vadd.f32 %v3105, %v3475
  %v3581 = vadd.f32 %v3107, %v3477
  %v3582 = vadd.f32 %v3109, %v3479
  %v3583 = vadd.f32 %v3113, %v3483
  %v3584 = vadd.f32 %v3115, %v3485
  %v3585 = vadd.f32 %v3117, %v3487
  %v3586 = vadd.f32 %v3119, %v3489
  %v3587 = vadd.f32 %v3123, %v3493
  %v3588 = vadd.f32 %v3125, %v3495
  %v3589 = vadd.f32 %v3127, %v3497
  %v3590 = vadd.f32 %v3129, %v3499
  %v3591 = vadd.f32 %v3133, %v3503
  %v3592 = vadd.f32 %v3135, %v3505
  %v3593 = vadd.f32 %v3137, %v3507
  %v3594 = vadd.f32 %v3139, %v3509
  %v3595 = vadd.f32 %v3143, %v3513
  %v3596 = vadd.f32 %v3145, %v3515
  %v3597 = vadd.f32 %v3147, %v3517
  %v3598 = vadd.f32 %v3149, %v3519
  %v3599 = vadd.f32 %v3153, %v3523
  %v3600 = vadd.f32 %v3155, %v3525
  %v3601 = vadd.f32 %v3157, %v3527
  %v3602 = vadd.f32 %v3159, %v3529
  %v3603 = vadd.f32 %v3163, %v3533
  %v3604 = vadd.f32 %v3165, %v3535
  %v3605 = vadd.f32 %v3167, %v3537
  %v3606 = vadd.f32 %v3169, %v3539
  %v3607 = vadd.f32 %v3173, %v3543
  %v3608 = vadd.f32 %v3175, %v3545
  %v3609 = vadd.f32 %v3177, %v3547
  %v3610 = vadd.f32 %v3179, %v3549
  %v3611 = vadd.f32 %v3183, %v3553
  %v3612 = vadd.f32 %v3185, %v3555
  %v3613 = vadd.f32 %v3187, %v3557
  %v3614 = vadd.f32 %v3189, %v3559
  %v3615 = vadd.f32 %v3193, %v3563
  %v3616 = vadd.f32 %v3195, %v3565
  %v3617 = vadd.f32 %v3197, %v3567
  %v3618 = vadd.f32 %v3199, %v3569
  %v3619 = vld [vmem:[#allocation2 + $0x60] sm:$0xff]
  %v3620 = vld [vmem:[#allocation2 + $0x68] sm:$0xff]
  %v3621 = vld [vmem:[#allocation2 + $0x70] sm:$0xff]
  %v3622 = vld [vmem:[#allocation2 + $0x78] sm:$0xff]
  %v3623 = vld [vmem:[#allocation2 + $0x80] sm:$0xff]
  %v3624 = vld [vmem:[#allocation2 + $0x88] sm:$0xff]
  %v3625 = vld [vmem:[#allocation2 + $0x90] sm:$0xff]
  %v3626 = vld [vmem:[#allocation2 + $0x98] sm:$0xff]
  %v3627 = vld [vmem:[#allocation2 + $0xa0] sm:$0xff]
  %v3628 = vld [vmem:[#allocation2 + $0xa8] sm:$0xff]
  %v3629 = vld [vmem:[#allocation2 + $0xb0] sm:$0xff]
  %v3630 = vld [vmem:[#allocation2 + $0xb8] sm:$0xff]
  %v3631 = vld [vmem:[#allocation2 + $0xc0] sm:$0xff]
  %v3632 = vld [vmem:[#allocation2 + $0xc8] sm:$0xff]
  %v3633 = vld [vmem:[#allocation2 + $0xd0] sm:$0xff]
  %v3634 = vld [vmem:[#allocation2 + $0xd8] sm:$0xff]
  %v3635 = vld [vmem:[#allocation2 + $0xe0] sm:$0xff]
  %v3636 = vld [vmem:[#allocation2 + $0xe8] sm:$0xff]
  %v3637 = vld [vmem:[#allocation2 + $0xf0] sm:$0xff]
  %v3638 = vld [vmem:[#allocation2 + $0xf8] sm:$0xff]
  %v3639 = vld [vmem:[#allocation2 + $0x100] sm:$0xff]
  %v3640 = vld [vmem:[#allocation2 + $0x108] sm:$0xff]
  %v3641 = vld [vmem:[#allocation2 + $0x110] sm:$0xff]
  %v3642 = vld [vmem:[#allocation2 + $0x118] sm:$0xff]
  %s3643 = scalar_lea.vmem %s2, 768
  %v3644 = vld [vmem:[%s3643] sm:$0xff]
  %v3645 = vld [vmem:[%s3643 + $0x8] sm:$0xff]
  %v3646 = vld [vmem:[%s3643 + $0x10] sm:$0xff]
  %v3647 = vld [vmem:[%s3643 + $0x18] sm:$0xff]
  %v3648 = vld [vmem:[%s3643 + $0x20] sm:$0xff]
  %v3649 = vld [vmem:[%s3643 + $0x28] sm:$0xff]
  %v3650 = vld [vmem:[%s3643 + $0x30] sm:$0xff]
  %v3651 = vld [vmem:[%s3643 + $0x38] sm:$0xff]
  %v3652 = vld [vmem:[%s3643 + $0x40] sm:$0xff]
  %v3653 = vld [vmem:[%s3643 + $0x48] sm:$0xff]
  %v3654 = vld [vmem:[%s3643 + $0x50] sm:$0xff]
  %v3655 = vld [vmem:[%s3643 + $0x58] sm:$0xff]
  %v3656 = vld [vmem:[%s3643 + $0x60] sm:$0xff]
  %v3657 = vld [vmem:[%s3643 + $0x68] sm:$0xff]
  %v3658 = vld [vmem:[%s3643 + $0x70] sm:$0xff]
  %v3659 = vld [vmem:[%s3643 + $0x78] sm:$0xff]
  %v3660 = vld [vmem:[%s3643 + $0x80] sm:$0xff]
  %v3661 = vld [vmem:[%s3643 + $0x88] sm:$0xff]
  %v3662 = vld [vmem:[%s3643 + $0x90] sm:$0xff]
  %v3663 = vld [vmem:[%s3643 + $0x98] sm:$0xff]
  %v3664 = vld [vmem:[%s3643 + $0xa0] sm:$0xff]
  %v3665 = vld [vmem:[%s3643 + $0xa8] sm:$0xff]
  %v3666 = vld [vmem:[%s3643 + $0xb0] sm:$0xff]
  %v3667 = vld [vmem:[%s3643 + $0xb8] sm:$0xff]
  %v3668 = vld [vmem:[%s3643 + $0xc0] sm:$0xff]
  %v3669 = vld [vmem:[%s3643 + $0xc8] sm:$0xff]
  %v3670 = vld [vmem:[%s3643 + $0xd0] sm:$0xff]
  %v3671 = vld [vmem:[%s3643 + $0xd8] sm:$0xff]
  %v3672 = vld [vmem:[%s3643 + $0xe0] sm:$0xff]
  %v3673 = vld [vmem:[%s3643 + $0xe8] sm:$0xff]
  %v3674 = vld [vmem:[%s3643 + $0xf0] sm:$0xff]
  %v3675 = vld [vmem:[%s3643 + $0xf8] sm:$0xff]
  %v3708 = vunpack.c.l.b16 %v3644
  %v3709 = vunpack.c.h.b16 %v3644
  %v3710 = vunpack.c.l.b16 %v3645
  %v3711 = vunpack.c.h.b16 %v3645
  %v3712 = vunpack.c.l.b16 %v3646
  %v3713 = vunpack.c.h.b16 %v3646
  %v3714 = vunpack.c.l.b16 %v3647
  %v3715 = vunpack.c.h.b16 %v3647
  %v3716 = vunpack.c.l.b16 %v3648
  %v3717 = vunpack.c.h.b16 %v3648
  %v3718 = vunpack.c.l.b16 %v3649
  %v3719 = vunpack.c.h.b16 %v3649
  %v3720 = vunpack.c.l.b16 %v3650
  %v3721 = vunpack.c.h.b16 %v3650
  %v3722 = vunpack.c.l.b16 %v3651
  %v3723 = vunpack.c.h.b16 %v3651
  %v3724 = vunpack.c.l.b16 %v3652
  %v3725 = vunpack.c.h.b16 %v3652
  %v3726 = vunpack.c.l.b16 %v3653
  %v3727 = vunpack.c.h.b16 %v3653
  %v3728 = vunpack.c.l.b16 %v3654
  %v3729 = vunpack.c.h.b16 %v3654
  %v3730 = vunpack.c.l.b16 %v3655
  %v3731 = vunpack.c.h.b16 %v3655
  %v3732 = vunpack.c.l.b16 %v3656
  %v3733 = vunpack.c.h.b16 %v3656
  %v3734 = vunpack.c.l.b16 %v3657
  %v3735 = vunpack.c.h.b16 %v3657
  %v3736 = vunpack.c.l.b16 %v3658
  %v3737 = vunpack.c.h.b16 %v3658
  %v3738 = vunpack.c.l.b16 %v3659
  %v3739 = vunpack.c.h.b16 %v3659
  %v3740 = vunpack.c.l.b16 %v3660
  %v3741 = vunpack.c.h.b16 %v3660
  %v3742 = vunpack.c.l.b16 %v3661
  %v3743 = vunpack.c.h.b16 %v3661
  %v3744 = vunpack.c.l.b16 %v3662
  %v3745 = vunpack.c.h.b16 %v3662
  %v3746 = vunpack.c.l.b16 %v3663
  %v3747 = vunpack.c.h.b16 %v3663
  %v3748 = vunpack.c.l.b16 %v3664
  %v3749 = vunpack.c.h.b16 %v3664
  %v3750 = vunpack.c.l.b16 %v3665
  %v3751 = vunpack.c.h.b16 %v3665
  %v3752 = vunpack.c.l.b16 %v3666
  %v3753 = vunpack.c.h.b16 %v3666
  %v3754 = vunpack.c.l.b16 %v3667
  %v3755 = vunpack.c.h.b16 %v3667
  %v3756 = vunpack.c.l.b16 %v3668
  %v3757 = vunpack.c.h.b16 %v3668
  %v3758 = vunpack.c.l.b16 %v3669
  %v3759 = vunpack.c.h.b16 %v3669
  %v3760 = vunpack.c.l.b16 %v3670
  %v3761 = vunpack.c.h.b16 %v3670
  %v3762 = vunpack.c.l.b16 %v3671
  %v3763 = vunpack.c.h.b16 %v3671
  %v3764 = vunpack.c.l.b16 %v3672
  %v3765 = vunpack.c.h.b16 %v3672
  %v3766 = vunpack.c.l.b16 %v3673
  %v3767 = vunpack.c.h.b16 %v3673
  %v3768 = vunpack.c.l.b16 %v3674
  %v3769 = vunpack.c.h.b16 %v3674
  %v3770 = vunpack.c.l.b16 %v3675
  %v3771 = vunpack.c.h.b16 %v3675
  %v3772 = vpack.c.b16 %v3710, %v3708
  %v3773 = vpack.c.b16 %v3711, %v3709
  %v3774 = vpack.c.b16 %v3714, %v3712
  %v3775 = vpack.c.b16 %v3715, %v3713
  %v3776 = vpack.c.b16 %v3718, %v3716
  %v3777 = vpack.c.b16 %v3719, %v3717
  %v3778 = vpack.c.b16 %v3722, %v3720
  %v3779 = vpack.c.b16 %v3723, %v3721
  %v3780 = vpack.c.b16 %v3726, %v3724
  %v3781 = vpack.c.b16 %v3727, %v3725
  %v3782 = vpack.c.b16 %v3730, %v3728
  %v3783 = vpack.c.b16 %v3731, %v3729
  %v3784 = vpack.c.b16 %v3734, %v3732
  %v3785 = vpack.c.b16 %v3735, %v3733
  %v3786 = vpack.c.b16 %v3738, %v3736
  %v3787 = vpack.c.b16 %v3739, %v3737
  %v3788 = vpack.c.b16 %v3742, %v3740
  %v3789 = vpack.c.b16 %v3743, %v3741
  %v3790 = vpack.c.b16 %v3746, %v3744
  %v3791 = vpack.c.b16 %v3747, %v3745
  %v3792 = vpack.c.b16 %v3750, %v3748
  %v3793 = vpack.c.b16 %v3751, %v3749
  %v3794 = vpack.c.b16 %v3754, %v3752
  %v3795 = vpack.c.b16 %v3755, %v3753
  %v3796 = vpack.c.b16 %v3758, %v3756
  %v3797 = vpack.c.b16 %v3759, %v3757
  %v3798 = vpack.c.b16 %v3762, %v3760
  %v3799 = vpack.c.b16 %v3763, %v3761
  %v3800 = vpack.c.b16 %v3766, %v3764
  %v3801 = vpack.c.b16 %v3767, %v3765
  %v3802 = vpack.c.b16 %v3770, %v3768
  %v3803 = vpack.c.b16 %v3771, %v3769
  %3836 = vmatprep.subr.bf16.mxu0 %v3773
  %3837 = vmatpush1.bf16.msra.mxu0 %v3772
  %3838 = vmatprep.subr.bf16.mxu0 %v3775
  %3839 = vmatpush1.bf16.msra.mxu0 %v3774
  %3840 = vmatprep.subr.bf16.mxu0 %v3777
  %3841 = vmatpush1.bf16.msra.mxu0 %v3776
  %3842 = vmatprep.subr.bf16.mxu0 %v3779
  %3843 = vmatpush1.bf16.msra.mxu0 %v3778
  %3844 = vmatprep.subr.bf16.mxu0 %v3781
  %3845 = vmatpush1.bf16.msra.mxu0 %v3780
  %3846 = vmatprep.subr.bf16.mxu0 %v3783
  %3847 = vmatpush1.bf16.msra.mxu0 %v3782
  %3848 = vmatprep.subr.bf16.mxu0 %v3785
  %3849 = vmatpush1.bf16.msra.mxu0 %v3784
  %3850 = vmatprep.subr.bf16.mxu0 %v3787
  %3851 = vmatpush1.bf16.msra.mxu0 %v3786
  %3852 = vmatprep.subr.bf16.mxu0 %v3789
  %3853 = vmatpush1.bf16.msra.mxu0 %v3788
  %3854 = vmatprep.subr.bf16.mxu0 %v3791
  %3855 = vmatpush1.bf16.msra.mxu0 %v3790
  %3856 = vmatprep.subr.bf16.mxu0 %v3793
  %3857 = vmatpush1.bf16.msra.mxu0 %v3792
  %3858 = vmatprep.subr.bf16.mxu0 %v3795
  %3859 = vmatpush1.bf16.msra.mxu0 %v3794
  %3860 = vmatprep.subr.bf16.mxu0 %v3797
  %3861 = vmatpush1.bf16.msra.mxu0 %v3796
  %3862 = vmatprep.subr.bf16.mxu0 %v3799
  %3863 = vmatpush1.bf16.msra.mxu0 %v3798
  %3864 = vmatprep.subr.bf16.mxu0 %v3801
  %3865 = vmatpush1.bf16.msra.mxu0 %v3800
  %3866 = vmatprep.subr.bf16.mxu0 %v3803
  %3867 = vmatpush1.bf16.msra.mxu0 %v3802
  %3868 = vmatprep.mubr.bf16.mxu0 %v3620
  %3869 = vmatmul.mubr.bf16.gmra.mrb[0].mxu0 %v3619
  %v3870 = vpop.f32.mrb[0].mxu0
  %v3871 = vadd.f32 0.0, %v3870
  %v3872 = vpop.f32.mrb[0].mxu0
  %v3873 = vadd.f32 0.0, %v3872
  %v3874 = vpop.f32.mrb[0].mxu0
  %v3875 = vadd.f32 0.0, %v3874
  %v3876 = vpop.f32.mrb[0].mxu0
  %v3877 = vadd.f32 0.0, %v3876
  %3878 = vmatprep.mubr.bf16.mxu0 %v3622
  %3879 = vmatmul.mubr.bf16.gmra.mrb[0].mxu0 %v3621
  %v3880 = vpop.f32.mrb[0].mxu0
  %v3881 = vadd.f32 0.0, %v3880
  %v3882 = vpop.f32.mrb[0].mxu0
  %v3883 = vadd.f32 0.0, %v3882
  %v3884 = vpop.f32.mrb[0].mxu0
  %v3885 = vadd.f32 0.0, %v3884
  %v3886 = vpop.f32.mrb[0].mxu0
  %v3887 = vadd.f32 0.0, %v3886
  %3888 = vmatprep.mubr.bf16.mxu0 %v3624
  %3889 = vmatmul.mubr.bf16.gmra.mrb[0].mxu0 %v3623
  %v3890 = vpop.f32.mrb[0].mxu0
  %v3891 = vadd.f32 0.0, %v3890
  %v3892 = vpop.f32.mrb[0].mxu0
  %v3893 = vadd.f32 0.0, %v3892
  %v3894 = vpop.f32.mrb[0].mxu0
  %v3895 = vadd.f32 0.0, %v3894
  %v3896 = vpop.f32.mrb[0].mxu0
  %v3897 = vadd.f32 0.0, %v3896
  %3898 = vmatprep.mubr.bf16.mxu0 %v3626
  %3899 = vmatmul.mubr.bf16.gmra.mrb[0].mxu0 %v3625
  %v3900 = vpop.f32.mrb[0].mxu0
  %v3901 = vadd.f32 0.0, %v3900
  %v3902 = vpop.f32.mrb[0].mxu0
  %v3903 = vadd.f32 0.0, %v3902
  %v3904 = vpop.f32.mrb[0].mxu0
  %v3905 = vadd.f32 0.0, %v3904
  %v3906 = vpop.f32.mrb[0].mxu0
  %v3907 = vadd.f32 0.0, %v3906
  %3908 = vmatprep.mubr.bf16.mxu0 %v3628
  %3909 = vmatmul.mubr.bf16.gmra.mrb[0].mxu0 %v3627
  %v3910 = vpop.f32.mrb[0].mxu0
  %v3911 = vadd.f32 0.0, %v3910
  %v3912 = vpop.f32.mrb[0].mxu0
  %v3913 = vadd.f32 0.0, %v3912
  %v3914 = vpop.f32.mrb[0].mxu0
  %v3915 = vadd.f32 0.0, %v3914
  %v3916 = vpop.f32.mrb[0].mxu0
  %v3917 = vadd.f32 0.0, %v3916
  %3918 = vmatprep.mubr.bf16.mxu0 %v3630
  %3919 = vmatmul.mubr.bf16.gmra.mrb[0].mxu0 %v3629
  %v3920 = vpop.f32.mrb[0].mxu0
  %v3921 = vadd.f32 0.0, %v3920
  %v3922 = vpop.f32.mrb[0].mxu0
  %v3923 = vadd.f32 0.0, %v3922
  %v3924 = vpop.f32.mrb[0].mxu0
  %v3925 = vadd.f32 0.0, %v3924
  %v3926 = vpop.f32.mrb[0].mxu0
  %v3927 = vadd.f32 0.0, %v3926
  %3928 = vmatprep.mubr.bf16.mxu0 %v3632
  %3929 = vmatmul.mubr.bf16.gmra.mrb[0].mxu0 %v3631
  %v3930 = vpop.f32.mrb[0].mxu0
  %v3931 = vadd.f32 0.0, %v3930
  %v3932 = vpop.f32.mrb[0].mxu0
  %v3933 = vadd.f32 0.0, %v3932
  %v3934 = vpop.f32.mrb[0].mxu0
  %v3935 = vadd.f32 0.0, %v3934
  %v3936 = vpop.f32.mrb[0].mxu0
  %v3937 = vadd.f32 0.0, %v3936
  %3938 = vmatprep.mubr.bf16.mxu0 %v3634
  %3939 = vmatmul.mubr.bf16.gmra.mrb[0].mxu0 %v3633
  %v3940 = vpop.f32.mrb[0].mxu0
  %v3941 = vadd.f32 0.0, %v3940
  %v3942 = vpop.f32.mrb[0].mxu0
  %v3943 = vadd.f32 0.0, %v3942
  %v3944 = vpop.f32.mrb[0].mxu0
  %v3945 = vadd.f32 0.0, %v3944
  %v3946 = vpop.f32.mrb[0].mxu0
  %v3947 = vadd.f32 0.0, %v3946
  %3948 = vmatprep.mubr.bf16.mxu0 %v3636
  %3949 = vmatmul.mubr.bf16.gmra.mrb[0].mxu0 %v3635
  %v3950 = vpop.f32.mrb[0].mxu0
  %v3951 = vadd.f32 0.0, %v3950
  %v3952 = vpop.f32.mrb[0].mxu0
  %v3953 = vadd.f32 0.0, %v3952
  %v3954 = vpop.f32.mrb[0].mxu0
  %v3955 = vadd.f32 0.0, %v3954
  %v3956 = vpop.f32.mrb[0].mxu0
  %v3957 = vadd.f32 0.0, %v3956
  %3958 = vmatprep.mubr.bf16.mxu0 %v3638
  %3959 = vmatmul.mubr.bf16.gmra.mrb[0].mxu0 %v3637
  %v3960 = vpop.f32.mrb[0].mxu0
  %v3961 = vadd.f32 0.0, %v3960
  %v3962 = vpop.f32.mrb[0].mxu0
  %v3963 = vadd.f32 0.0, %v3962
  %v3964 = vpop.f32.mrb[0].mxu0
  %v3965 = vadd.f32 0.0, %v3964
  %v3966 = vpop.f32.mrb[0].mxu0
  %v3967 = vadd.f32 0.0, %v3966
  %3968 = vmatprep.mubr.bf16.mxu0 %v3640
  %3969 = vmatmul.mubr.bf16.gmra.mrb[0].mxu0 %v3639
  %v3970 = vpop.f32.mrb[0].mxu0
  %v3971 = vadd.f32 0.0, %v3970
  %v3972 = vpop.f32.mrb[0].mxu0
  %v3973 = vadd.f32 0.0, %v3972
  %v3974 = vpop.f32.mrb[0].mxu0
  %v3975 = vadd.f32 0.0, %v3974
  %v3976 = vpop.f32.mrb[0].mxu0
  %v3977 = vadd.f32 0.0, %v3976
  %3978 = vmatprep.mubr.bf16.mxu0 %v3642
  %3979 = vmatmul.mubr.bf16.gmra.mrb[0].mxu0 %v3641
  %v3980 = vpop.f32.mrb[0].mxu0
  %v3981 = vadd.f32 0.0, %v3980
  %v3982 = vpop.f32.mrb[0].mxu0
  %v3983 = vadd.f32 0.0, %v3982
  %v3984 = vpop.f32.mrb[0].mxu0
  %v3985 = vadd.f32 0.0, %v3984
  %v3986 = vpop.f32.mrb[0].mxu0
  %v3987 = vadd.f32 0.0, %v3986
  %3988 = vdwg.mxu0
  %v3989 = vadd.f32 %v3571, %v3871
  %v3990 = vadd.f32 %v3572, %v3873
  %v3991 = vadd.f32 %v3573, %v3875
  %v3992 = vadd.f32 %v3574, %v3877
  %v3993 = vadd.f32 %v3575, %v3881
  %v3994 = vadd.f32 %v3576, %v3883
  %v3995 = vadd.f32 %v3577, %v3885
  %v3996 = vadd.f32 %v3578, %v3887
  %v3997 = vadd.f32 %v3579, %v3891
  %v3998 = vadd.f32 %v3580, %v3893
  %v3999 = vadd.f32 %v3581, %v3895
  %v4000 = vadd.f32 %v3582, %v3897
  %v4001 = vadd.f32 %v3583, %v3901
  %v4002 = vadd.f32 %v3584, %v3903
  %v4003 = vadd.f32 %v3585, %v3905
  %v4004 = vadd.f32 %v3586, %v3907
  %v4005 = vadd.f32 %v3587, %v3911
  %v4006 = vadd.f32 %v3588, %v3913
  %v4007 = vadd.f32 %v3589, %v3915
  %v4008 = vadd.f32 %v3590, %v3917
  %v4009 = vadd.f32 %v3591, %v3921
  %v4010 = vadd.f32 %v3592, %v3923
  %v4011 = vadd.f32 %v3593, %v3925
  %v4012 = vadd.f32 %v3594, %v3927
  %v4013 = vadd.f32 %v3595, %v3931
  %v4014 = vadd.f32 %v3596, %v3933
  %v4015 = vadd.f32 %v3597, %v3935
  %v4016 = vadd.f32 %v3598, %v3937
  %v4017 = vadd.f32 %v3599, %v3941
  %v4018 = vadd.f32 %v3600, %v3943
  %v4019 = vadd.f32 %v3601, %v3945
  %v4020 = vadd.f32 %v3602, %v3947
  %v4021 = vadd.f32 %v3603, %v3951
  %v4022 = vadd.f32 %v3604, %v3953
  %v4023 = vadd.f32 %v3605, %v3955
  %v4024 = vadd.f32 %v3606, %v3957
  %v4025 = vadd.f32 %v3607, %v3961
  %v4026 = vadd.f32 %v3608, %v3963
  %v4027 = vadd.f32 %v3609, %v3965
  %v4028 = vadd.f32 %v3610, %v3967
  %v4029 = vadd.f32 %v3611, %v3971
  %v4030 = vadd.f32 %v3612, %v3973
  %v4031 = vadd.f32 %v3613, %v3975
  %v4032 = vadd.f32 %v3614, %v3977
  %v4033 = vadd.f32 %v3615, %v3981
  %v4034 = vadd.f32 %v3616, %v3983
  %v4035 = vadd.f32 %v3617, %v3985
  %v4036 = vadd.f32 %v3618, %v3987
  %v4037 = vld [vmem:[#allocation2 + $0x80] sm:$0xff]
  %v4038 = vld [vmem:[#allocation2 + $0x88] sm:$0xff]
  %v4039 = vld [vmem:[#allocation2 + $0x90] sm:$0xff]
  %v4040 = vld [vmem:[#allocation2 + $0x98] sm:$0xff]
  %v4041 = vld [vmem:[#allocation2 + $0xa0] sm:$0xff]
  %v4042 = vld [vmem:[#allocation2 + $0xa8] sm:$0xff]
  %v4043 = vld [vmem:[#allocation2 + $0xb0] sm:$0xff]
  %v4044 = vld [vmem:[#allocation2 + $0xb8] sm:$0xff]
  %v4045 = vld [vmem:[#allocation2 + $0xc0] sm:$0xff]
  %v4046 = vld [vmem:[#allocation2 + $0xc8] sm:$0xff]
  %v4047 = vld [vmem:[#allocation2 + $0xd0] sm:$0xff]
  %v4048 = vld [vmem:[#allocation2 + $0xd8] sm:$0xff]
  %v4049 = vld [vmem:[#allocation2 + $0xe0] sm:$0xff]
  %v4050 = vld [vmem:[#allocation2 + $0xe8] sm:$0xff]
  %v4051 = vld [vmem:[#allocation2 + $0xf0] sm:$0xff]
  %v4052 = vld [vmem:[#allocation2 + $0xf8] sm:$0xff]
  %v4053 = vld [vmem:[#allocation2 + $0x100] sm:$0xff]
  %v4054 = vld [vmem:[#allocation2 + $0x108] sm:$0xff]
  %v4055 = vld [vmem:[#allocation2 + $0x110] sm:$0xff]
  %v4056 = vld [vmem:[#allocation2 + $0x118] sm:$0xff]
  %v4057 = vld [vmem:[#allocation2 + $0x120] sm:$0xff]
  %v4058 = vld [vmem:[#allocation2 + $0x128] sm:$0xff]
  %v4059 = vld [vmem:[#allocation2 + $0x130] sm:$0xff]
  %v4060 = vld [vmem:[#allocation2 + $0x138] sm:$0xff]
  %s4061 = scalar_lea.vmem %s2, 1024
  %v4062 = vld [vmem:[%s4061] sm:$0xff]
  %v4063 = vld [vmem:[%s4061 + $0x8] sm:$0xff]
  %v4064 = vld [vmem:[%s4061 + $0x10] sm:$0xff]
  %v4065 = vld [vmem:[%s4061 + $0x18] sm:$0xff]
  %v4066 = vld [vmem:[%s4061 + $0x20] sm:$0xff]
  %v4067 = vld [vmem:[%s4061 + $0x28] sm:$0xff]
  %v4068 = vld [vmem:[%s4061 + $0x30] sm:$0xff]
  %v4069 = vld [vmem:[%s4061 + $0x38] sm:$0xff]
  %v4070 = vld [vmem:[%s4061 + $0x40] sm:$0xff]
  %v4071 = vld [vmem:[%s4061 + $0x48] sm:$0xff]
  %v4072 = vld [vmem:[%s4061 + $0x50] sm:$0xff]
  %v4073 = vld [vmem:[%s4061 + $0x58] sm:$0xff]
  %v4074 = vld [vmem:[%s4061 + $0x60] sm:$0xff]
  %v4075 = vld [vmem:[%s4061 + $0x68] sm:$0xff]
  %v4076 = vld [vmem:[%s4061 + $0x70] sm:$0xff]
  %v4077 = vld [vmem:[%s4061 + $0x78] sm:$0xff]
  %v4078 = vld [vmem:[%s4061 + $0x80] sm:$0xff]
  %v4079 = vld [vmem:[%s4061 + $0x88] sm:$0xff]
  %v4080 = vld [vmem:[%s4061 + $0x90] sm:$0xff]
  %v4081 = vld [vmem:[%s4061 + $0x98] sm:$0xff]
  %v4082 = vld [vmem:[%s4061 + $0xa0] sm:$0xff]
  %v4083 = vld [vmem:[%s4061 + $0xa8] sm:$0xff]
  %v4084 = vld [vmem:[%s4061 + $0xb0] sm:$0xff]
  %v4085 = vld [vmem:[%s4061 + $0xb8] sm:$0xff]
  %v4086 = vld [vmem:[%s4061 + $0xc0] sm:$0xff]
  %v4087 = vld [vmem:[%s4061 + $0xc8] sm:$0xff]
  %v4088 = vld [vmem:[%s4061 + $0xd0] sm:$0xff]
  %v4089 = vld [vmem:[%s4061 + $0xd8] sm:$0xff]
  %v4090 = vld [vmem:[%s4061 + $0xe0] sm:$0xff]
  %v4091 = vld [vmem:[%s4061 + $0xe8] sm:$0xff]
  %v4092 = vld [vmem:[%s4061 + $0xf0] sm:$0xff]
  %v4093 = vld [vmem:[%s4061 + $0xf8] sm:$0xff]
  %v4126 = vunpack.c.l.b16 %v4062
  %v4127 = vunpack.c.h.b16 %v4062
  %v4128 = vunpack.c.l.b16 %v4063
  %v4129 = vunpack.c.h.b16 %v4063
  %v4130 = vunpack.c.l.b16 %v4064
  %v4131 = vunpack.c.h.b16 %v4064
  %v4132 = vunpack.c.l.b16 %v4065
  %v4133 = vunpack.c.h.b16 %v4065
  %v4134 = vunpack.c.l.b16 %v4066
  %v4135 = vunpack.c.h.b16 %v4066
  %v4136 = vunpack.c.l.b16 %v4067
  %v4137 = vunpack.c.h.b16 %v4067
  %v4138 = vunpack.c.l.b16 %v4068
  %v4139 = vunpack.c.h.b16 %v4068
  %v4140 = vunpack.c.l.b16 %v4069
  %v4141 = vunpack.c.h.b16 %v4069
  %v4142 = vunpack.c.l.b16 %v4070
  %v4143 = vunpack.c.h.b16 %v4070
  %v4144 = vunpack.c.l.b16 %v4071
  %v4145 = vunpack.c.h.b16 %v4071
  %v4146 = vunpack.c.l.b16 %v4072
  %v4147 = vunpack.c.h.b16 %v4072
  %v4148 = vunpack.c.l.b16 %v4073
  %v4149 = vunpack.c.h.b16 %v4073
  %v4150 = vunpack.c.l.b16 %v4074
  %v4151 = vunpack.c.h.b16 %v4074
  %v4152 = vunpack.c.l.b16 %v4075
  %v4153 = vunpack.c.h.b16 %v4075
  %v4154 = vunpack.c.l.b16 %v4076
  %v4155 = vunpack.c.h.b16 %v4076
  %v4156 = vunpack.c.l.b16 %v4077
  %v4157 = vunpack.c.h.b16 %v4077
  %v4158 = vunpack.c.l.b16 %v4078
  %v4159 = vunpack.c.h.b16 %v4078
  %v4160 = vunpack.c.l.b16 %v4079
  %v4161 = vunpack.c.h.b16 %v4079
  %v4162 = vunpack.c.l.b16 %v4080
  %v4163 = vunpack.c.h.b16 %v4080
  %v4164 = vunpack.c.l.b16 %v4081
  %v4165 = vunpack.c.h.b16 %v4081
  %v4166 = vunpack.c.l.b16 %v4082
  %v4167 = vunpack.c.h.b16 %v4082
  %v4168 = vunpack.c.l.b16 %v4083
  %v4169 = vunpack.c.h.b16 %v4083
  %v4170 = vunpack.c.l.b16 %v4084
  %v4171 = vunpack.c.h.b16 %v4084
  %v4172 = vunpack.c.l.b16 %v4085
  %v4173 = vunpack.c.h.b16 %v4085
  %v4174 = vunpack.c.l.b16 %v4086
  %v4175 = vunpack.c.h.b16 %v4086
  %v4176 = vunpack.c.l.b16 %v4087
  %v4177 = vunpack.c.h.b16 %v4087
  %v4178 = vunpack.c.l.b16 %v4088
  %v4179 = vunpack.c.h.b16 %v4088
  %v4180 = vunpack.c.l.b16 %v4089
  %v4181 = vunpack.c.h.b16 %v4089
  %v4182 = vunpack.c.l.b16 %v4090
  %v4183 = vunpack.c.h.b16 %v4090
  %v4184 = vunpack.c.l.b16 %v4091
  %v4185 = vunpack.c.h.b16 %v4091
  %v4186 = vunpack.c.l.b16 %v4092
  %v4187 = vunpack.c.h.b16 %v4092
  %v4188 = vunpack.c.l.b16 %v4093
  %v4189 = vunpack.c.h.b16 %v4093
  %v4190 = vpack.c.b16 %v4128, %v4126
  %v4191 = vpack.c.b16 %v4129, %v4127
  %v4192 = vpack.c.b16 %v4132, %v4130
  %v4193 = vpack.c.b16 %v4133, %v4131
  %v4194 = vpack.c.b16 %v4136, %v4134
  %v4195 = vpack.c.b16 %v4137, %v4135
  %v4196 = vpack.c.b16 %v4140, %v4138
  %v4197 = vpack.c.b16 %v4141, %v4139
  %v4198 = vpack.c.b16 %v4144, %v4142
  %v4199 = vpack.c.b16 %v4145, %v4143
  %v4200 = vpack.c.b16 %v4148, %v4146
  %v4201 = vpack.c.b16 %v4149, %v4147
  %v4202 = vpack.c.b16 %v4152, %v4150
  %v4203 = vpack.c.b16 %v4153, %v4151
  %v4204 = vpack.c.b16 %v4156, %v4154
  %v4205 = vpack.c.b16 %v4157, %v4155
  %v4206 = vpack.c.b16 %v4160, %v4158
  %v4207 = vpack.c.b16 %v4161, %v4159
  %v4208 = vpack.c.b16 %v4164, %v4162
  %v4209 = vpack.c.b16 %v4165, %v4163
  %v4210 = vpack.c.b16 %v4168, %v4166
  %v4211 = vpack.c.b16 %v4169, %v4167
  %v4212 = vpack.c.b16 %v4172, %v4170
  %v4213 = vpack.c.b16 %v4173, %v4171
  %v4214 = vpack.c.b16 %v4176, %v4174
  %v4215 = vpack.c.b16 %v4177, %v4175
  %v4216 = vpack.c.b16 %v4180, %v4178
  %v4217 = vpack.c.b16 %v4181, %v4179
  %v4218 = vpack.c.b16 %v4184, %v4182
  %v4219 = vpack.c.b16 %v4185, %v4183
  %v4220 = vpack.c.b16 %v4188, %v4186
  %v4221 = vpack.c.b16 %v4189, %v4187
  %4254 = vmatprep.subr.bf16.mxu0 %v4191
  %4255 = vmatpush1.bf16.msra.mxu0 %v4190
  %4256 = vmatprep.subr.bf16.mxu0 %v4193
  %4257 = vmatpush1.bf16.msra.mxu0 %v4192
  %4258 = vmatprep.subr.bf16.mxu0 %v4195
  %4259 = vmatpush1.bf16.msra.mxu0 %v4194
  %4260 = vmatprep.subr.bf16.mxu0 %v4197
  %4261 = vmatpush1.bf16.msra.mxu0 %v4196
  %4262 = vmatprep.subr.bf16.mxu0 %v4199
  %4263 = vmatpush1.bf16.msra.mxu0 %v4198
  %4264 = vmatprep.subr.bf16.mxu0 %v4201
  %4265 = vmatpush1.bf16.msra.mxu0 %v4200
  %4266 = vmatprep.subr.bf16.mxu0 %v4203
  %4267 = vmatpush1.bf16.msra.mxu0 %v4202
  %4268 = vmatprep.subr.bf16.mxu0 %v4205
  %4269 = vmatpush1.bf16.msra.mxu0 %v4204
  %4270 = vmatprep.subr.bf16.mxu0 %v4207
  %4271 = vmatpush1.bf16.msra.mxu0 %v4206
  %4272 = vmatprep.subr.bf16.mxu0 %v4209
  %4273 = vmatpush1.bf16.msra.mxu0 %v4208
  %4274 = vmatprep.subr.bf16.mxu0 %v4211
  %4275 = vmatpush1.bf16.msra.mxu0 %v4210
  %4276 = vmatprep.subr.bf16.mxu0 %v4213
  %4277 = vmatpush1.bf16.msra.mxu0 %v4212
  %4278 = vmatprep.subr.bf16.mxu0 %v4215
  %4279 = vmatpush1.bf16.msra.mxu0 %v4214
  %4280 = vmatprep.subr.bf16.mxu0 %v4217
  %4281 = vmatpush1.bf16.msra.mxu0 %v4216
  %4282 = vmatprep.subr.bf16.mxu0 %v4219
  %4283 = vmatpush1.bf16.msra.mxu0 %v4218
  %4284 = vmatprep.subr.bf16.mxu0 %v4221
  %4285 = vmatpush1.bf16.msra.mxu0 %v4220
  %4286 = vmatprep.mubr.bf16.mxu0 %v4038
  %4287 = vmatmul.mubr.bf16.gmra.mrb[0].mxu0 %v4037
  %v4288 = vpop.f32.mrb[0].mxu0
  %v4289 = vadd.f32 0.0, %v4288
  %v4290 = vpop.f32.mrb[0].mxu0
  %v4291 = vadd.f32 0.0, %v4290
  %v4292 = vpop.f32.mrb[0].mxu0
  %v4293 = vadd.f32 0.0, %v4292
  %v4294 = vpop.f32.mrb[0].mxu0
  %v4295 = vadd.f32 0.0, %v4294
  %4296 = vmatprep.mubr.bf16.mxu0 %v4040
  %4297 = vmatmul.mubr.bf16.gmra.mrb[0].mxu0 %v4039
  %v4298 = vpop.f32.mrb[0].mxu0
  %v4299 = vadd.f32 0.0, %v4298
  %v4300 = vpop.f32.mrb[0].mxu0
  %v4301 = vadd.f32 0.0, %v4300
  %v4302 = vpop.f32.mrb[0].mxu0
  %v4303 = vadd.f32 0.0, %v4302
  %v4304 = vpop.f32.mrb[0].mxu0
  %v4305 = vadd.f32 0.0, %v4304
  %4306 = vmatprep.mubr.bf16.mxu0 %v4042
  %4307 = vmatmul.mubr.bf16.gmra.mrb[0].mxu0 %v4041
  %v4308 = vpop.f32.mrb[0].mxu0
  %v4309 = vadd.f32 0.0, %v4308
  %v4310 = vpop.f32.mrb[0].mxu0
  %v4311 = vadd.f32 0.0, %v4310
  %v4312 = vpop.f32.mrb[0].mxu0
  %v4313 = vadd.f32 0.0, %v4312
  %v4314 = vpop.f32.mrb[0].mxu0
  %v4315 = vadd.f32 0.0, %v4314
  %4316 = vmatprep.mubr.bf16.mxu0 %v4044
  %4317 = vmatmul.mubr.bf16.gmra.mrb[0].mxu0 %v4043
  %v4318 = vpop.f32.mrb[0].mxu0
  %v4319 = vadd.f32 0.0, %v4318
  %v4320 = vpop.f32.mrb[0].mxu0
  %v4321 = vadd.f32 0.0, %v4320
  %v4322 = vpop.f32.mrb[0].mxu0
  %v4323 = vadd.f32 0.0, %v4322
  %v4324 = vpop.f32.mrb[0].mxu0
  %v4325 = vadd.f32 0.0, %v4324
  %4326 = vmatprep.mubr.bf16.mxu0 %v4046
  %4327 = vmatmul.mubr.bf16.gmra.mrb[0].mxu0 %v4045
  %v4328 = vpop.f32.mrb[0].mxu0
  %v4329 = vadd.f32 0.0, %v4328
  %v4330 = vpop.f32.mrb[0].mxu0
  %v4331 = vadd.f32 0.0, %v4330
  %v4332 = vpop.f32.mrb[0].mxu0
  %v4333 = vadd.f32 0.0, %v4332
  %v4334 = vpop.f32.mrb[0].mxu0
  %v4335 = vadd.f32 0.0, %v4334
  %4336 = vmatprep.mubr.bf16.mxu0 %v4048
  %4337 = vmatmul.mubr.bf16.gmra.mrb[0].mxu0 %v4047
  %v4338 = vpop.f32.mrb[0].mxu0
  %v4339 = vadd.f32 0.0, %v4338
  %v4340 = vpop.f32.mrb[0].mxu0
  %v4341 = vadd.f32 0.0, %v4340
  %v4342 = vpop.f32.mrb[0].mxu0
  %v4343 = vadd.f32 0.0, %v4342
  %v4344 = vpop.f32.mrb[0].mxu0
  %v4345 = vadd.f32 0.0, %v4344
  %4346 = vmatprep.mubr.bf16.mxu0 %v4050
  %4347 = vmatmul.mubr.bf16.gmra.mrb[0].mxu0 %v4049
  %v4348 = vpop.f32.mrb[0].mxu0
  %v4349 = vadd.f32 0.0, %v4348
  %v4350 = vpop.f32.mrb[0].mxu0
  %v4351 = vadd.f32 0.0, %v4350
  %v4352 = vpop.f32.mrb[0].mxu0
  %v4353 = vadd.f32 0.0, %v4352
  %v4354 = vpop.f32.mrb[0].mxu0
  %v4355 = vadd.f32 0.0, %v4354
  %4356 = vmatprep.mubr.bf16.mxu0 %v4052
  %4357 = vmatmul.mubr.bf16.gmra.mrb[0].mxu0 %v4051
  %v4358 = vpop.f32.mrb[0].mxu0
  %v4359 = vadd.f32 0.0, %v4358
  %v4360 = vpop.f32.mrb[0].mxu0
  %v4361 = vadd.f32 0.0, %v4360
  %v4362 = vpop.f32.mrb[0].mxu0
  %v4363 = vadd.f32 0.0, %v4362
  %v4364 = vpop.f32.mrb[0].mxu0
  %v4365 = vadd.f32 0.0, %v4364
  %4366 = vmatprep.mubr.bf16.mxu0 %v4054
  %4367 = vmatmul.mubr.bf16.gmra.mrb[0].mxu0 %v4053
  %v4368 = vpop.f32.mrb[0].mxu0
  %v4369 = vadd.f32 0.0, %v4368
  %v4370 = vpop.f32.mrb[0].mxu0
  %v4371 = vadd.f32 0.0, %v4370
  %v4372 = vpop.f32.mrb[0].mxu0
  %v4373 = vadd.f32 0.0, %v4372
  %v4374 = vpop.f32.mrb[0].mxu0
  %v4375 = vadd.f32 0.0, %v4374
  %4376 = vmatprep.mubr.bf16.mxu0 %v4056
  %4377 = vmatmul.mubr.bf16.gmra.mrb[0].mxu0 %v4055
  %v4378 = vpop.f32.mrb[0].mxu0
  %v4379 = vadd.f32 0.0, %v4378
  %v4380 = vpop.f32.mrb[0].mxu0
  %v4381 = vadd.f32 0.0, %v4380
  %v4382 = vpop.f32.mrb[0].mxu0
  %v4383 = vadd.f32 0.0, %v4382
  %v4384 = vpop.f32.mrb[0].mxu0
  %v4385 = vadd.f32 0.0, %v4384
  %4386 = vmatprep.mubr.bf16.mxu0 %v4058
  %4387 = vmatmul.mubr.bf16.gmra.mrb[0].mxu0 %v4057
  %v4388 = vpop.f32.mrb[0].mxu0
  %v4389 = vadd.f32 0.0, %v4388
  %v4390 = vpop.f32.mrb[0].mxu0
  %v4391 = vadd.f32 0.0, %v4390
  %v4392 = vpop.f32.mrb[0].mxu0
  %v4393 = vadd.f32 0.0, %v4392
  %v4394 = vpop.f32.mrb[0].mxu0
  %v4395 = vadd.f32 0.0, %v4394
  %4396 = vmatprep.mubr.bf16.mxu0 %v4060
  %4397 = vmatmul.mubr.bf16.gmra.mrb[0].mxu0 %v4059
  %v4398 = vpop.f32.mrb[0].mxu0
  %v4399 = vadd.f32 0.0, %v4398
  %v4400 = vpop.f32.mrb[0].mxu0
  %v4401 = vadd.f32 0.0, %v4400
  %v4402 = vpop.f32.mrb[0].mxu0
  %v4403 = vadd.f32 0.0, %v4402
  %v4404 = vpop.f32.mrb[0].mxu0
  %v4405 = vadd.f32 0.0, %v4404
  %4406 = vdwg.mxu0
  %v4407 = vadd.f32 %v3989, %v4289
  %v4408 = vadd.f32 %v3990, %v4291
  %v4409 = vadd.f32 %v3991, %v4293
  %v4410 = vadd.f32 %v3992, %v4295
  %v4411 = vadd.f32 %v3993, %v4299
  %v4412 = vadd.f32 %v3994, %v4301
  %v4413 = vadd.f32 %v3995, %v4303
  %v4414 = vadd.f32 %v3996, %v4305
  %v4415 = vadd.f32 %v3997, %v4309
  %v4416 = vadd.f32 %v3998, %v4311
  %v4417 = vadd.f32 %v3999, %v4313
  %v4418 = vadd.f32 %v4000, %v4315
  %v4419 = vadd.f32 %v4001, %v4319
  %v4420 = vadd.f32 %v4002, %v4321
  %v4421 = vadd.f32 %v4003, %v4323
  %v4422 = vadd.f32 %v4004, %v4325
  %v4423 = vadd.f32 %v4005, %v4329
  %v4424 = vadd.f32 %v4006, %v4331
  %v4425 = vadd.f32 %v4007, %v4333
  %v4426 = vadd.f32 %v4008, %v4335
  %v4427 = vadd.f32 %v4009, %v4339
  %v4428 = vadd.f32 %v4010, %v4341
  %v4429 = vadd.f32 %v4011, %v4343
  %v4430 = vadd.f32 %v4012, %v4345
  %v4431 = vadd.f32 %v4013, %v4349
  %v4432 = vadd.f32 %v4014, %v4351
  %v4433 = vadd.f32 %v4015, %v4353
  %v4434 = vadd.f32 %v4016, %v4355
  %v4435 = vadd.f32 %v4017, %v4359
  %v4436 = vadd.f32 %v4018, %v4361
  %v4437 = vadd.f32 %v4019, %v4363
  %v4438 = vadd.f32 %v4020, %v4365
  %v4439 = vadd.f32 %v4021, %v4369
  %v4440 = vadd.f32 %v4022, %v4371
  %v4441 = vadd.f32 %v4023, %v4373
  %v4442 = vadd.f32 %v4024, %v4375
  %v4443 = vadd.f32 %v4025, %v4379
  %v4444 = vadd.f32 %v4026, %v4381
  %v4445 = vadd.f32 %v4027, %v4383
  %v4446 = vadd.f32 %v4028, %v4385
  %v4447 = vadd.f32 %v4029, %v4389
  %v4448 = vadd.f32 %v4030, %v4391
  %v4449 = vadd.f32 %v4031, %v4393
  %v4450 = vadd.f32 %v4032, %v4395
  %v4451 = vadd.f32 %v4033, %v4399
  %v4452 = vadd.f32 %v4034, %v4401
  %v4453 = vadd.f32 %v4035, %v4403
  %v4454 = vadd.f32 %v4036, %v4405
  %v4455 = vld [vmem:[#allocation2 + $0xa0] sm:$0xff]
  %v4456 = vld [vmem:[#allocation2 + $0xa8] sm:$0xff]
  %v4457 = vld [vmem:[#allocation2 + $0xb0] sm:$0xff]
  %v4458 = vld [vmem:[#allocation2 + $0xb8] sm:$0xff]
  %v4459 = vld [vmem:[#allocation2 + $0xc0] sm:$0xff]
  %v4460 = vld [vmem:[#allocation2 + $0xc8] sm:$0xff]
  %v4461 = vld [vmem:[#allocation2 + $0xd0] sm:$0xff]
  %v4462 = vld [vmem:[#allocation2 + $0xd8] sm:$0xff]
  %v4463 = vld [vmem:[#allocation2 + $0xe0] sm:$0xff]
  %v4464 = vld [vmem:[#allocation2 + $0xe8] sm:$0xff]
  %v4465 = vld [vmem:[#allocation2 + $0xf0] sm:$0xff]
  %v4466 = vld [vmem:[#allocation2 + $0xf8] sm:$0xff]
  %v4467 = vld [vmem:[#allocation2 + $0x100] sm:$0xff]
  %v4468 = vld [vmem:[#allocation2 + $0x108] sm:$0xff]
  %v4469 = vld [vmem:[#allocation2 + $0x110] sm:$0xff]
  %v4470 = vld [vmem:[#allocation2 + $0x118] sm:$0xff]
  %v4471 = vld [vmem:[#allocation2 + $0x120] sm:$0xff]
  %v4472 = vld [vmem:[#allocation2 + $0x128] sm:$0xff]
  %v4473 = vld [vmem:[#allocation2 + $0x130] sm:$0xff]
  %v4474 = vld [vmem:[#allocation2 + $0x138] sm:$0xff]
  %v4475 = vld [vmem:[#allocation2 + $0x140] sm:$0xff]
  %v4476 = vld [vmem:[#allocation2 + $0x148] sm:$0xff]
  %v4477 = vld [vmem:[#allocation2 + $0x150] sm:$0xff]
  %v4478 = vld [vmem:[#allocation2 + $0x158] sm:$0xff]
  %s4479 = scalar_lea.vmem %s2, 1280
  %v4480 = vld [vmem:[%s4479] sm:$0xff]
  %v4481 = vld [vmem:[%s4479 + $0x8] sm:$0xff]
  %v4482 = vld [vmem:[%s4479 + $0x10] sm:$0xff]
  %v4483 = vld [vmem:[%s4479 + $0x18] sm:$0xff]
  %v4484 = vld [vmem:[%s4479 + $0x20] sm:$0xff]
  %v4485 = vld [vmem:[%s4479 + $0x28] sm:$0xff]
  %v4486 = vld [vmem:[%s4479 + $0x30] sm:$0xff]
  %v4487 = vld [vmem:[%s4479 + $0x38] sm:$0xff]
  %v4488 = vld [vmem:[%s4479 + $0x40] sm:$0xff]
  %v4489 = vld [vmem:[%s4479 + $0x48] sm:$0xff]
  %v4490 = vld [vmem:[%s4479 + $0x50] sm:$0xff]
  %v4491 = vld [vmem:[%s4479 + $0x58] sm:$0xff]
  %v4492 = vld [vmem:[%s4479 + $0x60] sm:$0xff]
  %v4493 = vld [vmem:[%s4479 + $0x68] sm:$0xff]
  %v4494 = vld [vmem:[%s4479 + $0x70] sm:$0xff]
  %v4495 = vld [vmem:[%s4479 + $0x78] sm:$0xff]
  %v4496 = vld [vmem:[%s4479 + $0x80] sm:$0xff]
  %v4497 = vld [vmem:[%s4479 + $0x88] sm:$0xff]
  %v4498 = vld [vmem:[%s4479 + $0x90] sm:$0xff]
  %v4499 = vld [vmem:[%s4479 + $0x98] sm:$0xff]
  %v4500 = vld [vmem:[%s4479 + $0xa0] sm:$0xff]
  %v4501 = vld [vmem:[%s4479 + $0xa8] sm:$0xff]
  %v4502 = vld [vmem:[%s4479 + $0xb0] sm:$0xff]
  %v4503 = vld [vmem:[%s4479 + $0xb8] sm:$0xff]
  %v4504 = vld [vmem:[%s4479 + $0xc0] sm:$0xff]
  %v4505 = vld [vmem:[%s4479 + $0xc8] sm:$0xff]
  %v4506 = vld [vmem:[%s4479 + $0xd0] sm:$0xff]
  %v4507 = vld [vmem:[%s4479 + $0xd8] sm:$0xff]
  %v4508 = vld [vmem:[%s4479 + $0xe0] sm:$0xff]
  %v4509 = vld [vmem:[%s4479 + $0xe8] sm:$0xff]
  %v4510 = vld [vmem:[%s4479 + $0xf0] sm:$0xff]
  %v4511 = vld [vmem:[%s4479 + $0xf8] sm:$0xff]
  %v4544 = vunpack.c.l.b16 %v4480
  %v4545 = vunpack.c.h.b16 %v4480
  %v4546 = vunpack.c.l.b16 %v4481
  %v4547 = vunpack.c.h.b16 %v4481
  %v4548 = vunpack.c.l.b16 %v4482
  %v4549 = vunpack.c.h.b16 %v4482
  %v4550 = vunpack.c.l.b16 %v4483
  %v4551 = vunpack.c.h.b16 %v4483
  %v4552 = vunpack.c.l.b16 %v4484
  %v4553 = vunpack.c.h.b16 %v4484
  %v4554 = vunpack.c.l.b16 %v4485
  %v4555 = vunpack.c.h.b16 %v4485
  %v4556 = vunpack.c.l.b16 %v4486
  %v4557 = vunpack.c.h.b16 %v4486
  %v4558 = vunpack.c.l.b16 %v4487
  %v4559 = vunpack.c.h.b16 %v4487
  %v4560 = vunpack.c.l.b16 %v4488
  %v4561 = vunpack.c.h.b16 %v4488
  %v4562 = vunpack.c.l.b16 %v4489
  %v4563 = vunpack.c.h.b16 %v4489
  %v4564 = vunpack.c.l.b16 %v4490
  %v4565 = vunpack.c.h.b16 %v4490
  %v4566 = vunpack.c.l.b16 %v4491
  %v4567 = vunpack.c.h.b16 %v4491
  %v4568 = vunpack.c.l.b16 %v4492
  %v4569 = vunpack.c.h.b16 %v4492
  %v4570 = vunpack.c.l.b16 %v4493
  %v4571 = vunpack.c.h.b16 %v4493
  %v4572 = vunpack.c.l.b16 %v4494
  %v4573 = vunpack.c.h.b16 %v4494
  %v4574 = vunpack.c.l.b16 %v4495
  %v4575 = vunpack.c.h.b16 %v4495
  %v4576 = vunpack.c.l.b16 %v4496
  %v4577 = vunpack.c.h.b16 %v4496
  %v4578 = vunpack.c.l.b16 %v4497
  %v4579 = vunpack.c.h.b16 %v4497
  %v4580 = vunpack.c.l.b16 %v4498
  %v4581 = vunpack.c.h.b16 %v4498
  %v4582 = vunpack.c.l.b16 %v4499
  %v4583 = vunpack.c.h.b16 %v4499
  %v4584 = vunpack.c.l.b16 %v4500
  %v4585 = vunpack.c.h.b16 %v4500
  %v4586 = vunpack.c.l.b16 %v4501
  %v4587 = vunpack.c.h.b16 %v4501
  %v4588 = vunpack.c.l.b16 %v4502
  %v4589 = vunpack.c.h.b16 %v4502
  %v4590 = vunpack.c.l.b16 %v4503
  %v4591 = vunpack.c.h.b16 %v4503
  %v4592 = vunpack.c.l.b16 %v4504
  %v4593 = vunpack.c.h.b16 %v4504
  %v4594 = vunpack.c.l.b16 %v4505
  %v4595 = vunpack.c.h.b16 %v4505
  %v4596 = vunpack.c.l.b16 %v4506
  %v4597 = vunpack.c.h.b16 %v4506
  %v4598 = vunpack.c.l.b16 %v4507
  %v4599 = vunpack.c.h.b16 %v4507
  %v4600 = vunpack.c.l.b16 %v4508
  %v4601 = vunpack.c.h.b16 %v4508
  %v4602 = vunpack.c.l.b16 %v4509
  %v4603 = vunpack.c.h.b16 %v4509
  %v4604 = vunpack.c.l.b16 %v4510
  %v4605 = vunpack.c.h.b16 %v4510
  %v4606 = vunpack.c.l.b16 %v4511
  %v4607 = vunpack.c.h.b16 %v4511
  %v4608 = vpack.c.b16 %v4546, %v4544
  %v4609 = vpack.c.b16 %v4547, %v4545
  %v4610 = vpack.c.b16 %v4550, %v4548
  %v4611 = vpack.c.b16 %v4551, %v4549
  %v4612 = vpack.c.b16 %v4554, %v4552
  %v4613 = vpack.c.b16 %v4555, %v4553
  %v4614 = vpack.c.b16 %v4558, %v4556
  %v4615 = vpack.c.b16 %v4559, %v4557
  %v4616 = vpack.c.b16 %v4562, %v4560
  %v4617 = vpack.c.b16 %v4563, %v4561
  %v4618 = vpack.c.b16 %v4566, %v4564
  %v4619 = vpack.c.b16 %v4567, %v4565
  %v4620 = vpack.c.b16 %v4570, %v4568
  %v4621 = vpack.c.b16 %v4571, %v4569
  %v4622 = vpack.c.b16 %v4574, %v4572
  %v4623 = vpack.c.b16 %v4575, %v4573
  %v4624 = vpack.c.b16 %v4578, %v4576
  %v4625 = vpack.c.b16 %v4579, %v4577
  %v4626 = vpack.c.b16 %v4582, %v4580
  %v4627 = vpack.c.b16 %v4583, %v4581
  %v4628 = vpack.c.b16 %v4586, %v4584
  %v4629 = vpack.c.b16 %v4587, %v4585
  %v4630 = vpack.c.b16 %v4590, %v4588
  %v4631 = vpack.c.b16 %v4591, %v4589
  %v4632 = vpack.c.b16 %v4594, %v4592
  %v4633 = vpack.c.b16 %v4595, %v4593
  %v4634 = vpack.c.b16 %v4598, %v4596
  %v4635 = vpack.c.b16 %v4599, %v4597
  %v4636 = vpack.c.b16 %v4602, %v4600
  %v4637 = vpack.c.b16 %v4603, %v4601
  %v4638 = vpack.c.b16 %v4606, %v4604
  %v4639 = vpack.c.b16 %v4607, %v4605
  %4672 = vmatprep.subr.bf16.mxu0 %v4609
  %4673 = vmatpush1.bf16.msra.mxu0 %v4608
  %4674 = vmatprep.subr.bf16.mxu0 %v4611
  %4675 = vmatpush1.bf16.msra.mxu0 %v4610
  %4676 = vmatprep.subr.bf16.mxu0 %v4613
  %4677 = vmatpush1.bf16.msra.mxu0 %v4612
  %4678 = vmatprep.subr.bf16.mxu0 %v4615
  %4679 = vmatpush1.bf16.msra.mxu0 %v4614
  %4680 = vmatprep.subr.bf16.mxu0 %v4617
  %4681 = vmatpush1.bf16.msra.mxu0 %v4616
  %4682 = vmatprep.subr.bf16.mxu0 %v4619
  %4683 = vmatpush1.bf16.msra.mxu0 %v4618
  %4684 = vmatprep.subr.bf16.mxu0 %v4621
  %4685 = vmatpush1.bf16.msra.mxu0 %v4620
  %4686 = vmatprep.subr.bf16.mxu0 %v4623
  %4687 = vmatpush1.bf16.msra.mxu0 %v4622
  %4688 = vmatprep.subr.bf16.mxu0 %v4625
  %4689 = vmatpush1.bf16.msra.mxu0 %v4624
  %4690 = vmatprep.subr.bf16.mxu0 %v4627
  %4691 = vmatpush1.bf16.msra.mxu0 %v4626
  %4692 = vmatprep.subr.bf16.mxu0 %v4629
  %4693 = vmatpush1.bf16.msra.mxu0 %v4628
  %4694 = vmatprep.subr.bf16.mxu0 %v4631
  %4695 = vmatpush1.bf16.msra.mxu0 %v4630
  %4696 = vmatprep.subr.bf16.mxu0 %v4633
  %4697 = vmatpush1.bf16.msra.mxu0 %v4632
  %4698 = vmatprep.subr.bf16.mxu0 %v4635
  %4699 = vmatpush1.bf16.msra.mxu0 %v4634
  %4700 = vmatprep.subr.bf16.mxu0 %v4637
  %4701 = vmatpush1.bf16.msra.mxu0 %v4636
  %4702 = vmatprep.subr.bf16.mxu0 %v4639
  %4703 = vmatpush1.bf16.msra.mxu0 %v4638
  %4704 = vmatprep.mubr.bf16.mxu0 %v4456
  %4705 = vmatmul.mubr.bf16.gmra.mrb[0].mxu0 %v4455
  %v4706 = vpop.f32.mrb[0].mxu0
  %v4707 = vadd.f32 0.0, %v4706
  %v4708 = vpop.f32.mrb[0].mxu0
  %v4709 = vadd.f32 0.0, %v4708
  %v4710 = vpop.f32.mrb[0].mxu0
  %v4711 = vadd.f32 0.0, %v4710
  %v4712 = vpop.f32.mrb[0].mxu0
  %v4713 = vadd.f32 0.0, %v4712
  %4714 = vmatprep.mubr.bf16.mxu0 %v4458
  %4715 = vmatmul.mubr.bf16.gmra.mrb[0].mxu0 %v4457
  %v4716 = vpop.f32.mrb[0].mxu0
  %v4717 = vadd.f32 0.0, %v4716
  %v4718 = vpop.f32.mrb[0].mxu0
  %v4719 = vadd.f32 0.0, %v4718
  %v4720 = vpop.f32.mrb[0].mxu0
  %v4721 = vadd.f32 0.0, %v4720
  %v4722 = vpop.f32.mrb[0].mxu0
  %v4723 = vadd.f32 0.0, %v4722
  %4724 = vmatprep.mubr.bf16.mxu0 %v4460
  %4725 = vmatmul.mubr.bf16.gmra.mrb[0].mxu0 %v4459
  %v4726 = vpop.f32.mrb[0].mxu0
  %v4727 = vadd.f32 0.0, %v4726
  %v4728 = vpop.f32.mrb[0].mxu0
  %v4729 = vadd.f32 0.0, %v4728
  %v4730 = vpop.f32.mrb[0].mxu0
  %v4731 = vadd.f32 0.0, %v4730
  %v4732 = vpop.f32.mrb[0].mxu0
  %v4733 = vadd.f32 0.0, %v4732
  %4734 = vmatprep.mubr.bf16.mxu0 %v4462
  %4735 = vmatmul.mubr.bf16.gmra.mrb[0].mxu0 %v4461
  %v4736 = vpop.f32.mrb[0].mxu0
  %v4737 = vadd.f32 0.0, %v4736
  %v4738 = vpop.f32.mrb[0].mxu0
  %v4739 = vadd.f32 0.0, %v4738
  %v4740 = vpop.f32.mrb[0].mxu0
  %v4741 = vadd.f32 0.0, %v4740
  %v4742 = vpop.f32.mrb[0].mxu0
  %v4743 = vadd.f32 0.0, %v4742
  %4744 = vmatprep.mubr.bf16.mxu0 %v4464
  %4745 = vmatmul.mubr.bf16.gmra.mrb[0].mxu0 %v4463
  %v4746 = vpop.f32.mrb[0].mxu0
  %v4747 = vadd.f32 0.0, %v4746
  %v4748 = vpop.f32.mrb[0].mxu0
  %v4749 = vadd.f32 0.0, %v4748
  %v4750 = vpop.f32.mrb[0].mxu0
  %v4751 = vadd.f32 0.0, %v4750
  %v4752 = vpop.f32.mrb[0].mxu0
  %v4753 = vadd.f32 0.0, %v4752
  %4754 = vmatprep.mubr.bf16.mxu0 %v4466
  %4755 = vmatmul.mubr.bf16.gmra.mrb[0].mxu0 %v4465
  %v4756 = vpop.f32.mrb[0].mxu0
  %v4757 = vadd.f32 0.0, %v4756
  %v4758 = vpop.f32.mrb[0].mxu0
  %v4759 = vadd.f32 0.0, %v4758
  %v4760 = vpop.f32.mrb[0].mxu0
  %v4761 = vadd.f32 0.0, %v4760
  %v4762 = vpop.f32.mrb[0].mxu0
  %v4763 = vadd.f32 0.0, %v4762
  %4764 = vmatprep.mubr.bf16.mxu0 %v4468
  %4765 = vmatmul.mubr.bf16.gmra.mrb[0].mxu0 %v4467
  %v4766 = vpop.f32.mrb[0].mxu0
  %v4767 = vadd.f32 0.0, %v4766
  %v4768 = vpop.f32.mrb[0].mxu0
  %v4769 = vadd.f32 0.0, %v4768
  %v4770 = vpop.f32.mrb[0].mxu0
  %v4771 = vadd.f32 0.0, %v4770
  %v4772 = vpop.f32.mrb[0].mxu0
  %v4773 = vadd.f32 0.0, %v4772
  %4774 = vmatprep.mubr.bf16.mxu0 %v4470
  %4775 = vmatmul.mubr.bf16.gmra.mrb[0].mxu0 %v4469
  %v4776 = vpop.f32.mrb[0].mxu0
  %v4777 = vadd.f32 0.0, %v4776
  %v4778 = vpop.f32.mrb[0].mxu0
  %v4779 = vadd.f32 0.0, %v4778
  %v4780 = vpop.f32.mrb[0].mxu0
  %v4781 = vadd.f32 0.0, %v4780
  %v4782 = vpop.f32.mrb[0].mxu0
  %v4783 = vadd.f32 0.0, %v4782
  %4784 = vmatprep.mubr.bf16.mxu0 %v4472
  %4785 = vmatmul.mubr.bf16.gmra.mrb[0].mxu0 %v4471
  %v4786 = vpop.f32.mrb[0].mxu0
  %v4787 = vadd.f32 0.0, %v4786
  %v4788 = vpop.f32.mrb[0].mxu0
  %v4789 = vadd.f32 0.0, %v4788
  %v4790 = vpop.f32.mrb[0].mxu0
  %v4791 = vadd.f32 0.0, %v4790
  %v4792 = vpop.f32.mrb[0].mxu0
  %v4793 = vadd.f32 0.0, %v4792
  %4794 = vmatprep.mubr.bf16.mxu0 %v4474
  %4795 = vmatmul.mubr.bf16.gmra.mrb[0].mxu0 %v4473
  %v4796 = vpop.f32.mrb[0].mxu0
  %v4797 = vadd.f32 0.0, %v4796
  %v4798 = vpop.f32.mrb[0].mxu0
  %v4799 = vadd.f32 0.0, %v4798
  %v4800 = vpop.f32.mrb[0].mxu0
  %v4801 = vadd.f32 0.0, %v4800
  %v4802 = vpop.f32.mrb[0].mxu0
  %v4803 = vadd.f32 0.0, %v4802
  %4804 = vmatprep.mubr.bf16.mxu0 %v4476
  %4805 = vmatmul.mubr.bf16.gmra.mrb[0].mxu0 %v4475
  %v4806 = vpop.f32.mrb[0].mxu0
  %v4807 = vadd.f32 0.0, %v4806
  %v4808 = vpop.f32.mrb[0].mxu0
  %v4809 = vadd.f32 0.0, %v4808
  %v4810 = vpop.f32.mrb[0].mxu0
  %v4811 = vadd.f32 0.0, %v4810
  %v4812 = vpop.f32.mrb[0].mxu0
  %v4813 = vadd.f32 0.0, %v4812
  %4814 = vmatprep.mubr.bf16.mxu0 %v4478
  %4815 = vmatmul.mubr.bf16.gmra.mrb[0].mxu0 %v4477
  %v4816 = vpop.f32.mrb[0].mxu0
  %v4817 = vadd.f32 0.0, %v4816
  %v4818 = vpop.f32.mrb[0].mxu0
  %v4819 = vadd.f32 0.0, %v4818
  %v4820 = vpop.f32.mrb[0].mxu0
  %v4821 = vadd.f32 0.0, %v4820
  %v4822 = vpop.f32.mrb[0].mxu0
  %v4823 = vadd.f32 0.0, %v4822
  %4824 = vdwg.mxu0
  %v4825 = vadd.f32 %v4407, %v4707
  %v4826 = vadd.f32 %v4408, %v4709
  %v4827 = vadd.f32 %v4409, %v4711
  %v4828 = vadd.f32 %v4410, %v4713
  %v4829 = vadd.f32 %v4411, %v4717
  %v4830 = vadd.f32 %v4412, %v4719
  %v4831 = vadd.f32 %v4413, %v4721
  %v4832 = vadd.f32 %v4414, %v4723
  %v4833 = vadd.f32 %v4415, %v4727
  %v4834 = vadd.f32 %v4416, %v4729
  %v4835 = vadd.f32 %v4417, %v4731
  %v4836 = vadd.f32 %v4418, %v4733
  %v4837 = vadd.f32 %v4419, %v4737
  %v4838 = vadd.f32 %v4420, %v4739
  %v4839 = vadd.f32 %v4421, %v4741
  %v4840 = vadd.f32 %v4422, %v4743
  %v4841 = vadd.f32 %v4423, %v4747
  %v4842 = vadd.f32 %v4424, %v4749
  %v4843 = vadd.f32 %v4425, %v4751
  %v4844 = vadd.f32 %v4426, %v4753
  %v4845 = vadd.f32 %v4427, %v4757
  %v4846 = vadd.f32 %v4428, %v4759
  %v4847 = vadd.f32 %v4429, %v4761
  %v4848 = vadd.f32 %v4430, %v4763
  %v4849 = vadd.f32 %v4431, %v4767
  %v4850 = vadd.f32 %v4432, %v4769
  %v4851 = vadd.f32 %v4433, %v4771
  %v4852 = vadd.f32 %v4434, %v4773
  %v4853 = vadd.f32 %v4435, %v4777
  %v4854 = vadd.f32 %v4436, %v4779
  %v4855 = vadd.f32 %v4437, %v4781
  %v4856 = vadd.f32 %v4438, %v4783
  %v4857 = vadd.f32 %v4439, %v4787
  %v4858 = vadd.f32 %v4440, %v4789
  %v4859 = vadd.f32 %v4441, %v4791
  %v4860 = vadd.f32 %v4442, %v4793
  %v4861 = vadd.f32 %v4443, %v4797
  %v4862 = vadd.f32 %v4444, %v4799
  %v4863 = vadd.f32 %v4445, %v4801
  %v4864 = vadd.f32 %v4446, %v4803
  %v4865 = vadd.f32 %v4447, %v4807
  %v4866 = vadd.f32 %v4448, %v4809
  %v4867 = vadd.f32 %v4449, %v4811
  %v4868 = vadd.f32 %v4450, %v4813
  %v4869 = vadd.f32 %v4451, %v4817
  %v4870 = vadd.f32 %v4452, %v4819
  %v4871 = vadd.f32 %v4453, %v4821
  %v4872 = vadd.f32 %v4454, %v4823
  %v4873 = vld [vmem:[#allocation2 + $0xc0] sm:$0xff]
  %v4874 = vld [vmem:[#allocation2 + $0xc8] sm:$0xff]
  %v4875 = vld [vmem:[#allocation2 + $0xd0] sm:$0xff]
  %v4876 = vld [vmem:[#allocation2 + $0xd8] sm:$0xff]
  %v4877 = vld [vmem:[#allocation2 + $0xe0] sm:$0xff]
  %v4878 = vld [vmem:[#allocation2 + $0xe8] sm:$0xff]
  %v4879 = vld [vmem:[#allocation2 + $0xf0] sm:$0xff]
  %v4880 = vld [vmem:[#allocation2 + $0xf8] sm:$0xff]
  %v4881 = vld [vmem:[#allocation2 + $0x100] sm:$0xff]
  %v4882 = vld [vmem:[#allocation2 + $0x108] sm:$0xff]
  %v4883 = vld [vmem:[#allocation2 + $0x110] sm:$0xff]
  %v4884 = vld [vmem:[#allocation2 + $0x118] sm:$0xff]
  %v4885 = vld [vmem:[#allocation2 + $0x120] sm:$0xff]
  %v4886 = vld [vmem:[#allocation2 + $0x128] sm:$0xff]
  %v4887 = vld [vmem:[#allocation2 + $0x130] sm:$0xff]
  %v4888 = vld [vmem:[#allocation2 + $0x138] sm:$0xff]
  %v4889 = vld [vmem:[#allocation2 + $0x140] sm:$0xff]
  %v4890 = vld [vmem:[#allocation2 + $0x148] sm:$0xff]
  %v4891 = vld [vmem:[#allocation2 + $0x150] sm:$0xff]
  %v4892 = vld [vmem:[#allocation2 + $0x158] sm:$0xff]
  %v4893 = vld [vmem:[#allocation2 + $0x160] sm:$0xff]
  %v4894 = vld [vmem:[#allocation2 + $0x168] sm:$0xff]
  %v4895 = vld [vmem:[#allocation2 + $0x170] sm:$0xff]
  %v4896 = vld [vmem:[#allocation2 + $0x178] sm:$0xff]
  %s4897 = scalar_lea.vmem %s2, 1536
  %v4898 = vld [vmem:[%s4897] sm:$0xff]
  %v4899 = vld [vmem:[%s4897 + $0x8] sm:$0xff]
  %v4900 = vld [vmem:[%s4897 + $0x10] sm:$0xff]
  %v4901 = vld [vmem:[%s4897 + $0x18] sm:$0xff]
  %v4902 = vld [vmem:[%s4897 + $0x20] sm:$0xff]
  %v4903 = vld [vmem:[%s4897 + $0x28] sm:$0xff]
  %v4904 = vld [vmem:[%s4897 + $0x30] sm:$0xff]
  %v4905 = vld [vmem:[%s4897 + $0x38] sm:$0xff]
  %v4906 = vld [vmem:[%s4897 + $0x40] sm:$0xff]
  %v4907 = vld [vmem:[%s4897 + $0x48] sm:$0xff]
  %v4908 = vld [vmem:[%s4897 + $0x50] sm:$0xff]
  %v4909 = vld [vmem:[%s4897 + $0x58] sm:$0xff]
  %v4910 = vld [vmem:[%s4897 + $0x60] sm:$0xff]
  %v4911 = vld [vmem:[%s4897 + $0x68] sm:$0xff]
  %v4912 = vld [vmem:[%s4897 + $0x70] sm:$0xff]
  %v4913 = vld [vmem:[%s4897 + $0x78] sm:$0xff]
  %v4914 = vld [vmem:[%s4897 + $0x80] sm:$0xff]
  %v4915 = vld [vmem:[%s4897 + $0x88] sm:$0xff]
  %v4916 = vld [vmem:[%s4897 + $0x90] sm:$0xff]
  %v4917 = vld [vmem:[%s4897 + $0x98] sm:$0xff]
  %v4918 = vld [vmem:[%s4897 + $0xa0] sm:$0xff]
  %v4919 = vld [vmem:[%s4897 + $0xa8] sm:$0xff]
  %v4920 = vld [vmem:[%s4897 + $0xb0] sm:$0xff]
  %v4921 = vld [vmem:[%s4897 + $0xb8] sm:$0xff]
  %v4922 = vld [vmem:[%s4897 + $0xc0] sm:$0xff]
  %v4923 = vld [vmem:[%s4897 + $0xc8] sm:$0xff]
  %v4924 = vld [vmem:[%s4897 + $0xd0] sm:$0xff]
  %v4925 = vld [vmem:[%s4897 + $0xd8] sm:$0xff]
  %v4926 = vld [vmem:[%s4897 + $0xe0] sm:$0xff]
  %v4927 = vld [vmem:[%s4897 + $0xe8] sm:$0xff]
  %v4928 = vld [vmem:[%s4897 + $0xf0] sm:$0xff]
  %v4929 = vld [vmem:[%s4897 + $0xf8] sm:$0xff]
  %v4962 = vunpack.c.l.b16 %v4898
  %v4963 = vunpack.c.h.b16 %v4898
  %v4964 = vunpack.c.l.b16 %v4899
  %v4965 = vunpack.c.h.b16 %v4899
  %v4966 = vunpack.c.l.b16 %v4900
  %v4967 = vunpack.c.h.b16 %v4900
  %v4968 = vunpack.c.l.b16 %v4901
  %v4969 = vunpack.c.h.b16 %v4901
  %v4970 = vunpack.c.l.b16 %v4902
  %v4971 = vunpack.c.h.b16 %v4902
  %v4972 = vunpack.c.l.b16 %v4903
  %v4973 = vunpack.c.h.b16 %v4903
  %v4974 = vunpack.c.l.b16 %v4904
  %v4975 = vunpack.c.h.b16 %v4904
  %v4976 = vunpack.c.l.b16 %v4905
  %v4977 = vunpack.c.h.b16 %v4905
  %v4978 = vunpack.c.l.b16 %v4906
  %v4979 = vunpack.c.h.b16 %v4906
  %v4980 = vunpack.c.l.b16 %v4907
  %v4981 = vunpack.c.h.b16 %v4907
  %v4982 = vunpack.c.l.b16 %v4908
  %v4983 = vunpack.c.h.b16 %v4908
  %v4984 = vunpack.c.l.b16 %v4909
  %v4985 = vunpack.c.h.b16 %v4909
  %v4986 = vunpack.c.l.b16 %v4910
  %v4987 = vunpack.c.h.b16 %v4910
  %v4988 = vunpack.c.l.b16 %v4911
  %v4989 = vunpack.c.h.b16 %v4911
  %v4990 = vunpack.c.l.b16 %v4912
  %v4991 = vunpack.c.h.b16 %v4912
  %v4992 = vunpack.c.l.b16 %v4913
  %v4993 = vunpack.c.h.b16 %v4913
  %v4994 = vunpack.c.l.b16 %v4914
  %v4995 = vunpack.c.h.b16 %v4914
  %v4996 = vunpack.c.l.b16 %v4915
  %v4997 = vunpack.c.h.b16 %v4915
  %v4998 = vunpack.c.l.b16 %v4916
  %v4999 = vunpack.c.h.b16 %v4916
  %v5000 = vunpack.c.l.b16 %v4917
  %v5001 = vunpack.c.h.b16 %v4917
  %v5002 = vunpack.c.l.b16 %v4918
  %v5003 = vunpack.c.h.b16 %v4918
  %v5004 = vunpack.c.l.b16 %v4919
  %v5005 = vunpack.c.h.b16 %v4919
  %v5006 = vunpack.c.l.b16 %v4920
  %v5007 = vunpack.c.h.b16 %v4920
  %v5008 = vunpack.c.l.b16 %v4921
  %v5009 = vunpack.c.h.b16 %v4921
  %v5010 = vunpack.c.l.b16 %v4922
  %v5011 = vunpack.c.h.b16 %v4922
  %v5012 = vunpack.c.l.b16 %v4923
  %v5013 = vunpack.c.h.b16 %v4923
  %v5014 = vunpack.c.l.b16 %v4924
  %v5015 = vunpack.c.h.b16 %v4924
  %v5016 = vunpack.c.l.b16 %v4925
  %v5017 = vunpack.c.h.b16 %v4925
  %v5018 = vunpack.c.l.b16 %v4926
  %v5019 = vunpack.c.h.b16 %v4926
  %v5020 = vunpack.c.l.b16 %v4927
  %v5021 = vunpack.c.h.b16 %v4927
  %v5022 = vunpack.c.l.b16 %v4928
  %v5023 = vunpack.c.h.b16 %v4928
  %v5024 = vunpack.c.l.b16 %v4929
  %v5025 = vunpack.c.h.b16 %v4929
  %v5026 = vpack.c.b16 %v4964, %v4962
  %v5027 = vpack.c.b16 %v4965, %v4963
  %v5028 = vpack.c.b16 %v4968, %v4966
  %v5029 = vpack.c.b16 %v4969, %v4967
  %v5030 = vpack.c.b16 %v4972, %v4970
  %v5031 = vpack.c.b16 %v4973, %v4971
  %v5032 = vpack.c.b16 %v4976, %v4974
  %v5033 = vpack.c.b16 %v4977, %v4975
  %v5034 = vpack.c.b16 %v4980, %v4978
  %v5035 = vpack.c.b16 %v4981, %v4979
  %v5036 = vpack.c.b16 %v4984, %v4982
  %v5037 = vpack.c.b16 %v4985, %v4983
  %v5038 = vpack.c.b16 %v4988, %v4986
  %v5039 = vpack.c.b16 %v4989, %v4987
  %v5040 = vpack.c.b16 %v4992, %v4990
  %v5041 = vpack.c.b16 %v4993, %v4991
  %v5042 = vpack.c.b16 %v4996, %v4994
  %v5043 = vpack.c.b16 %v4997, %v4995
  %v5044 = vpack.c.b16 %v5000, %v4998
  %v5045 = vpack.c.b16 %v5001, %v4999
  %v5046 = vpack.c.b16 %v5004, %v5002
  %v5047 = vpack.c.b16 %v5005, %v5003
  %v5048 = vpack.c.b16 %v5008, %v5006
  %v5049 = vpack.c.b16 %v5009, %v5007
  %v5050 = vpack.c.b16 %v5012, %v5010
  %v5051 = vpack.c.b16 %v5013, %v5011
  %v5052 = vpack.c.b16 %v5016, %v5014
  %v5053 = vpack.c.b16 %v5017, %v5015
  %v5054 = vpack.c.b16 %v5020, %v5018
  %v5055 = vpack.c.b16 %v5021, %v5019
  %v5056 = vpack.c.b16 %v5024, %v5022
  %v5057 = vpack.c.b16 %v5025, %v5023
  %5090 = vmatprep.subr.bf16.mxu0 %v5027
  %5091 = vmatpush1.bf16.msra.mxu0 %v5026
  %5092 = vmatprep.subr.bf16.mxu0 %v5029
  %5093 = vmatpush1.bf16.msra.mxu0 %v5028
  %5094 = vmatprep.subr.bf16.mxu0 %v5031
  %5095 = vmatpush1.bf16.msra.mxu0 %v5030
  %5096 = vmatprep.subr.bf16.mxu0 %v5033
  %5097 = vmatpush1.bf16.msra.mxu0 %v5032
  %5098 = vmatprep.subr.bf16.mxu0 %v5035
  %5099 = vmatpush1.bf16.msra.mxu0 %v5034
  %5100 = vmatprep.subr.bf16.mxu0 %v5037
  %5101 = vmatpush1.bf16.msra.mxu0 %v5036
  %5102 = vmatprep.subr.bf16.mxu0 %v5039
  %5103 = vmatpush1.bf16.msra.mxu0 %v5038
  %5104 = vmatprep.subr.bf16.mxu0 %v5041
  %5105 = vmatpush1.bf16.msra.mxu0 %v5040
  %5106 = vmatprep.subr.bf16.mxu0 %v5043
  %5107 = vmatpush1.bf16.msra.mxu0 %v5042
  %5108 = vmatprep.subr.bf16.mxu0 %v5045
  %5109 = vmatpush1.bf16.msra.mxu0 %v5044
  %5110 = vmatprep.subr.bf16.mxu0 %v5047
  %5111 = vmatpush1.bf16.msra.mxu0 %v5046
  %5112 = vmatprep.subr.bf16.mxu0 %v5049
  %5113 = vmatpush1.bf16.msra.mxu0 %v5048
  %5114 = vmatprep.subr.bf16.mxu0 %v5051
  %5115 = vmatpush1.bf16.msra.mxu0 %v5050
  %5116 = vmatprep.subr.bf16.mxu0 %v5053
  %5117 = vmatpush1.bf16.msra.mxu0 %v5052
  %5118 = vmatprep.subr.bf16.mxu0 %v5055
  %5119 = vmatpush1.bf16.msra.mxu0 %v5054
  %5120 = vmatprep.subr.bf16.mxu0 %v5057
  %5121 = vmatpush1.bf16.msra.mxu0 %v5056
  %5122 = vmatprep.mubr.bf16.mxu0 %v4874
  %5123 = vmatmul.mubr.bf16.gmra.mrb[0].mxu0 %v4873
  %v5124 = vpop.f32.mrb[0].mxu0
  %v5125 = vadd.f32 0.0, %v5124
  %v5126 = vpop.f32.mrb[0].mxu0
  %v5127 = vadd.f32 0.0, %v5126
  %v5128 = vpop.f32.mrb[0].mxu0
  %v5129 = vadd.f32 0.0, %v5128
  %v5130 = vpop.f32.mrb[0].mxu0
  %v5131 = vadd.f32 0.0, %v5130
  %5132 = vmatprep.mubr.bf16.mxu0 %v4876
  %5133 = vmatmul.mubr.bf16.gmra.mrb[0].mxu0 %v4875
  %v5134 = vpop.f32.mrb[0].mxu0
  %v5135 = vadd.f32 0.0, %v5134
  %v5136 = vpop.f32.mrb[0].mxu0
  %v5137 = vadd.f32 0.0, %v5136
  %v5138 = vpop.f32.mrb[0].mxu0
  %v5139 = vadd.f32 0.0, %v5138
  %v5140 = vpop.f32.mrb[0].mxu0
  %v5141 = vadd.f32 0.0, %v5140
  %5142 = vmatprep.mubr.bf16.mxu0 %v4878
  %5143 = vmatmul.mubr.bf16.gmra.mrb[0].mxu0 %v4877
  %v5144 = vpop.f32.mrb[0].mxu0
  %v5145 = vadd.f32 0.0, %v5144
  %v5146 = vpop.f32.mrb[0].mxu0
  %v5147 = vadd.f32 0.0, %v5146
  %v5148 = vpop.f32.mrb[0].mxu0
  %v5149 = vadd.f32 0.0, %v5148
  %v5150 = vpop.f32.mrb[0].mxu0
  %v5151 = vadd.f32 0.0, %v5150
  %5152 = vmatprep.mubr.bf16.mxu0 %v4880
  %5153 = vmatmul.mubr.bf16.gmra.mrb[0].mxu0 %v4879
  %v5154 = vpop.f32.mrb[0].mxu0
  %v5155 = vadd.f32 0.0, %v5154
  %v5156 = vpop.f32.mrb[0].mxu0
  %v5157 = vadd.f32 0.0, %v5156
  %v5158 = vpop.f32.mrb[0].mxu0
  %v5159 = vadd.f32 0.0, %v5158
  %v5160 = vpop.f32.mrb[0].mxu0
  %v5161 = vadd.f32 0.0, %v5160
  %5162 = vmatprep.mubr.bf16.mxu0 %v4882
  %5163 = vmatmul.mubr.bf16.gmra.mrb[0].mxu0 %v4881
  %v5164 = vpop.f32.mrb[0].mxu0
  %v5165 = vadd.f32 0.0, %v5164
  %v5166 = vpop.f32.mrb[0].mxu0
  %v5167 = vadd.f32 0.0, %v5166
  %v5168 = vpop.f32.mrb[0].mxu0
  %v5169 = vadd.f32 0.0, %v5168
  %v5170 = vpop.f32.mrb[0].mxu0
  %v5171 = vadd.f32 0.0, %v5170
  %5172 = vmatprep.mubr.bf16.mxu0 %v4884
  %5173 = vmatmul.mubr.bf16.gmra.mrb[0].mxu0 %v4883
  %v5174 = vpop.f32.mrb[0].mxu0
  %v5175 = vadd.f32 0.0, %v5174
  %v5176 = vpop.f32.mrb[0].mxu0
  %v5177 = vadd.f32 0.0, %v5176
  %v5178 = vpop.f32.mrb[0].mxu0
  %v5179 = vadd.f32 0.0, %v5178
  %v5180 = vpop.f32.mrb[0].mxu0
  %v5181 = vadd.f32 0.0, %v5180
  %5182 = vmatprep.mubr.bf16.mxu0 %v4886
  %5183 = vmatmul.mubr.bf16.gmra.mrb[0].mxu0 %v4885
  %v5184 = vpop.f32.mrb[0].mxu0
  %v5185 = vadd.f32 0.0, %v5184
  %v5186 = vpop.f32.mrb[0].mxu0
  %v5187 = vadd.f32 0.0, %v5186
  %v5188 = vpop.f32.mrb[0].mxu0
  %v5189 = vadd.f32 0.0, %v5188
  %v5190 = vpop.f32.mrb[0].mxu0
  %v5191 = vadd.f32 0.0, %v5190
  %5192 = vmatprep.mubr.bf16.mxu0 %v4888
  %5193 = vmatmul.mubr.bf16.gmra.mrb[0].mxu0 %v4887
  %v5194 = vpop.f32.mrb[0].mxu0
  %v5195 = vadd.f32 0.0, %v5194
  %v5196 = vpop.f32.mrb[0].mxu0
  %v5197 = vadd.f32 0.0, %v5196
  %v5198 = vpop.f32.mrb[0].mxu0
  %v5199 = vadd.f32 0.0, %v5198
  %v5200 = vpop.f32.mrb[0].mxu0
  %v5201 = vadd.f32 0.0, %v5200
  %5202 = vmatprep.mubr.bf16.mxu0 %v4890
  %5203 = vmatmul.mubr.bf16.gmra.mrb[0].mxu0 %v4889
  %v5204 = vpop.f32.mrb[0].mxu0
  %v5205 = vadd.f32 0.0, %v5204
  %v5206 = vpop.f32.mrb[0].mxu0
  %v5207 = vadd.f32 0.0, %v5206
  %v5208 = vpop.f32.mrb[0].mxu0
  %v5209 = vadd.f32 0.0, %v5208
  %v5210 = vpop.f32.mrb[0].mxu0
  %v5211 = vadd.f32 0.0, %v5210
  %5212 = vmatprep.mubr.bf16.mxu0 %v4892
  %5213 = vmatmul.mubr.bf16.gmra.mrb[0].mxu0 %v4891
  %v5214 = vpop.f32.mrb[0].mxu0
  %v5215 = vadd.f32 0.0, %v5214
  %v5216 = vpop.f32.mrb[0].mxu0
  %v5217 = vadd.f32 0.0, %v5216
  %v5218 = vpop.f32.mrb[0].mxu0
  %v5219 = vadd.f32 0.0, %v5218
  %v5220 = vpop.f32.mrb[0].mxu0
  %v5221 = vadd.f32 0.0, %v5220
  %5222 = vmatprep.mubr.bf16.mxu0 %v4894
  %5223 = vmatmul.mubr.bf16.gmra.mrb[0].mxu0 %v4893
  %v5224 = vpop.f32.mrb[0].mxu0
  %v5225 = vadd.f32 0.0, %v5224
  %v5226 = vpop.f32.mrb[0].mxu0
  %v5227 = vadd.f32 0.0, %v5226
  %v5228 = vpop.f32.mrb[0].mxu0
  %v5229 = vadd.f32 0.0, %v5228
  %v5230 = vpop.f32.mrb[0].mxu0
  %v5231 = vadd.f32 0.0, %v5230
  %5232 = vmatprep.mubr.bf16.mxu0 %v4896
  %5233 = vmatmul.mubr.bf16.gmra.mrb[0].mxu0 %v4895
  %v5234 = vpop.f32.mrb[0].mxu0
  %v5235 = vadd.f32 0.0, %v5234
  %v5236 = vpop.f32.mrb[0].mxu0
  %v5237 = vadd.f32 0.0, %v5236
  %v5238 = vpop.f32.mrb[0].mxu0
  %v5239 = vadd.f32 0.0, %v5238
  %v5240 = vpop.f32.mrb[0].mxu0
  %v5241 = vadd.f32 0.0, %v5240
  %5242 = vdwg.mxu0
  %v5243 = vadd.f32 %v4825, %v5125
  %v5244 = vadd.f32 %v4826, %v5127
  %v5245 = vadd.f32 %v4827, %v5129
  %v5246 = vadd.f32 %v4828, %v5131
  %v5247 = vadd.f32 %v4829, %v5135
  %v5248 = vadd.f32 %v4830, %v5137
  %v5249 = vadd.f32 %v4831, %v5139
  %v5250 = vadd.f32 %v4832, %v5141
  %v5251 = vadd.f32 %v4833, %v5145
  %v5252 = vadd.f32 %v4834, %v5147
  %v5253 = vadd.f32 %v4835, %v5149
  %v5254 = vadd.f32 %v4836, %v5151
  %v5255 = vadd.f32 %v4837, %v5155
  %v5256 = vadd.f32 %v4838, %v5157
  %v5257 = vadd.f32 %v4839, %v5159
  %v5258 = vadd.f32 %v4840, %v5161
  %v5259 = vadd.f32 %v4841, %v5165
  %v5260 = vadd.f32 %v4842, %v5167
  %v5261 = vadd.f32 %v4843, %v5169
  %v5262 = vadd.f32 %v4844, %v5171
  %v5263 = vadd.f32 %v4845, %v5175
  %v5264 = vadd.f32 %v4846, %v5177
  %v5265 = vadd.f32 %v4847, %v5179
  %v5266 = vadd.f32 %v4848, %v5181
  %v5267 = vadd.f32 %v4849, %v5185
  %v5268 = vadd.f32 %v4850, %v5187
  %v5269 = vadd.f32 %v4851, %v5189
  %v5270 = vadd.f32 %v4852, %v5191
  %v5271 = vadd.f32 %v4853, %v5195
  %v5272 = vadd.f32 %v4854, %v5197
  %v5273 = vadd.f32 %v4855, %v5199
  %v5274 = vadd.f32 %v4856, %v5201
  %v5275 = vadd.f32 %v4857, %v5205
  %v5276 = vadd.f32 %v4858, %v5207
  %v5277 = vadd.f32 %v4859, %v5209
  %v5278 = vadd.f32 %v4860, %v5211
  %v5279 = vadd.f32 %v4861, %v5215
  %v5280 = vadd.f32 %v4862, %v5217
  %v5281 = vadd.f32 %v4863, %v5219
  %v5282 = vadd.f32 %v4864, %v5221
  %v5283 = vadd.f32 %v4865, %v5225
  %v5284 = vadd.f32 %v4866, %v5227
  %v5285 = vadd.f32 %v4867, %v5229
  %v5286 = vadd.f32 %v4868, %v5231
  %v5287 = vadd.f32 %v4869, %v5235
  %v5288 = vadd.f32 %v4870, %v5237
  %v5289 = vadd.f32 %v4871, %v5239
  %v5290 = vadd.f32 %v4872, %v5241
  %v5291 = vmax.f32 %v5243, %v5244
  %v5292 = vmax.f32 %v5245, %v5246
  %v5293 = vmax.f32 %v5247, %v5248
  %v5294 = vmax.f32 %v5249, %v5250
  %v5295 = vmax.f32 %v5251, %v5252
  %v5296 = vmax.f32 %v5253, %v5254
  %v5297 = vmax.f32 %v5255, %v5256
  %v5298 = vmax.f32 %v5257, %v5258
  %v5299 = vmax.f32 %v5259, %v5260
  %v5300 = vmax.f32 %v5261, %v5262
  %v5301 = vmax.f32 %v5263, %v5264
  %v5302 = vmax.f32 %v5265, %v5266
  %v5303 = vmax.f32 %v5267, %v5268
  %v5304 = vmax.f32 %v5269, %v5270
  %v5305 = vmax.f32 %v5271, %v5272
  %v5306 = vmax.f32 %v5273, %v5274
  %v5307 = vmax.f32 %v5275, %v5276
  %v5308 = vmax.f32 %v5277, %v5278
  %v5309 = vmax.f32 %v5279, %v5280
  %v5310 = vmax.f32 %v5281, %v5282
  %v5311 = vmax.f32 %v5283, %v5284
  %v5312 = vmax.f32 %v5285, %v5286
  %v5313 = vmax.f32 %v5287, %v5288
  %v5314 = vmax.f32 %v5289, %v5290
  %v5315 = vmax.f32 %v5291, %v5295
  %v5316 = vmax.f32 %v5292, %v5296
  %v5317 = vmax.f32 %v5293, %v5297
  %v5318 = vmax.f32 %v5294, %v5298
  %v5319 = vmax.f32 %v5315, 0.0
  %v5320 = vmax.f32 %v5316, 0.0
  %v5321 = vmax.f32 %v5317, 0.0
  %v5322 = vmax.f32 %v5318, 0.0
  %v5323 = vmax.f32 %v5299, %v5303
  %v5324 = vmax.f32 %v5300, %v5304
  %v5325 = vmax.f32 %v5301, %v5305
  %v5326 = vmax.f32 %v5302, %v5306
  %v5327 = vmax.f32 %v5323, 0.0
  %v5328 = vmax.f32 %v5324, 0.0
  %v5329 = vmax.f32 %v5325, 0.0
  %v5330 = vmax.f32 %v5326, 0.0
  %v5331 = vmax.f32 %v5307, %v5311
  %v5332 = vmax.f32 %v5308, %v5312
  %v5333 = vmax.f32 %v5309, %v5313
  %v5334 = vmax.f32 %v5310, %v5314
  %v5335 = vmax.f32 %v5331, 0.0
  %v5336 = vmax.f32 %v5332, 0.0
  %v5337 = vmax.f32 %v5333, 0.0
  %v5338 = vmax.f32 %v5334, 0.0
  %v5339 = vpack.c.bf16 %v5320, %v5319
  %v5340 = vpack.c.bf16 %v5328, %v5327
  %v5341 = vpack.c.bf16 %v5336, %v5335
  %v5342 = vpack.c.bf16 %v5322, %v5321
  %v5343 = vpack.c.bf16 %v5330, %v5329
  %v5344 = vpack.c.bf16 %v5338, %v5337
  %v5345 = vld [vmem:[%s3] sm:$0xf]
  %v5346 = vld [vmem:[%s3 + $0x4] sm:$0xf]
  %v5347 = vld [vmem:[%s3 + $0x8] sm:$0xf]
  %v5348 = vld [vmem:[%s3 + $0xc] sm:$0xf]
  %v5349 = vld [vmem:[%s3 + $0x10] sm:$0xf]
  %v5350 = vld [vmem:[%s3 + $0x14] sm:$0xf]
  %v5351 = vld [vmem:[%s3 + $0x18] sm:$0xf]
  %v5352 = vld [vmem:[%s3 + $0x1c] sm:$0xf]
  %v5353 = vld [vmem:[%s3 + $0x20] sm:$0xf]
  %v5354 = vld [vmem:[%s3 + $0x24] sm:$0xf]
  %v5355 = vld [vmem:[%s3 + $0x28] sm:$0xf]
  %v5356 = vld [vmem:[%s3 + $0x2c] sm:$0xf]
  %v5357 = vld [vmem:[%s3 + $0x30] sm:$0xf]
  %v5358 = vld [vmem:[%s3 + $0x34] sm:$0xf]
  %v5359 = vld [vmem:[%s3 + $0x38] sm:$0xf]
  %v5360 = vld [vmem:[%s3 + $0x3c] sm:$0xf]
  %v5361 = vld [vmem:[%s3 + $0x40] sm:$0xf]
  %v5362 = vld [vmem:[%s3 + $0x44] sm:$0xf]
  %v5363 = vld [vmem:[%s3 + $0x48] sm:$0xf]
  %v5364 = vld [vmem:[%s3 + $0x4c] sm:$0xf]
  %v5365 = vld [vmem:[%s3 + $0x50] sm:$0xf]
  %v5366 = vld [vmem:[%s3 + $0x54] sm:$0xf]
  %v5367 = vld [vmem:[%s3 + $0x58] sm:$0xf]
  %v5368 = vld [vmem:[%s3 + $0x5c] sm:$0xf]
  %v5369 = vld [vmem:[%s3 + $0x60] sm:$0xf]
  %v5370 = vld [vmem:[%s3 + $0x64] sm:$0xf]
  %v5371 = vld [vmem:[%s3 + $0x68] sm:$0xf]
  %v5372 = vld [vmem:[%s3 + $0x6c] sm:$0xf]
  %v5373 = vld [vmem:[%s3 + $0x70] sm:$0xf]
  %v5374 = vld [vmem:[%s3 + $0x74] sm:$0xf]
  %v5375 = vld [vmem:[%s3 + $0x78] sm:$0xf]
  %v5376 = vld [vmem:[%s3 + $0x7c] sm:$0xf]
  %v5377 = vld [vmem:[%s3 + $0x80] sm:$0xf]
  %v5378 = vld [vmem:[%s3 + $0x84] sm:$0xf]
  %v5379 = vld [vmem:[%s3 + $0x88] sm:$0xf]
  %v5380 = vld [vmem:[%s3 + $0x8c] sm:$0xf]
  %v5381 = vld [vmem:[%s3 + $0x90] sm:$0xf]
  %v5382 = vld [vmem:[%s3 + $0x94] sm:$0xf]
  %v5383 = vld [vmem:[%s3 + $0x98] sm:$0xf]
  %v5384 = vld [vmem:[%s3 + $0x9c] sm:$0xf]
  %v5385 = vld [vmem:[%s3 + $0xa0] sm:$0xf]
  %v5386 = vld [vmem:[%s3 + $0xa4] sm:$0xf]
  %v5387 = vld [vmem:[%s3 + $0xa8] sm:$0xf]
  %v5388 = vld [vmem:[%s3 + $0xac] sm:$0xf]
  %v5389 = vld [vmem:[%s3 + $0xb0] sm:$0xf]
  %v5390 = vld [vmem:[%s3 + $0xb4] sm:$0xf]
  %v5391 = vld [vmem:[%s3 + $0xb8] sm:$0xf]
  %v5392 = vld [vmem:[%s3 + $0xbc] sm:$0xf]
  %v5441 = vunpack.c.l.b16 %v5345
  %v5442 = vunpack.c.l.b16 %v5346
  %v5443 = vunpack.c.l.b16 %v5347
  %v5444 = vunpack.c.l.b16 %v5348
  %v5445 = vunpack.c.l.b16 %v5349
  %v5446 = vunpack.c.l.b16 %v5350
  %v5447 = vunpack.c.l.b16 %v5351
  %v5448 = vunpack.c.l.b16 %v5352
  %v5449 = vunpack.c.l.b16 %v5353
  %v5450 = vunpack.c.l.b16 %v5354
  %v5451 = vunpack.c.l.b16 %v5355
  %v5452 = vunpack.c.l.b16 %v5356
  %v5453 = vunpack.c.l.b16 %v5357
  %v5454 = vunpack.c.l.b16 %v5358
  %v5455 = vunpack.c.l.b16 %v5359
  %v5456 = vunpack.c.l.b16 %v5360
  %v5457 = vunpack.c.l.b16 %v5361
  %v5458 = vunpack.c.l.b16 %v5362
  %v5459 = vunpack.c.l.b16 %v5363
  %v5460 = vunpack.c.l.b16 %v5364
  %v5461 = vunpack.c.l.b16 %v5365
  %v5462 = vunpack.c.l.b16 %v5366
  %v5463 = vunpack.c.l.b16 %v5367
  %v5464 = vunpack.c.l.b16 %v5368
  %v5465 = vunpack.c.l.b16 %v5369
  %v5466 = vunpack.c.l.b16 %v5370
  %v5467 = vunpack.c.l.b16 %v5371
  %v5468 = vunpack.c.l.b16 %v5372
  %v5469 = vunpack.c.l.b16 %v5373
  %v5470 = vunpack.c.l.b16 %v5374
  %v5471 = vunpack.c.l.b16 %v5375
  %v5472 = vunpack.c.l.b16 %v5376
  %v5473 = vunpack.c.l.b16 %v5377
  %v5474 = vunpack.c.l.b16 %v5378
  %v5475 = vunpack.c.l.b16 %v5379
  %v5476 = vunpack.c.l.b16 %v5380
  %v5477 = vunpack.c.l.b16 %v5381
  %v5478 = vunpack.c.l.b16 %v5382
  %v5479 = vunpack.c.l.b16 %v5383
  %v5480 = vunpack.c.l.b16 %v5384
  %v5481 = vunpack.c.l.b16 %v5385
  %v5482 = vunpack.c.l.b16 %v5386
  %v5483 = vunpack.c.l.b16 %v5387
  %v5484 = vunpack.c.l.b16 %v5388
  %v5485 = vunpack.c.l.b16 %v5389
  %v5486 = vunpack.c.l.b16 %v5390
  %v5487 = vunpack.c.l.b16 %v5391
  %v5488 = vunpack.c.l.b16 %v5392
  %v5489 = vpack.c.b16 %v5442, %v5441
  %v5490 = vpack.c.b16 %v5444, %v5443
  %v5491 = vpack.c.b16 %v5446, %v5445
  %v5492 = vpack.c.b16 %v5448, %v5447
  %v5493 = vpack.c.b16 %v5450, %v5449
  %v5494 = vpack.c.b16 %v5452, %v5451
  %v5495 = vpack.c.b16 %v5454, %v5453
  %v5496 = vpack.c.b16 %v5456, %v5455
  %v5497 = vpack.c.b16 %v5458, %v5457
  %v5498 = vpack.c.b16 %v5460, %v5459
  %v5499 = vpack.c.b16 %v5462, %v5461
  %v5500 = vpack.c.b16 %v5464, %v5463
  %v5501 = vpack.c.b16 %v5466, %v5465
  %v5502 = vpack.c.b16 %v5468, %v5467
  %v5503 = vpack.c.b16 %v5470, %v5469
  %v5504 = vpack.c.b16 %v5472, %v5471
  %v5505 = vpack.c.b16 %v5474, %v5473
  %v5506 = vpack.c.b16 %v5476, %v5475
  %v5507 = vpack.c.b16 %v5478, %v5477
  %v5508 = vpack.c.b16 %v5480, %v5479
  %v5509 = vpack.c.b16 %v5482, %v5481
  %v5510 = vpack.c.b16 %v5484, %v5483
  %v5511 = vpack.c.b16 %v5486, %v5485
  %v5512 = vpack.c.b16 %v5488, %v5487
  %5537 = vmatprep.subr.bf16.mxu0 0
  %5538 = vmatpush1.bf16.msra.mxu0 %v5489
  %5539 = vmatprep.subr.bf16.mxu0 0
  %5540 = vmatpush1.bf16.msra.mxu0 %v5490
  %5541 = vmatprep.subr.bf16.mxu0 0
  %5542 = vmatpush1.bf16.msra.mxu0 %v5491
  %5543 = vmatprep.subr.bf16.mxu0 0
  %5544 = vmatpush1.bf16.msra.mxu0 %v5492
  %5545 = vmatprep.subr.bf16.mxu0 0
  %5546 = vmatpush1.bf16.msra.mxu0 %v5493
  %5547 = vmatprep.subr.bf16.mxu0 0
  %5548 = vmatpush1.bf16.msra.mxu0 %v5494
  %5549 = vmatprep.subr.bf16.mxu0 0
  %5550 = vmatpush1.bf16.msra.mxu0 %v5495
  %5551 = vmatprep.subr.bf16.mxu0 0
  %5552 = vmatpush1.bf16.msra.mxu0 %v5496
  %5553 = vmatprep.subr.bf16.mxu0 0
  %5554 = vmatpush1.bf16.msra.mxu0 %v5497
  %5555 = vmatprep.subr.bf16.mxu0 0
  %5556 = vmatpush1.bf16.msra.mxu0 %v5498
  %5557 = vmatprep.subr.bf16.mxu0 0
  %5558 = vmatpush1.bf16.msra.mxu0 %v5499
  %5559 = vmatprep.subr.bf16.mxu0 0
  %5560 = vmatpush1.bf16.msra.mxu0 %v5500
  %5561 = vmatprep.subr.bf16.mxu0 0
  %5562 = vmatpush1.bf16.msra.mxu0 %v5501
  %5563 = vmatprep.subr.bf16.mxu0 0
  %5564 = vmatpush1.bf16.msra.mxu0 %v5502
  %5565 = vmatprep.subr.bf16.mxu0 0
  %5566 = vmatpush1.bf16.msra.mxu0 %v5503
  %5567 = vmatprep.subr.bf16.mxu0 0
  %5568 = vmatpush1.bf16.msra.mxu0 %v5504
  %5569 = vmatprep.mubr.bf16.mxu0 %v5340
  %5570 = vmatmul.mubr.bf16.gmra.mrb[0].mxu0 %v5339
  %v5571 = vpop.f32.mrb[0].mxu0
  %v5572 = vadd.f32 0.0, %v5571
  %v5573 = vpop.f32.mrb[0].mxu0
  %v5574 = vpop.f32.mrb[0].mxu0
  %v5575 = vadd.f32 0.0, %v5574
  %v5576 = vpop.f32.mrb[0].mxu0
  %5577 = vmatprep.mubr.bf16.mxu0 %v5343
  %5578 = vmatmul.mubr.bf16.gmra.mrb[0].mxu0 %v5342
  %v5579 = vpop.f32.mrb[0].mxu0
  %v5580 = vadd.f32 0.0, %v5579
  %v5581 = vpop.f32.mrb[0].mxu0
  %v5582 = vpop.f32.mrb[0].mxu0
  %v5583 = vadd.f32 0.0, %v5582
  %v5584 = vpop.f32.mrb[0].mxu0
  %5585 = vdwg.mxu0
  %5586 = vmatprep.subr.bf16.mxu0 0
  %5587 = vmatpush1.bf16.msra.mxu0 %v5505
  %5588 = vmatprep.subr.bf16.mxu0 0
  %5589 = vmatpush1.bf16.msra.mxu0 %v5506
  %5590 = vmatprep.subr.bf16.mxu0 0
  %5591 = vmatpush1.bf16.msra.mxu0 %v5507
  %5592 = vmatprep.subr.bf16.mxu0 0
  %5593 = vmatpush1.bf16.msra.mxu0 %v5508
  %5594 = vmatprep.subr.bf16.mxu0 0
  %5595 = vmatpush1.bf16.msra.mxu0 %v5509
  %5596 = vmatprep.subr.bf16.mxu0 0
  %5597 = vmatpush1.bf16.msra.mxu0 %v5510
  %5598 = vmatprep.subr.bf16.mxu0 0
  %5599 = vmatpush1.bf16.msra.mxu0 %v5511
  %5600 = vmatprep.subr.bf16.mxu0 0
  %5601 = vmatpush1.bf16.msra.mxu0 %v5512
  %5602 = vmatprep.subr.bf16.mxu0 0
  %5603 = vmatpush1.bf16.msra.mxu0 0
  %5604 = vmatprep.subr.bf16.mxu0 0
  %5605 = vmatpush1.bf16.msra.mxu0 0
  %5606 = vmatprep.subr.bf16.mxu0 0
  %5607 = vmatpush1.bf16.msra.mxu0 0
  %5608 = vmatprep.subr.bf16.mxu0 0
  %5609 = vmatpush1.bf16.msra.mxu0 0
  %5610 = vmatprep.subr.bf16.mxu0 0
  %5611 = vmatpush1.bf16.msra.mxu0 0
  %5612 = vmatprep.subr.bf16.mxu0 0
  %5613 = vmatpush1.bf16.msra.mxu0 0
  %5614 = vmatprep.subr.bf16.mxu0 0
  %5615 = vmatpush1.bf16.msra.mxu0 0
  %5616 = vmatprep.subr.bf16.mxu0 0
  %5617 = vmatpush1.bf16.msra.mxu0 0
  %5618 = vmatprep.mubr.bf16.mxu0 0
  %5619 = vmatmul.mubr.bf16.gmra.mrb[0].mxu0 %v5341
  %v5620 = vpop.f32.mrb[0].mxu0
  %v5621 = vadd.f32 %v5572, %v5620
  %v5622 = vpop.f32.mrb[0].mxu0
  %v5623 = vpop.f32.mrb[0].mxu0
  %v5624 = vadd.f32 %v5575, %v5623
  %v5625 = vpop.f32.mrb[0].mxu0
  %5626 = vmatprep.mubr.bf16.mxu0 0
  %5627 = vmatmul.mubr.bf16.gmra.mrb[0].mxu0 %v5344
  %v5628 = vpop.f32.mrb[0].mxu0
  %v5629 = vadd.f32 %v5580, %v5628
  %v5630 = vpop.f32.mrb[0].mxu0
  %v5631 = vpop.f32.mrb[0].mxu0
  %v5632 = vadd.f32 %v5583, %v5631
  %v5633 = vpop.f32.mrb[0].mxu0
  %5634 = vdwg.mxu0
  %v5635 = vmax.f32 %v5621, 0.0
  %v5636 = vmax.f32 %v5624, 0.0
  %v5637 = vmax.f32 %v5629, 0.0
  %v5638 = vmax.f32 %v5632, 0.0
  %v5639 = vpack.c.bf16 %v5636, %v5635
  %v5640 = vpack.c.bf16 %v5638, %v5637
  %v5641 = vld [vmem:[%s4] sm:$0xf]
  %v5642 = vld [vmem:[%s4 + $0x4] sm:$0xf]
  %v5643 = vld [vmem:[%s4 + $0x8] sm:$0xf]
  %v5644 = vld [vmem:[%s4 + $0xc] sm:$0xf]
  %v5645 = vld [vmem:[%s4 + $0x10] sm:$0xf]
  %v5646 = vld [vmem:[%s4 + $0x14] sm:$0xf]
  %v5647 = vld [vmem:[%s4 + $0x18] sm:$0xf]
  %v5648 = vld [vmem:[%s4 + $0x1c] sm:$0xf]
  %v5649 = vld [vmem:[%s4 + $0x20] sm:$0xf]
  %v5650 = vld [vmem:[%s4 + $0x24] sm:$0xf]
  %v5651 = vld [vmem:[%s4 + $0x28] sm:$0xf]
  %v5652 = vld [vmem:[%s4 + $0x2c] sm:$0xf]
  %v5653 = vld [vmem:[%s4 + $0x30] sm:$0xf]
  %v5654 = vld [vmem:[%s4 + $0x34] sm:$0xf]
  %v5655 = vld [vmem:[%s4 + $0x38] sm:$0xf]
  %v5656 = vld [vmem:[%s4 + $0x3c] sm:$0xf]
  %v5673 = vunpack.c.l.b16 %v5641
  %v5674 = vunpack.c.l.b16 %v5642
  %v5675 = vunpack.c.l.b16 %v5643
  %v5676 = vunpack.c.l.b16 %v5644
  %v5677 = vunpack.c.l.b16 %v5645
  %v5678 = vunpack.c.l.b16 %v5646
  %v5679 = vunpack.c.l.b16 %v5647
  %v5680 = vunpack.c.l.b16 %v5648
  %v5681 = vunpack.c.l.b16 %v5649
  %v5682 = vunpack.c.l.b16 %v5650
  %v5683 = vunpack.c.l.b16 %v5651
  %v5684 = vunpack.c.l.b16 %v5652
  %v5685 = vunpack.c.l.b16 %v5653
  %v5686 = vunpack.c.l.b16 %v5654
  %v5687 = vunpack.c.l.b16 %v5655
  %v5688 = vunpack.c.l.b16 %v5656
  %v5689 = vpack.c.b16 %v5674, %v5673
  %v5690 = vpack.c.b16 %v5676, %v5675
  %v5691 = vpack.c.b16 %v5678, %v5677
  %v5692 = vpack.c.b16 %v5680, %v5679
  %v5693 = vpack.c.b16 %v5682, %v5681
  %v5694 = vpack.c.b16 %v5684, %v5683
  %v5695 = vpack.c.b16 %v5686, %v5685
  %v5696 = vpack.c.b16 %v5688, %v5687
  %5705 = vmatprep.subr.bf16.mxu0 0
  %5706 = vmatpush1.bf16.msra.mxu0 %v5689
  %5707 = vmatprep.subr.bf16.mxu0 0
  %5708 = vmatpush1.bf16.msra.mxu0 %v5690
  %5709 = vmatprep.subr.bf16.mxu0 0
  %5710 = vmatpush1.bf16.msra.mxu0 %v5691
  %5711 = vmatprep.subr.bf16.mxu0 0
  %5712 = vmatpush1.bf16.msra.mxu0 %v5692
  %5713 = vmatprep.subr.bf16.mxu0 0
  %5714 = vmatpush1.bf16.msra.mxu0 %v5693
  %5715 = vmatprep.subr.bf16.mxu0 0
  %5716 = vmatpush1.bf16.msra.mxu0 %v5694
  %5717 = vmatprep.subr.bf16.mxu0 0
  %5718 = vmatpush1.bf16.msra.mxu0 %v5695
  %5719 = vmatprep.subr.bf16.mxu0 0
  %5720 = vmatpush1.bf16.msra.mxu0 %v5696
  %5721 = vmatprep.subr.bf16.mxu0 0
  %5722 = vmatpush1.bf16.msra.mxu0 0
  %5723 = vmatprep.subr.bf16.mxu0 0
  %5724 = vmatpush1.bf16.msra.mxu0 0
  %5725 = vmatprep.subr.bf16.mxu0 0
  %5726 = vmatpush1.bf16.msra.mxu0 0
  %5727 = vmatprep.subr.bf16.mxu0 0
  %5728 = vmatpush1.bf16.msra.mxu0 0
  %5729 = vmatprep.subr.bf16.mxu0 0
  %5730 = vmatpush1.bf16.msra.mxu0 0
  %5731 = vmatprep.subr.bf16.mxu0 0
  %5732 = vmatpush1.bf16.msra.mxu0 0
  %5733 = vmatprep.subr.bf16.mxu0 0
  %5734 = vmatpush1.bf16.msra.mxu0 0
  %5735 = vmatprep.subr.bf16.mxu0 0
  %5736 = vmatpush1.bf16.msra.mxu0 0
  %5737 = vmatprep.mubr.bf16.mxu0 0
  %5738 = vmatmul.mubr.bf16.gmra.mrb[0].mxu0 %v5639
  %v5739 = vpop.f32.mrb[0].mxu0
  %v5740 = vadd.f32 0.0, %v5739
  %v5741 = vpop.f32.mrb[0].mxu0
  %v5742 = vpop.f32.mrb[0].mxu0
  %v5743 = vadd.f32 0.0, %v5742
  %v5744 = vpop.f32.mrb[0].mxu0
  %5745 = vmatprep.mubr.bf16.mxu0 0
  %5746 = vmatmul.mubr.bf16.gmra.mrb[0].mxu0 %v5640
  %v5747 = vpop.f32.mrb[0].mxu0
  %v5748 = vadd.f32 0.0, %v5747
  %v5749 = vpop.f32.mrb[0].mxu0
  %v5750 = vpop.f32.mrb[0].mxu0
  %v5751 = vadd.f32 0.0, %v5750
  %v5752 = vpop.f32.mrb[0].mxu0
  %5753 = vdwg.mxu0
  %5754 = vmax.xlane.f32.xlu0 %v5740
  %v5755 = vpop.xlane.xlu0 %5754
  %5756 = vmax.xlane.f32.xlu0 %v5743
  %v5757 = vpop.xlane.xlu0 %5756
  %5758 = vmax.xlane.f32.xlu0 %v5748
  %v5759 = vpop.xlane.xlu0 %5758
  %5760 = vmax.xlane.f32.xlu0 %v5751
  %v5761 = vpop.xlane.xlu0 %5760
  %v5762 = vsub.f32 %v5740, %v5755
  %v5763 = vsub.f32 %v5743, %v5757
  %v5764 = vsub.f32 %v5748, %v5759
  %v5765 = vsub.f32 %v5751, %v5761
  %v5766 = vmul.f32 %v5762, 1.442695
  %v5767 = vpow.pop %v5766
  %v5768 = vmul.f32 %v5763, 1.442695
  %v5769 = vpow.pop %v5768
  %v5770 = vmul.f32 %v5764, 1.442695
  %v5771 = vpow.pop %v5770
  %v5772 = vmul.f32 %v5765, 1.442695
  %v5773 = vpow.pop %v5772
  %5774 = vadd.xlane.f32.xlu0 %v5767
  %v5775 = vpop.xlane.xlu0 %5774
  %5776 = vadd.xlane.f32.xlu0 %v5769
  %v5777 = vpop.xlane.xlu0 %5776
  %5778 = vadd.xlane.f32.xlu0 %v5771
  %v5779 = vpop.xlane.xlu0 %5778
  %5780 = vadd.xlane.f32.xlu0 %v5773
  %v5781 = vpop.xlane.xlu0 %5780
  %v5782 = vlog2.pop %v5775
  %v5783 = vmul.f32 %v5782, 0.6931472
  %v5784 = vlog2.pop %v5777
  %v5785 = vmul.f32 %v5784, 0.6931472
  %v5786 = vlog2.pop %v5779
  %v5787 = vmul.f32 %v5786, 0.6931472
  %v5788 = vlog2.pop %v5781
  %v5789 = vmul.f32 %v5788, 0.6931472
  %v5790 = vsub.f32 %v5762, %v5783
  %v5791 = vsub.f32 %v5763, %v5785
  %v5792 = vsub.f32 %v5764, %v5787
  %v5793 = vsub.f32 %v5765, %v5789
  %5794 = vst [vmem:[%s5] sm:$0xff] %v5790
  %5795 = vst [vmem:[%s5 + $0x8] sm:$0xff] %v5791
  %5796 = vst [vmem:[%s5 + $0x10] sm:$0xff] %v5792
  %5797 = vst [vmem:[%s5 + $0x18] sm:$0xff] %v5793
  // Predicated region
  $region22: #{custom_network_forward.1} parent=0 // pred_check
    _
  $region23: #{custom_network_forward.1} parent=0 // pred_check_branch
    %5799 = sbr.rel (0) target = $region25
  $region24: #{custom_network_forward.1} parent=0 // pred_region
    _
  $region25: #{custom_network_forward.1} parent=0 // pred_fallthru
    _
  // Predicated region
  $region26: #{custom_network_forward.1} parent=0 // pred_check
    _
  $region27: #{custom_network_forward.1} parent=0 // pred_check_branch
    %5801 = sbr.rel (0) target = $region29
  $region28: #{custom_network_forward.1} parent=0 // pred_region
    _
  $region29: #{custom_network_forward.1} parent=0 // pred_fallthru
    _

</llo_original>
